<compile_context>
chip_gen: v6e
topology: v6e:2x2x1
jax: 0.10.0
libtpu: 0.0.40
codegen_flags: <defaults>
</compile_context>

<pallas_src>
import functools

import jax
import jax.numpy as jnp
import numpy as np
from jax.experimental import pallas as pl
from jax.experimental.pallas import tpu as pltpu

EPS = 1e-5                       # nn.GroupNorm default eps
HI = jax.lax.Precision.HIGHEST


def _mish(v):
    # Mish(x) = x * tanh(softplus(x)) = x * u / (u + 2),  u = e^x (e^x + 2).
    # One EUP exp; the divide also runs on the EUP slot via approx vrcp.
    t = jnp.exp(jnp.minimum(v, 20.0))
    u = t * (t + 2.0)
    return v * (u * pl.reciprocal(u + 2.0, approx=True))


def _cond_res_block_kernel(x_ref, emb_ref, w1_ref, w2_ref, vecs_ref, p_ref, pt_ref,
                           *rest, cond_predict_scale, has_res_conv):
    if has_res_conv:
        wr_ref, o_ref = rest
    else:
        (o_ref,) = rest
        wr_ref = None

    Bt, L, Cin = x_ref.shape
    Cout = o_ref.shape[2]
    G = p_ref.shape[1]
    cg = Cout // G
    M = Bt * L
    # NOTE: inv_n bakes the static L from the block shape; a different L retraces.
    inv_n = 1.0 / float(L * cg)

    vecs = vecs_ref[...]                  # [8, Cout] f32: b1,g1,be1,b2,g2,be2,(br),0
    pmat = p_ref[...]                     # [Cout, G] one-hot group membership
    ptmat = pt_ref[...]                   # [G, Cout]

    def edge_index(C):
        # position-within-sample index l for every row of the flattened [M, C] view
        return jax.lax.broadcasted_iota(jnp.int32, (Bt, L, C), 1).reshape(M, C)

    def conv3(h_flat, wk_ref, b):
        # 3-tap "same" conv realised on the *input*: shift/mask the [M, C] f32
        # operand (cheaper than masking [M, Cout] outputs when C < Cout), then
        # accumulate three bf16 matmuls into one f32 buffer.  Boundary rows are
        # zeroed, so the flattened roll never leaks across samples.
        C = h_flat.shape[1]
        lidx = edge_index(C)
        h_prev = jnp.where(lidx == 0, 0.0, pltpu.roll(h_flat, 1, 0))         # h[r-1]
        h_next = jnp.where(lidx == L - 1, 0.0, pltpu.roll(h_flat, M - 1, 0))  # h[r+1]
        y = jnp.dot(h_prev.astype(jnp.bfloat16), wk_ref[0],
                    preferred_element_type=jnp.float32)
        y = y + jnp.dot(h_flat.astype(jnp.bfloat16), wk_ref[1],
                        preferred_element_type=jnp.float32)
        y = y + jnp.dot(h_next.astype(jnp.bfloat16), wk_ref[2],
                        preferred_element_type=jnp.float32)
        # TODO(synk): on v5e pack the 3 taps into K (concat -> [M,3C] @ [3C,Cout])
        # to better fill the 128-deep MXU when C is small.
        return y + b

    def group_norm(h_flat, gamma, beta):
        # h_flat: [M, Cout] f32.  Per-sample, per-group stats over (L, cg), f32.
        h3 = h_flat.reshape(Bt, L, Cout)
        s = jnp.sum(h3, axis=1)               # [Bt, Cout]
        ss = jnp.sum(h3 * h3, axis=1)
        gs = jnp.dot(s, pmat, precision=HI, preferred_element_type=jnp.float32)
        gss = jnp.dot(ss, pmat, precision=HI, preferred_element_type=jnp.float32)
        mean_g = gs * inv_n                   # [Bt, G]
        var_g = jnp.maximum(gss * inv_n - mean_g * mean_g, 0.0)   # clamp >= 0
        rstd_g = jax.lax.rsqrt(var_g + EPS)
        # Broadcast group stats back to channels.  Exact because ptmat is one-hot
        # and HI keeps the data operand in f32.
        # TODO(synk): a lane-repeat (reshape/broadcast) would keep these two tiny
        # matmuls off the MXU result FIFO entirely.
        mean = jnp.dot(mean_g, ptmat, precision=HI,
                       preferred_element_type=jnp.float32)        # [Bt, Cout]
        rstd = jnp.dot(rstd_g, ptmat, precision=HI,
                       preferred_element_type=jnp.float32)
        hn = (h3 - mean[:, None, :]) * rstd[:, None, :]
        return hn * gamma.reshape(1, 1, Cout) + beta.reshape(1, 1, Cout)

    # ---- blocks[0]: Conv1d(k=3, pad=1) -> GroupNorm -> Mish ----
    x_flat = x_ref[...].reshape(M, Cin)                       # f32
    h = conv3(x_flat, w1_ref, vecs[0:1])                      # [M, Cout] f32
    h3 = _mish(group_norm(h, vecs[1:2], vecs[2:3]))           # [Bt, L, Cout] f32

    # ---- FiLM conditioning (cond_encoder precomputed in the wrapper) ----
    emb = emb_ref[...]                                        # [Bt, 2|1, Cout] f32
    if cond_predict_scale:
        h3 = emb[:, 0:1, :] * h3 + emb[:, 1:2, :]
    else:
        h3 = h3 + emb

    # ---- blocks[1]: Conv1d -> GroupNorm -> Mish ----
    h = conv3(h3.reshape(M, Cout), w2_ref, vecs[3:4])
    h3 = _mish(group_norm(h, vecs[4:5], vecs[5:6]))

    # ---- residual: 1x1 conv, or true identity.  Re-read x here (the block is
    # already VMEM-resident) so x is not held live across both convs.
    if has_res_conv:
        xb = x_ref[...].reshape(M, Cin).astype(jnp.bfloat16)
        res = jnp.dot(xb, wr_ref[...],
                      preferred_element_type=jnp.float32) + vecs[6:7]
        res3 = res.reshape(Bt, L, Cout)
    else:
        res3 = x_ref[...]                                     # Cin == Cout, f32

    o_ref[...] = (h3 + res3).astype(o_ref.dtype)


def _pick_batch_tile(B, L, target_rows=512, min_grid_steps=2):
    """Largest Bt with Bt*L <= target_rows; keep >= min_grid_steps grid steps
    when B allows it (v7x has two TensorCores; a 1-step grid idles one)."""
    bt = max(1, min(B, target_rows // max(L, 1)))
    if min_grid_steps > 1 and B > 1:
        bt = min(bt, pl.cdiv(B, min_grid_steps))
    return bt


def _default_vmem_limit_bytes():
    # ~3/4 of physical VMEM, capped at 96 MiB: ~96 MiB on v5e/v6e, ~48 MiB on v7x.
    try:
        cap = int(pltpu.get_tpu_info().vmem_capacity_bytes)
        return min(96 * 1024 * 1024, (cap * 3) // 4)
    except Exception:
        return 48 * 1024 * 1024    # safe everywhere


def conditional_residual_block_1d_nlc(x_nlc, cond, params, *, cond_predict_scale=False,
                                      target_rows=512, min_grid_steps=2):
    """Channels-last core: x_nlc [B, L, Cin], cond [B, cond_dim] -> [B, L, Cout]."""
    B, L, Cin = x_nlc.shape
    Cout = int(params["b1"].shape[0])
    G = int(params["n_groups"])
    has_res_conv = params.get("wr", None) is not None

    # TODO(synk): emit/accept bf16 activations here when the caller tolerates it
    # (halves activation HBM traffic for this mostly memory-bound block).
    x = x_nlc.astype(jnp.float32)

    # cond_encoder (Mish -> Linear) precomputed once for the whole batch (tiny).
    c32 = cond.astype(jnp.float32)
    emb = jnp.dot(c32 * jnp.tanh(jax.nn.softplus(c32)),
                  params["wl"].T.astype(jnp.float32), precision=HI)
    emb = emb + params["bl"].astype(jnp.float32)
    emb_rows = 2 if cond_predict_scale else 1
    emb3 = emb.reshape(B, emb_rows, Cout)                             # [B, 2|1, Cout]

    # Conv weights: bf16 MXU operands (f32 accumulation inside the kernel).
    w1 = jnp.transpose(params["w1"], (2, 1, 0)).astype(jnp.bfloat16)  # [3, Cin, Cout]
    w2 = jnp.transpose(params["w2"], (2, 1, 0)).astype(jnp.bfloat16)  # [3, Cout, Cout]

    # Pack all per-channel vectors into one [8, Cout] f32 block (single DMA /
    # single (8,128)-padded VMEM buffer instead of 6-7 row constants).
    rows = [params["b1"], params["g1"], params["be1"],
            params["b2"], params["g2"], params["be2"]]
    if has_res_conv:
        rows.append(params["br"])
    vecs = jnp.stack([jnp.asarray(r, jnp.float32) for r in rows], axis=0)
    vecs = jnp.pad(vecs, ((0, 8 - vecs.shape[0]), (0, 0)))            # [8, Cout]

    # One-hot group-membership matrices for the GroupNorm channel<->group maps.
    cg = Cout // G
    gid = np.arange(Cout) // cg
    p_np = (gid[:, None] == np.arange(G)[None, :]).astype(np.float32)  # [Cout, G]
    pmat, ptmat = jnp.asarray(p_np), jnp.asarray(p_np.T)

    # Batch tiling: fold Bt samples into one Bt*L-row MXU tile.  Pad B so a
    # prime / non-divisible batch never degenerates to tiny matmuls.
    # TODO(synk): for Cout not a multiple of 128 (lane dim), callers should pad
    # channels / fuse blocks — lane-dense stores are the biggest single lever.
    Bt = _pick_batch_tile(B, L, target_rows=target_rows, min_grid_steps=min_grid_steps)
    steps = pl.cdiv(B, Bt)
    B_pad = steps * Bt
    if B_pad != B:
        x = jnp.pad(x, ((0, B_pad - B), (0, 0), (0, 0)))
        emb3 = jnp.pad(emb3, ((0, B_pad - B), (0, 0), (0, 0)))

    weights = [w1, w2, vecs, pmat, ptmat]
    if has_res_conv:
        weights.append(params["wr"][:, :, 0].T.astype(jnp.bfloat16))  # [Cin, Cout]

    # TODO(synk): single-buffer these grid-invariant weight blocks
    # (pipeline_mode=pl.Buffered(1)) once supported for top-level pallas_call
    # BlockSpecs — halves their VMEM footprint (matters on v7x's 64 MiB VMEM).
    def const_spec(a):
        nd = a.ndim
        return pl.BlockSpec(a.shape, lambda b, _nd=nd: (0,) * _nd)

    in_specs = ([pl.BlockSpec((Bt, L, Cin), lambda b: (b, 0, 0)),
                 pl.BlockSpec((Bt, emb_rows, Cout), lambda b: (b, 0, 0))]
                + [const_spec(w) for w in weights])

    kernel = functools.partial(_cond_res_block_kernel,
                               cond_predict_scale=cond_predict_scale,
                               has_res_conv=has_res_conv)

    out = pl.pallas_call(
        kernel,
        out_shape=jax.ShapeDtypeStruct((B_pad, L, Cout), jnp.float32),
        grid=(steps,),
        in_specs=in_specs,
        out_specs=pl.BlockSpec((Bt, L, Cout), lambda b: (b, 0, 0)),
        compiler_params=pltpu.CompilerParams(
            dimension_semantics=("parallel",),
            vmem_limit_bytes=_default_vmem_limit_bytes()),
    )(x, emb3, *weights)

    return out[:B]


def conditional_residual_block_1d(x_ncl, cond, params, *, cond_predict_scale=False):
    """PyTorch interface: x_ncl [B, Cin, L], cond [B, cond_dim] -> [B, Cout, L]."""
    # TODO(synk): these two HBM transposes disappear when the caller keeps
    # activations channels-last across the whole UNet — call *_nlc directly.
    x = jnp.transpose(x_ncl, (0, 2, 1))
    out = conditional_residual_block_1d_nlc(x, cond, params,
                                            cond_predict_scale=cond_predict_scale)
    return jnp.transpose(out, (0, 2, 1))


def ref_forward(x_ncl, cond, params, *, cond_predict_scale=False):
    """Pure-JAX reference matching PyTorch semantics (NCL layout, f32)."""
    def conv1d(h, W, b, pad):
        out = jax.lax.conv_general_dilated(
            h, W, window_strides=(1,), padding=[(pad, pad)],
            dimension_numbers=("NCH", "OIH", "NCH"), precision=HI)
        return out + b[None, :, None]

    def gn(h, gamma, beta, G):
        B, C, L = h.shape
        hg = h.reshape(B, G, C // G, L)
        mean = hg.mean(axis=(2, 3), keepdims=True)
        var = ((hg - mean) ** 2).mean(axis=(2, 3), keepdims=True)
        hn = ((hg - mean) / jnp.sqrt(var + EPS)).reshape(B, C, L)
        return hn * gamma[None, :, None] + beta[None, :, None]

    mish = lambda v: v * jnp.tanh(jax.nn.softplus(v))
    G = params["n_groups"]
    Cout = params["b1"].shape[0]

    h = conv1d(x_ncl, params["w1"], params["b1"], 1)
    h = mish(gn(h, params["g1"], params["be1"], G))
    emb = jnp.dot(mish(cond), params["wl"].T, precision=HI) + params["bl"]
    if cond_predict_scale:
        emb = emb.reshape(emb.shape[0], 2, Cout)
        h = emb[:, 0, :, None] * h + emb[:, 1, :, None]
    else:
        h = h + emb[:, :, None]
    h = conv1d(h, params["w2"], params["b2"], 1)
    h = mish(gn(h, params["g2"], params["be2"], G))
    if params.get("wr", None) is None:
        res = x_ncl
    else:
        res = conv1d(x_ncl, params["wr"], params["br"], 0)
    return h + res


def _make_params(key, Cin, Cout, cond_dim, n_groups, cond_predict_scale):
    cond_ch = Cout * 2 if cond_predict_scale else Cout
    ks = jax.random.split(key, 12)
    p = dict(
        n_groups=n_groups,
        w1=0.2 * jax.random.normal(ks[0], (Cout, Cin, 3), jnp.float32),
        b1=0.1 * jax.random.normal(ks[1], (Cout,), jnp.float32),
        g1=1.0 + 0.1 * jax.random.normal(ks[2], (Cout,), jnp.float32),
        be1=0.1 * jax.random.normal(ks[3], (Cout,), jnp.float32),
        wl=0.2 * jax.random.normal(ks[4], (cond_ch, cond_dim), jnp.float32),
        bl=0.1 * jax.random.normal(ks[5], (cond_ch,), jnp.float32),
        w2=0.2 * jax.random.normal(ks[6], (Cout, Cout, 3), jnp.float32),
        b2=0.1 * jax.random.normal(ks[7], (Cout,), jnp.float32),
        g2=1.0 + 0.1 * jax.random.normal(ks[8], (Cout,), jnp.float32),
        be2=0.1 * jax.random.normal(ks[9], (Cout,), jnp.float32),
    )
    if Cin != Cout:  # residual_conv = Conv1d(Cin, Cout, 1); else Identity
        p["wr"] = 0.2 * jax.random.normal(ks[10], (Cout, Cin, 1), jnp.float32)
        p["br"] = 0.1 * jax.random.normal(ks[11], (Cout,), jnp.float32)
    return p


if __name__ == "__main__":
    key = jax.random.PRNGKey(0)
    k_a, k_b = jax.random.split(key)

    # Config A: Cin != Cout (1x1 residual conv path), cond_predict_scale=False.
    B, Cin, Cout, L, cond_dim, G = 2, 8, 16, 16, 12, 8
    ka = jax.random.split(k_a, 3)
    xa = jax.random.normal(ka[0], (B, Cin, L), jnp.float32)
    ca = jax.random.normal(ka[1], (B, cond_dim), jnp.float32)
    pa = _make_params(ka[2], Cin, Cout, cond_dim, G, False)
    out_a = jax.block_until_ready(
        conditional_residual_block_1d(xa, ca, pa, cond_predict_scale=False))
    ref_a = ref_forward(xa, ca, pa, cond_predict_scale=False)
    np.testing.assert_allclose(np.asarray(out_a), np.asarray(ref_a),
                               rtol=1e-2, atol=3e-2)

    # Config B: Cin == Cout (identity residual, no matmul), cond_predict_scale=True.
    B, Cin, Cout, L, cond_dim, G = 4, 16, 16, 16, 12, 8
    kb = jax.random.split(k_b, 3)
    xb = jax.random.normal(kb[0], (B, Cin, L), jnp.float32)
    cb = jax.random.normal(kb[1], (B, cond_dim), jnp.float32)
    pb = _make_params(kb[2], Cin, Cout, cond_dim, G, True)
    out_b = jax.block_until_ready(
        conditional_residual_block_1d(xb, cb, pb, cond_predict_scale=True))
    ref_b = ref_forward(xb, cb, pb, cond_predict_scale=True)
    np.testing.assert_allclose(np.asarray(out_b), np.asarray(ref_b),
                               rtol=1e-2, atol=3e-2)

    print("KERNEL_OK")
</pallas_src>

<mosaic_0001>
module attributes {stable_mosaic.version = 11 : i64} {
  func.func @_cond_res_block_kernel(%arg0: i32, %arg1: memref<1x16x8xf32, #tpu.memory_space<vmem>>, %arg2: memref<1x1x16xf32, #tpu.memory_space<vmem>>, %arg3: memref<3x8x16xbf16, #tpu.memory_space<vmem>>, %arg4: memref<3x16x16xbf16, #tpu.memory_space<vmem>>, %arg5: memref<8x16xf32, #tpu.memory_space<vmem>>, %arg6: memref<16x8xf32, #tpu.memory_space<vmem>>, %arg7: memref<8x16xf32, #tpu.memory_space<vmem>>, %arg8: memref<8x16xbf16, #tpu.memory_space<vmem>>, %arg9: memref<1x16x16xf32, #tpu.memory_space<vmem>>) attributes {dimension_semantics = [#tpu.dimension_semantics<parallel>], iteration_bounds = array<i64: 2>, scalar_prefetch = 0 : i64, scratch_operands = 0 : i64, tpu.core_type = #tpu.core_type<tc>, window_params = [{transform_indices = @transform_0, window_bounds = array<i64: 1, 16, 8>}, {transform_indices = @transform_1, window_bounds = array<i64: 1, 1, 16>}, {pipeline_mode = #tpu.pipeline_mode<synchronous>, transform_indices = @transform_2, window_bounds = array<i64: 3, 8, 16>}, {pipeline_mode = #tpu.pipeline_mode<synchronous>, transform_indices = @transform_3, window_bounds = array<i64: 3, 16, 16>}, {pipeline_mode = #tpu.pipeline_mode<synchronous>, transform_indices = @transform_4, window_bounds = array<i64: 8, 16>}, {pipeline_mode = #tpu.pipeline_mode<synchronous>, transform_indices = @transform_5, window_bounds = array<i64: 16, 8>}, {pipeline_mode = #tpu.pipeline_mode<synchronous>, transform_indices = @transform_6, window_bounds = array<i64: 8, 16>}, {pipeline_mode = #tpu.pipeline_mode<synchronous>, transform_indices = @transform_7, window_bounds = array<i64: 8, 16>}, {transform_indices = @transform_8, window_bounds = array<i64: 1, 16, 16>}]} {
    %c0 = arith.constant 0 : index
    %c0_0 = arith.constant 0 : index
    %0 = vector.load %arg5[%c0, %c0_0] : memref<8x16xf32, #tpu.memory_space<vmem>>, vector<8x16xf32>
    %c0_1 = arith.constant 0 : index
    %c0_2 = arith.constant 0 : index
    %1 = vector.load %arg6[%c0_1, %c0_2] : memref<16x8xf32, #tpu.memory_space<vmem>>, vector<16x8xf32>
    %c0_3 = arith.constant 0 : index
    %c0_4 = arith.constant 0 : index
    %2 = vector.load %arg7[%c0_3, %c0_4] : memref<8x16xf32, #tpu.memory_space<vmem>>, vector<8x16xf32>
    %c0_5 = arith.constant 0 : index
    %c0_6 = arith.constant 0 : index
    %c0_7 = arith.constant 0 : index
    %3 = vector.load %arg1[%c0_5, %c0_6, %c0_7] : memref<1x16x8xf32, #tpu.memory_space<vmem>>, vector<1x16x8xf32>
    %4 = vector.shape_cast %3 : vector<1x16x8xf32> to vector<16x8xf32>
    %5 = vector.extract_strided_slice %0 {offsets = [0, 0], sizes = [1, 16], strides = [1, 1]} : vector<8x16xf32> to vector<1x16xf32>
    %6 = tpu.iota {dimensions = array<i32: 1>} : vector<1x16x8xi32>
    %7 = vector.shape_cast %6 : vector<1x16x8xi32> to vector<16x8xi32>
    %c0_i32 = arith.constant 0 : i32
    %8 = vector.broadcast %c0_i32 : i32 to vector<16x8xi32>
    %9 = arith.cmpi eq, %7, %8 : vector<16x8xi32>
    %c1_i32 = arith.constant 1 : i32
    %10 = tpu.dynamic_rotate %4 by %c1_i32 dim 0 : vector<16x8xf32>, i32 -> vector<16x8xf32>
    %cst = arith.constant 0.000000e+00 : f32
    %11 = vector.broadcast %cst : f32 to vector<16x8xf32>
    %12 = arith.select %9, %11, %10 : vector<16x8xi1>, vector<16x8xf32>
    %c15_i32 = arith.constant 15 : i32
    %13 = vector.broadcast %c15_i32 : i32 to vector<16x8xi32>
    %14 = arith.cmpi eq, %7, %13 : vector<16x8xi32>
    %c15_i32_8 = arith.constant 15 : i32
    %15 = tpu.dynamic_rotate %4 by %c15_i32_8 dim 0 : vector<16x8xf32>, i32 -> vector<16x8xf32>
    %cst_9 = arith.constant 0.000000e+00 : f32
    %16 = vector.broadcast %cst_9 : f32 to vector<16x8xf32>
    %17 = arith.select %14, %16, %15 : vector<16x8xi1>, vector<16x8xf32>
    %18 = arith.truncf %12 : vector<16x8xf32> to vector<16x8xbf16>
    %c0_10 = arith.constant 0 : index
    %c0_11 = arith.constant 0 : index
    %c0_12 = arith.constant 0 : index
    %19 = vector.load %arg3[%c0_10, %c0_11, %c0_12] : memref<3x8x16xbf16, #tpu.memory_space<vmem>>, vector<1x8x16xbf16>
    %20 = vector.shape_cast %19 : vector<1x8x16xbf16> to vector<8x16xbf16>
    %cst_13 = arith.constant dense<0.000000e+00> : vector<16x16xf32>
    %21 = tpu.matmul %18, %20, %cst_13 {dimension_numbers = #tpu.dot_dimension_numbers<[1], [0], [0], [1], [0, 0, 1, 1], [], []>} : vector<16x8xbf16>, vector<8x16xbf16>, vector<16x16xf32> -> vector<16x16xf32>
    %22 = arith.truncf %4 : vector<16x8xf32> to vector<16x8xbf16>
    %c1 = arith.constant 1 : index
    %c0_14 = arith.constant 0 : index
    %c0_15 = arith.constant 0 : index
    %23 = vector.load %arg3[%c1, %c0_14, %c0_15] : memref<3x8x16xbf16, #tpu.memory_space<vmem>>, vector<1x8x16xbf16>
    %24 = vector.shape_cast %23 : vector<1x8x16xbf16> to vector<8x16xbf16>
    %cst_16 = arith.constant dense<0.000000e+00> : vector<16x16xf32>
    %25 = tpu.matmul %22, %24, %cst_16 {dimension_numbers = #tpu.dot_dimension_numbers<[1], [0], [0], [1], [0, 0, 1, 1], [], []>} : vector<16x8xbf16>, vector<8x16xbf16>, vector<16x16xf32> -> vector<16x16xf32>
    %26 = arith.addf %21, %25 : vector<16x16xf32>
    %27 = arith.truncf %17 : vector<16x8xf32> to vector<16x8xbf16>
    %c2 = arith.constant 2 : index
    %c0_17 = arith.constant 0 : index
    %c0_18 = arith.constant 0 : index
    %28 = vector.load %arg3[%c2, %c0_17, %c0_18] : memref<3x8x16xbf16, #tpu.memory_space<vmem>>, vector<1x8x16xbf16>
    %29 = vector.shape_cast %28 : vector<1x8x16xbf16> to vector<8x16xbf16>
    %cst_19 = arith.constant dense<0.000000e+00> : vector<16x16xf32>
    %30 = tpu.matmul %27, %29, %cst_19 {dimension_numbers = #tpu.dot_dimension_numbers<[1], [0], [0], [1], [0, 0, 1, 1], [], []>} : vector<16x8xbf16>, vector<8x16xbf16>, vector<16x16xf32> -> vector<16x16xf32>
    %31 = arith.addf %26, %30 : vector<16x16xf32>
    %32 = vector.broadcast %5 : vector<1x16xf32> to vector<16x16xf32>
    %33 = arith.addf %31, %32 : vector<16x16xf32>
    %34 = vector.extract_strided_slice %0 {offsets = [1, 0], sizes = [1, 16], strides = [1, 1]} : vector<8x16xf32> to vector<1x16xf32>
    %35 = vector.extract_strided_slice %0 {offsets = [2, 0], sizes = [1, 16], strides = [1, 1]} : vector<8x16xf32> to vector<1x16xf32>
    %36 = vector.shape_cast %33 : vector<16x16xf32> to vector<1x16x16xf32>
    %cst_20 = arith.constant dense<0.000000e+00> : vector<1x16xf32>
    %37 = vector.multi_reduction <add>, %36, %cst_20 [1] : vector<1x16x16xf32> to vector<1x16xf32>
    %38 = arith.mulf %36, %36 : vector<1x16x16xf32>
    %cst_21 = arith.constant dense<0.000000e+00> : vector<1x16xf32>
    %39 = vector.multi_reduction <add>, %38, %cst_21 [1] : vector<1x16x16xf32> to vector<1x16xf32>
    %cst_22 = arith.constant dense<0.000000e+00> : vector<1x8xf32>
    %40 = tpu.matmul %37, %1, %cst_22 {dimension_numbers = #tpu.dot_dimension_numbers<[1], [0], [0], [1], [0, 0, 1, 1], [], []>, precision = #tpu.contract_precision<fp32>} : vector<1x16xf32>, vector<16x8xf32>, vector<1x8xf32> -> vector<1x8xf32>
    %cst_23 = arith.constant dense<0.000000e+00> : vector<1x8xf32>
    %41 = tpu.matmul %39, %1, %cst_23 {dimension_numbers = #tpu.dot_dimension_numbers<[1], [0], [0], [1], [0, 0, 1, 1], [], []>, precision = #tpu.contract_precision<fp32>} : vector<1x16xf32>, vector<16x8xf32>, vector<1x8xf32> -> vector<1x8xf32>
    %cst_24 = arith.constant 3.125000e-02 : f32
    %42 = vector.broadcast %cst_24 : f32 to vector<1x8xf32>
    %43 = arith.mulf %40, %42 : vector<1x8xf32>
    %cst_25 = arith.constant 3.125000e-02 : f32
    %44 = vector.broadcast %cst_25 : f32 to vector<1x8xf32>
    %45 = arith.mulf %41, %44 : vector<1x8xf32>
    %46 = arith.mulf %43, %43 : vector<1x8xf32>
    %47 = arith.subf %45, %46 : vector<1x8xf32>
    %cst_26 = arith.constant 0.000000e+00 : f32
    %48 = vector.broadcast %cst_26 : f32 to vector<1x8xf32>
    %49 = arith.maximumf %47, %48 : vector<1x8xf32>
    %cst_27 = arith.constant 9.99999974E-6 : f32
    %50 = vector.broadcast %cst_27 : f32 to vector<1x8xf32>
    %51 = arith.addf %49, %50 : vector<1x8xf32>
    %52 = math.rsqrt %51 : vector<1x8xf32>
    %cst_28 = arith.constant dense<0.000000e+00> : vector<1x16xf32>
    %53 = tpu.matmul %43, %2, %cst_28 {dimension_numbers = #tpu.dot_dimension_numbers<[1], [0], [0], [1], [0, 0, 1, 1], [], []>, precision = #tpu.contract_precision<fp32>} : vector<1x8xf32>, vector<8x16xf32>, vector<1x16xf32> -> vector<1x16xf32>
    %cst_29 = arith.constant dense<0.000000e+00> : vector<1x16xf32>
    %54 = tpu.matmul %52, %2, %cst_29 {dimension_numbers = #tpu.dot_dimension_numbers<[1], [0], [0], [1], [0, 0, 1, 1], [], []>, precision = #tpu.contract_precision<fp32>} : vector<1x8xf32>, vector<8x16xf32>, vector<1x16xf32> -> vector<1x16xf32>
    %55 = vector.shape_cast %53 : vector<1x16xf32> to vector<1x1x16xf32>
    %56 = vector.broadcast %55 : vector<1x1x16xf32> to vector<1x16x16xf32>
    %57 = arith.subf %36, %56 : vector<1x16x16xf32>
    %58 = vector.shape_cast %54 : vector<1x16xf32> to vector<1x1x16xf32>
    %59 = vector.broadcast %58 : vector<1x1x16xf32> to vector<1x16x16xf32>
    %60 = arith.mulf %57, %59 : vector<1x16x16xf32>
    %61 = vector.shape_cast %34 : vector<1x16xf32> to vector<1x1x16xf32>
    %62 = vector.broadcast %61 : vector<1x1x16xf32> to vector<1x16x16xf32>
    %63 = arith.mulf %60, %62 : vector<1x16x16xf32>
    %64 = vector.shape_cast %35 : vector<1x16xf32> to vector<1x1x16xf32>
    %65 = vector.broadcast %64 : vector<1x1x16xf32> to vector<1x16x16xf32>
    %66 = arith.addf %63, %65 : vector<1x16x16xf32>
    %cst_30 = arith.constant 2.000000e+01 : f32
    %67 = vector.broadcast %cst_30 : f32 to vector<1x16x16xf32>
    %68 = arith.minimumf %66, %67 : vector<1x16x16xf32>
    %69 = math.exp %68 : vector<1x16x16xf32>
    %cst_31 = arith.constant 2.000000e+00 : f32
    %70 = vector.broadcast %cst_31 : f32 to vector<1x16x16xf32>
    %71 = arith.addf %69, %70 : vector<1x16x16xf32>
    %72 = arith.mulf %69, %71 : vector<1x16x16xf32>
    %cst_32 = arith.constant 2.000000e+00 : f32
    %73 = vector.broadcast %cst_32 : f32 to vector<1x16x16xf32>
    %74 = arith.addf %72, %73 : vector<1x16x16xf32>
    %75 = tpu.reciprocal %74 {approx = true} : vector<1x16x16xf32> -> vector<1x16x16xf32>
    %76 = arith.mulf %72, %75 : vector<1x16x16xf32>
    %77 = arith.mulf %66, %76 : vector<1x16x16xf32>
    %c0_33 = arith.constant 0 : index
    %c0_34 = arith.constant 0 : index
    %c0_35 = arith.constant 0 : index
    %78 = vector.load %arg2[%c0_33, %c0_34, %c0_35] : memref<1x1x16xf32, #tpu.memory_space<vmem>>, vector<1x1x16xf32>
    %79 = vector.broadcast %78 : vector<1x1x16xf32> to vector<1x16x16xf32>
    %80 = arith.addf %77, %79 : vector<1x16x16xf32>
    %81 = vector.shape_cast %80 : vector<1x16x16xf32> to vector<16x16xf32>
    %82 = vector.extract_strided_slice %0 {offsets = [3, 0], sizes = [1, 16], strides = [1, 1]} : vector<8x16xf32> to vector<1x16xf32>
    %83 = tpu.iota {dimensions = array<i32: 1>} : vector<1x16x16xi32>
    %84 = vector.shape_cast %83 : vector<1x16x16xi32> to vector<16x16xi32>
    %c0_i32_36 = arith.constant 0 : i32
    %85 = vector.broadcast %c0_i32_36 : i32 to vector<16x16xi32>
    %86 = arith.cmpi eq, %84, %85 : vector<16x16xi32>
    %c1_i32_37 = arith.constant 1 : i32
    %87 = tpu.dynamic_rotate %81 by %c1_i32_37 dim 0 : vector<16x16xf32>, i32 -> vector<16x16xf32>
    %cst_38 = arith.constant 0.000000e+00 : f32
    %88 = vector.broadcast %cst_38 : f32 to vector<16x16xf32>
    %89 = arith.select %86, %88, %87 : vector<16x16xi1>, vector<16x16xf32>
    %c15_i32_39 = arith.constant 15 : i32
    %90 = vector.broadcast %c15_i32_39 : i32 to vector<16x16xi32>
    %91 = arith.cmpi eq, %84, %90 : vector<16x16xi32>
    %c15_i32_40 = arith.constant 15 : i32
    %92 = tpu.dynamic_rotate %81 by %c15_i32_40 dim 0 : vector<16x16xf32>, i32 -> vector<16x16xf32>
    %cst_41 = arith.constant 0.000000e+00 : f32
    %93 = vector.broadcast %cst_41 : f32 to vector<16x16xf32>
    %94 = arith.select %91, %93, %92 : vector<16x16xi1>, vector<16x16xf32>
    %95 = arith.truncf %89 : vector<16x16xf32> to vector<16x16xbf16>
    %c0_42 = arith.constant 0 : index
    %c0_43 = arith.constant 0 : index
    %c0_44 = arith.constant 0 : index
    %96 = vector.load %arg4[%c0_42, %c0_43, %c0_44] : memref<3x16x16xbf16, #tpu.memory_space<vmem>>, vector<1x16x16xbf16>
    %97 = vector.shape_cast %96 : vector<1x16x16xbf16> to vector<16x16xbf16>
    %cst_45 = arith.constant dense<0.000000e+00> : vector<16x16xf32>
    %98 = tpu.matmul %95, %97, %cst_45 {dimension_numbers = #tpu.dot_dimension_numbers<[1], [0], [0], [1], [0, 0, 1, 1], [], []>} : vector<16x16xbf16>, vector<16x16xbf16>, vector<16x16xf32> -> vector<16x16xf32>
    %99 = arith.truncf %81 : vector<16x16xf32> to vector<16x16xbf16>
    %c1_46 = arith.constant 1 : index
    %c0_47 = arith.constant 0 : index
    %c0_48 = arith.constant 0 : index
    %100 = vector.load %arg4[%c1_46, %c0_47, %c0_48] : memref<3x16x16xbf16, #tpu.memory_space<vmem>>, vector<1x16x16xbf16>
    %101 = vector.shape_cast %100 : vector<1x16x16xbf16> to vector<16x16xbf16>
    %cst_49 = arith.constant dense<0.000000e+00> : vector<16x16xf32>
    %102 = tpu.matmul %99, %101, %cst_49 {dimension_numbers = #tpu.dot_dimension_numbers<[1], [0], [0], [1], [0, 0, 1, 1], [], []>} : vector<16x16xbf16>, vector<16x16xbf16>, vector<16x16xf32> -> vector<16x16xf32>
    %103 = arith.addf %98, %102 : vector<16x16xf32>
    %104 = arith.truncf %94 : vector<16x16xf32> to vector<16x16xbf16>
    %c2_50 = arith.constant 2 : index
    %c0_51 = arith.constant 0 : index
    %c0_52 = arith.constant 0 : index
    %105 = vector.load %arg4[%c2_50, %c0_51, %c0_52] : memref<3x16x16xbf16, #tpu.memory_space<vmem>>, vector<1x16x16xbf16>
    %106 = vector.shape_cast %105 : vector<1x16x16xbf16> to vector<16x16xbf16>
    %cst_53 = arith.constant dense<0.000000e+00> : vector<16x16xf32>
    %107 = tpu.matmul %104, %106, %cst_53 {dimension_numbers = #tpu.dot_dimension_numbers<[1], [0], [0], [1], [0, 0, 1, 1], [], []>} : vector<16x16xbf16>, vector<16x16xbf16>, vector<16x16xf32> -> vector<16x16xf32>
    %108 = arith.addf %103, %107 : vector<16x16xf32>
    %109 = vector.broadcast %82 : vector<1x16xf32> to vector<16x16xf32>
    %110 = arith.addf %108, %109 : vector<16x16xf32>
    %111 = vector.extract_strided_slice %0 {offsets = [4, 0], sizes = [1, 16], strides = [1, 1]} : vector<8x16xf32> to vector<1x16xf32>
    %112 = vector.extract_strided_slice %0 {offsets = [5, 0], sizes = [1, 16], strides = [1, 1]} : vector<8x16xf32> to vector<1x16xf32>
    %113 = vector.shape_cast %110 : vector<16x16xf32> to vector<1x16x16xf32>
    %cst_54 = arith.constant dense<0.000000e+00> : vector<1x16xf32>
    %114 = vector.multi_reduction <add>, %113, %cst_54 [1] : vector<1x16x16xf32> to vector<1x16xf32>
    %115 = arith.mulf %113, %113 : vector<1x16x16xf32>
    %cst_55 = arith.constant dense<0.000000e+00> : vector<1x16xf32>
    %116 = vector.multi_reduction <add>, %115, %cst_55 [1] : vector<1x16x16xf32> to vector<1x16xf32>
    %cst_56 = arith.constant dense<0.000000e+00> : vector<1x8xf32>
    %117 = tpu.matmul %114, %1, %cst_56 {dimension_numbers = #tpu.dot_dimension_numbers<[1], [0], [0], [1], [0, 0, 1, 1], [], []>, precision = #tpu.contract_precision<fp32>} : vector<1x16xf32>, vector<16x8xf32>, vector<1x8xf32> -> vector<1x8xf32>
    %cst_57 = arith.constant dense<0.000000e+00> : vector<1x8xf32>
    %118 = tpu.matmul %116, %1, %cst_57 {dimension_numbers = #tpu.dot_dimension_numbers<[1], [0], [0], [1], [0, 0, 1, 1], [], []>, precision = #tpu.contract_precision<fp32>} : vector<1x16xf32>, vector<16x8xf32>, vector<1x8xf32> -> vector<1x8xf32>
    %cst_58 = arith.constant 3.125000e-02 : f32
    %119 = vector.broadcast %cst_58 : f32 to vector<1x8xf32>
    %120 = arith.mulf %117, %119 : vector<1x8xf32>
    %cst_59 = arith.constant 3.125000e-02 : f32
    %121 = vector.broadcast %cst_59 : f32 to vector<1x8xf32>
    %122 = arith.mulf %118, %121 : vector<1x8xf32>
    %123 = arith.mulf %120, %120 : vector<1x8xf32>
    %124 = arith.subf %122, %123 : vector<1x8xf32>
    %cst_60 = arith.constant 0.000000e+00 : f32
    %125 = vector.broadcast %cst_60 : f32 to vector<1x8xf32>
    %126 = arith.maximumf %124, %125 : vector<1x8xf32>
    %cst_61 = arith.constant 9.99999974E-6 : f32
    %127 = vector.broadcast %cst_61 : f32 to vector<1x8xf32>
    %128 = arith.addf %126, %127 : vector<1x8xf32>
    %129 = math.rsqrt %128 : vector<1x8xf32>
    %cst_62 = arith.constant dense<0.000000e+00> : vector<1x16xf32>
    %130 = tpu.matmul %120, %2, %cst_62 {dimension_numbers = #tpu.dot_dimension_numbers<[1], [0], [0], [1], [0, 0, 1, 1], [], []>, precision = #tpu.contract_precision<fp32>} : vector<1x8xf32>, vector<8x16xf32>, vector<1x16xf32> -> vector<1x16xf32>
    %cst_63 = arith.constant dense<0.000000e+00> : vector<1x16xf32>
    %131 = tpu.matmul %129, %2, %cst_63 {dimension_numbers = #tpu.dot_dimension_numbers<[1], [0], [0], [1], [0, 0, 1, 1], [], []>, precision = #tpu.contract_precision<fp32>} : vector<1x8xf32>, vector<8x16xf32>, vector<1x16xf32> -> vector<1x16xf32>
    %132 = vector.shape_cast %130 : vector<1x16xf32> to vector<1x1x16xf32>
    %133 = vector.broadcast %132 : vector<1x1x16xf32> to vector<1x16x16xf32>
    %134 = arith.subf %113, %133 : vector<1x16x16xf32>
    %135 = vector.shape_cast %131 : vector<1x16xf32> to vector<1x1x16xf32>
    %136 = vector.broadcast %135 : vector<1x1x16xf32> to vector<1x16x16xf32>
    %137 = arith.mulf %134, %136 : vector<1x16x16xf32>
    %138 = vector.shape_cast %111 : vector<1x16xf32> to vector<1x1x16xf32>
    %139 = vector.broadcast %138 : vector<1x1x16xf32> to vector<1x16x16xf32>
    %140 = arith.mulf %137, %139 : vector<1x16x16xf32>
    %141 = vector.shape_cast %112 : vector<1x16xf32> to vector<1x1x16xf32>
    %142 = vector.broadcast %141 : vector<1x1x16xf32> to vector<1x16x16xf32>
    %143 = arith.addf %140, %142 : vector<1x16x16xf32>
    %cst_64 = arith.constant 2.000000e+01 : f32
    %144 = vector.broadcast %cst_64 : f32 to vector<1x16x16xf32>
    %145 = arith.minimumf %143, %144 : vector<1x16x16xf32>
    %146 = math.exp %145 : vector<1x16x16xf32>
    %cst_65 = arith.constant 2.000000e+00 : f32
    %147 = vector.broadcast %cst_65 : f32 to vector<1x16x16xf32>
    %148 = arith.addf %146, %147 : vector<1x16x16xf32>
    %149 = arith.mulf %146, %148 : vector<1x16x16xf32>
    %cst_66 = arith.constant 2.000000e+00 : f32
    %150 = vector.broadcast %cst_66 : f32 to vector<1x16x16xf32>
    %151 = arith.addf %149, %150 : vector<1x16x16xf32>
    %152 = tpu.reciprocal %151 {approx = true} : vector<1x16x16xf32> -> vector<1x16x16xf32>
    %153 = arith.mulf %149, %152 : vector<1x16x16xf32>
    %154 = arith.mulf %143, %153 : vector<1x16x16xf32>
    %c0_67 = arith.constant 0 : index
    %c0_68 = arith.constant 0 : index
    %c0_69 = arith.constant 0 : index
    %155 = vector.load %arg1[%c0_67, %c0_68, %c0_69] : memref<1x16x8xf32, #tpu.memory_space<vmem>>, vector<1x16x8xf32>
    %156 = vector.shape_cast %155 : vector<1x16x8xf32> to vector<16x8xf32>
    %157 = arith.truncf %156 : vector<16x8xf32> to vector<16x8xbf16>
    %c0_70 = arith.constant 0 : index
    %c0_71 = arith.constant 0 : index
    %158 = vector.load %arg8[%c0_70, %c0_71] : memref<8x16xbf16, #tpu.memory_space<vmem>>, vector<8x16xbf16>
    %cst_72 = arith.constant dense<0.000000e+00> : vector<16x16xf32>
    %159 = tpu.matmul %157, %158, %cst_72 {dimension_numbers = #tpu.dot_dimension_numbers<[1], [0], [0], [1], [0, 0, 1, 1], [], []>} : vector<16x8xbf16>, vector<8x16xbf16>, vector<16x16xf32> -> vector<16x16xf32>
    %160 = vector.extract_strided_slice %0 {offsets = [6, 0], sizes = [1, 16], strides = [1, 1]} : vector<8x16xf32> to vector<1x16xf32>
    %161 = vector.broadcast %160 : vector<1x16xf32> to vector<16x16xf32>
    %162 = arith.addf %159, %161 : vector<16x16xf32>
    %163 = vector.shape_cast %162 : vector<16x16xf32> to vector<1x16x16xf32>
    %164 = arith.addf %154, %163 : vector<1x16x16xf32>
    %c0_73 = arith.constant 0 : index
    %c0_74 = arith.constant 0 : index
    %c0_75 = arith.constant 0 : index
    %165 = vector.load %arg9[%c0_73, %c0_74, %c0_75] : memref<1x16x16xf32, #tpu.memory_space<vmem>>, vector<1x16x16xf32>
    tpu.vector_store %arg9[%c0_73, %c0_74, %c0_75], %164 {strides = array<i32>} : memref<1x16x16xf32, #tpu.memory_space<vmem>>, vector<1x16x16xf32>,
    return
  }
  func.func @transform_0(%arg0: i32) -> (i32, i32, i32) {
    %c0_i32 = arith.constant 0 : i32
    %c0_i32_0 = arith.constant 0 : i32
    %c0_i32_1 = arith.constant 0 : i32
    return %arg0, %c0_i32, %c0_i32_0 : i32, i32, i32
  }
  func.func @transform_1(%arg0: i32) -> (i32, i32, i32) {
    %c0_i32 = arith.constant 0 : i32
    %c0_i32_0 = arith.constant 0 : i32
    %c0_i32_1 = arith.constant 0 : i32
    return %arg0, %c0_i32, %c0_i32_0 : i32, i32, i32
  }
  func.func @transform_2(%arg0: i32) -> (i32, i32, i32) {
    %c0_i32 = arith.constant 0 : i32
    %c0_i32_0 = arith.constant 0 : i32
    %c0_i32_1 = arith.constant 0 : i32
    %c0_i32_2 = arith.constant 0 : i32
    return %c0_i32, %c0_i32_0, %c0_i32_1 : i32, i32, i32
  }
  func.func @transform_3(%arg0: i32) -> (i32, i32, i32) {
    %c0_i32 = arith.constant 0 : i32
    %c0_i32_0 = arith.constant 0 : i32
    %c0_i32_1 = arith.constant 0 : i32
    %c0_i32_2 = arith.constant 0 : i32
    return %c0_i32, %c0_i32_0, %c0_i32_1 : i32, i32, i32
  }
  func.func @transform_4(%arg0: i32) -> (i32, i32) {
    %c0_i32 = arith.constant 0 : i32
    %c0_i32_0 = arith.constant 0 : i32
    %c0_i32_1 = arith.constant 0 : i32
    return %c0_i32, %c0_i32_0 : i32, i32
  }
  func.func @transform_5(%arg0: i32) -> (i32, i32) {
    %c0_i32 = arith.constant 0 : i32
    %c0_i32_0 = arith.constant 0 : i32
    %c0_i32_1 = arith.constant 0 : i32
    return %c0_i32, %c0_i32_0 : i32, i32
  }
  func.func @transform_6(%arg0: i32) -> (i32, i32) {
    %c0_i32 = arith.constant 0 : i32
    %c0_i32_0 = arith.constant 0 : i32
    %c0_i32_1 = arith.constant 0 : i32
    return %c0_i32, %c0_i32_0 : i32, i32
  }
  func.func @transform_7(%arg0: i32) -> (i32, i32) {
    %c0_i32 = arith.constant 0 : i32
    %c0_i32_0 = arith.constant 0 : i32
    %c0_i32_1 = arith.constant 0 : i32
    return %c0_i32, %c0_i32_0 : i32, i32
  }
  func.func @transform_8(%arg0: i32) -> (i32, i32, i32) {
    %c0_i32 = arith.constant 0 : i32
    %c0_i32_0 = arith.constant 0 : i32
    %c0_i32_1 = arith.constant 0 : i32
    return %arg0, %c0_i32, %c0_i32_0 : i32, i32, i32
  }
}

</mosaic_0001>

<llo_original>
// kernel: tpu_custom_call.1
$region0: #{tpu_custom_call.1}
  #allocation0 [shape = 'u32[]', space=smem, size = 0x4, offset = 0x4, fixed_abs, tag = 'smem constant byte address 0x4 - core index']
  #allocation1 [shape = 'u32[144,128]{1,0:T(1,128)}', space=vmem, size = 0x12000, scoped, tag = 'internal scratch']
  %s0 = inlined_call_operand.vmem [shape: f32[2,16,8], index: 0, kind: input, shape index: {}]
  %s1 = inlined_call_operand.hbm [shape: f32[2,1,16], index: 1, kind: input, shape index: {}]
  %s2 = inlined_call_operand.vmem [shape: bf16[3,8,16], index: 2, kind: input, shape index: {}]
  %s3 = inlined_call_operand.vmem [shape: bf16[3,16,16], index: 3, kind: input, shape index: {}]
  %s4 = inlined_call_operand.vmem [shape: f32[8,16], index: 4, kind: input, shape index: {}]
  %s5 = inlined_call_operand.vmem [shape: f32[16,8], index: 5, kind: input, shape index: {}]
  %s6 = inlined_call_operand.vmem [shape: f32[8,16], index: 6, kind: input, shape index: {}]
  %s7 = inlined_call_operand.vmem [shape: bf16[8,16], index: 7, kind: input, shape index: {}]
  %s8 = inlined_call_operand.hbm [shape: f32[2,16,16], index: 8, kind: output, shape index: {}]
  %s9 = sld [smem:[#allocation0]]
  $region69: #{tpu_custom_call.1} parent=0
    _
  %s11 = ssub.s32 1, %s9
  %s12 = scalar_select 0, %s11, %s9
  $region1: #{tpu_custom_call.1} parent=0
    #allocation2 [shape = 'u8[1024]{0}', space=vmem, size = 0x400, scoped, tag = 'input window, operand 1']
    #allocation3 [shape = 's32[2]{0}', space=sflag, size = 0x8, scoped, tag = 'scoped memory for tpu_custom_call.1']
    #allocation4 [shape = 's32[2]{0}', space=sflag, size = 0x8, scoped, tag = 'scoped memory for tpu_custom_call.1']
    #allocation5 [shape = 'u8[16384]{0}', space=vmem, size = 0x4000, scoped, tag = 'output window, operand 0']
    %13 = vsyncpa [#allocation3], 0
    %s14 = scalar_lea.sflag [#allocation3], 1
    %15 = vsyncpa %s14, 0
    %16 = vsyncpa [#allocation4], 0
    %s17 = scalar_lea.sflag [#allocation4], 1
    %18 = vsyncpa %s17, 0
    loop: start=0, step=1, limit=4
    $region2: #{tpu_custom_call.1} parent=1 // loop_pre_header
      _
    $region3: #{tpu_custom_call.1} parent=1 // loop_header
      %s20 = sphi 0, %s24
      %p21 = scmp.ge.s32.totalorder %s20, 4
      %s30 = sphi 0, %s32
      %s33 = sphi 0, %s30
      %s34 = sphi 0, %s33
      %s50 = sphi 0, %s34
      %s56 = sphi 0, %s58
      %s59 = sphi 0, %s56
      %s60 = sphi 0, %s59
      %s76 = sphi 0, %s60
      %s80 = sphi 0, %s80
      %s82 = sphi 0, %s80
      %s83 = sphi 0, %s82
      %s97 = sphi 0, %s83
      %s101 = sphi 0, %s101
      %s103 = sphi 0, %s101
      %s104 = sphi 0, %s103
      %s118 = sphi 0, %s104
      %s122 = sphi 0, %s122
      %s124 = sphi 0, %s122
      %s125 = sphi 0, %s124
      %s139 = sphi 0, %s125
      %s143 = sphi 0, %s143
      %s145 = sphi 0, %s143
      %s146 = sphi 0, %s145
      %s160 = sphi 0, %s146
      %s164 = sphi 0, %s164
      %s166 = sphi 0, %s164
      %s167 = sphi 0, %s166
      %s181 = sphi 0, %s167
      %s185 = sphi 0, %s185
      %s187 = sphi 0, %s185
      %s188 = sphi 0, %s187
      %s202 = sphi 0, %s188
      %s208 = sphi 0, %s210
      %s211 = sphi 0, %s208
      %s212 = sphi 0, %s211
      %s228 = sphi 0, %s212
    $region4: #{tpu_custom_call.1} parent=1 // loop_header_branch
      %23 = sbr.rel (%p21) target = $region8
    $region5: #{tpu_custom_call.1} parent=1 // loop_body
      %s25 = ssub.s32 %s20, 1
      %s26 = ssub.s32 %s20, 2
      %s27 = sadd.s32 %s20, 1
      %s28 = ssub.s32 %s20, %s27
      %p29 = scmp.eq.s32.totalorder %s28, 0
      %s31 = sadd.s32 %s30, 1
      %s32 = scalar_select %p29, %s30, %s31
      %p35 = pneg %p29
      %p36 = scmp.eq.s32.totalorder %s20, 1
      %p37 = por %p35, %p36
      %p38 = scmp.ne.s32.totalorder %s30, %s33
      %p39 = scmp.eq.s32.totalorder %s20, 0
      %p40 = por %p38, %p39
      %p41 = scmp.ne.s32.totalorder %s30, %s33
      %p42 = scmp.eq.s32.totalorder %s25, 1
      %p43 = por %p41, %p42
      %p44 = scmp.ne.s32.totalorder %s33, %s34
      %p45 = scmp.eq.s32.totalorder %s25, 0
      %p46 = por %p44, %p45
      %p47 = scmp.ne.s32.totalorder %s33, %s34
      %p48 = scmp.eq.s32.totalorder %s26, 1
      %p49 = por %p47, %p48
      %p51 = scmp.ne.s32.totalorder %s34, %s50
      %p52 = scmp.eq.s32.totalorder %s26, 0
      %p53 = por %p51, %p52
      %s54 = ssub.s32 %s20, %s27
      %p55 = scmp.eq.s32.totalorder %s54, 0
      %s57 = sadd.s32 %s56, 1
      %s58 = scalar_select %p55, %s56, %s57
      %p61 = pneg %p55
      %p62 = scmp.eq.s32.totalorder %s20, 1
      %p63 = por %p61, %p62
      %p64 = scmp.ne.s32.totalorder %s56, %s59
      %p65 = scmp.eq.s32.totalorder %s20, 0
      %p66 = por %p64, %p65
      %p67 = scmp.ne.s32.totalorder %s56, %s59
      %p68 = scmp.eq.s32.totalorder %s25, 1
      %p69 = por %p67, %p68
      %p70 = scmp.ne.s32.totalorder %s59, %s60
      %p71 = scmp.eq.s32.totalorder %s25, 0
      %p72 = por %p70, %p71
      %p73 = scmp.ne.s32.totalorder %s59, %s60
      %p74 = scmp.eq.s32.totalorder %s26, 1
      %p75 = por %p73, %p74
      %p77 = scmp.ne.s32.totalorder %s60, %s76
      %p78 = scmp.eq.s32.totalorder %s26, 0
      %p79 = por %p77, %p78
      %s81 = sadd.s32 %s80, 1
      %p84 = scmp.eq.s32.totalorder %s20, 1
      %p85 = scmp.ne.s32.totalorder %s80, %s82
      %p86 = scmp.eq.s32.totalorder %s20, 0
      %p87 = por %p85, %p86
      %p88 = scmp.ne.s32.totalorder %s80, %s82
      %p89 = scmp.eq.s32.totalorder %s25, 1
      %p90 = por %p88, %p89
      %p91 = scmp.ne.s32.totalorder %s82, %s83
      %p92 = scmp.eq.s32.totalorder %s25, 0
      %p93 = por %p91, %p92
      %p94 = scmp.ne.s32.totalorder %s82, %s83
      %p95 = scmp.eq.s32.totalorder %s26, 1
      %p96 = por %p94, %p95
      %p98 = scmp.ne.s32.totalorder %s83, %s97
      %p99 = scmp.eq.s32.totalorder %s26, 0
      %p100 = por %p98, %p99
      %s102 = sadd.s32 %s101, 1
      %p105 = scmp.eq.s32.totalorder %s20, 1
      %p106 = scmp.ne.s32.totalorder %s101, %s103
      %p107 = scmp.eq.s32.totalorder %s20, 0
      %p108 = por %p106, %p107
      %p109 = scmp.ne.s32.totalorder %s101, %s103
      %p110 = scmp.eq.s32.totalorder %s25, 1
      %p111 = por %p109, %p110
      %p112 = scmp.ne.s32.totalorder %s103, %s104
      %p113 = scmp.eq.s32.totalorder %s25, 0
      %p114 = por %p112, %p113
      %p115 = scmp.ne.s32.totalorder %s103, %s104
      %p116 = scmp.eq.s32.totalorder %s26, 1
      %p117 = por %p115, %p116
      %p119 = scmp.ne.s32.totalorder %s104, %s118
      %p120 = scmp.eq.s32.totalorder %s26, 0
      %p121 = por %p119, %p120
      %s123 = sadd.s32 %s122, 1
      %p126 = scmp.eq.s32.totalorder %s20, 1
      %p127 = scmp.ne.s32.totalorder %s122, %s124
      %p128 = scmp.eq.s32.totalorder %s20, 0
      %p129 = por %p127, %p128
      %p130 = scmp.ne.s32.totalorder %s122, %s124
      %p131 = scmp.eq.s32.totalorder %s25, 1
      %p132 = por %p130, %p131
      %p133 = scmp.ne.s32.totalorder %s124, %s125
      %p134 = scmp.eq.s32.totalorder %s25, 0
      %p135 = por %p133, %p134
      %p136 = scmp.ne.s32.totalorder %s124, %s125
      %p137 = scmp.eq.s32.totalorder %s26, 1
      %p138 = por %p136, %p137
      %p140 = scmp.ne.s32.totalorder %s125, %s139
      %p141 = scmp.eq.s32.totalorder %s26, 0
      %p142 = por %p140, %p141
      %s144 = sadd.s32 %s143, 1
      %p147 = scmp.eq.s32.totalorder %s20, 1
      %p148 = scmp.ne.s32.totalorder %s143, %s145
      %p149 = scmp.eq.s32.totalorder %s20, 0
      %p150 = por %p148, %p149
      %p151 = scmp.ne.s32.totalorder %s143, %s145
      %p152 = scmp.eq.s32.totalorder %s25, 1
      %p153 = por %p151, %p152
      %p154 = scmp.ne.s32.totalorder %s145, %s146
      %p155 = scmp.eq.s32.totalorder %s25, 0
      %p156 = por %p154, %p155
      %p157 = scmp.ne.s32.totalorder %s145, %s146
      %p158 = scmp.eq.s32.totalorder %s26, 1
      %p159 = por %p157, %p158
      %p161 = scmp.ne.s32.totalorder %s146, %s160
      %p162 = scmp.eq.s32.totalorder %s26, 0
      %p163 = por %p161, %p162
      %s165 = sadd.s32 %s164, 1
      %p168 = scmp.eq.s32.totalorder %s20, 1
      %p169 = scmp.ne.s32.totalorder %s164, %s166
      %p170 = scmp.eq.s32.totalorder %s20, 0
      %p171 = por %p169, %p170
      %p172 = scmp.ne.s32.totalorder %s164, %s166
      %p173 = scmp.eq.s32.totalorder %s25, 1
      %p174 = por %p172, %p173
      %p175 = scmp.ne.s32.totalorder %s166, %s167
      %p176 = scmp.eq.s32.totalorder %s25, 0
      %p177 = por %p175, %p176
      %p178 = scmp.ne.s32.totalorder %s166, %s167
      %p179 = scmp.eq.s32.totalorder %s26, 1
      %p180 = por %p178, %p179
      %p182 = scmp.ne.s32.totalorder %s167, %s181
      %p183 = scmp.eq.s32.totalorder %s26, 0
      %p184 = por %p182, %p183
      %s186 = sadd.s32 %s185, 1
      %p189 = scmp.eq.s32.totalorder %s20, 1
      %p190 = scmp.ne.s32.totalorder %s185, %s187
      %p191 = scmp.eq.s32.totalorder %s20, 0
      %p192 = por %p190, %p191
      %p193 = scmp.ne.s32.totalorder %s185, %s187
      %p194 = scmp.eq.s32.totalorder %s25, 1
      %p195 = por %p193, %p194
      %p196 = scmp.ne.s32.totalorder %s187, %s188
      %p197 = scmp.eq.s32.totalorder %s25, 0
      %p198 = por %p196, %p197
      %p199 = scmp.ne.s32.totalorder %s187, %s188
      %p200 = scmp.eq.s32.totalorder %s26, 1
      %p201 = por %p199, %p200
      %p203 = scmp.ne.s32.totalorder %s188, %s202
      %p204 = scmp.eq.s32.totalorder %s26, 0
      %p205 = por %p203, %p204
      %s206 = ssub.s32 %s20, %s27
      %p207 = scmp.eq.s32.totalorder %s206, 0
      %s209 = sadd.s32 %s208, 1
      %s210 = scalar_select %p207, %s208, %s209
      %p213 = pneg %p207
      %p214 = scmp.eq.s32.totalorder %s20, 1
      %p215 = por %p213, %p214
      %p216 = scmp.ne.s32.totalorder %s208, %s211
      %p217 = scmp.eq.s32.totalorder %s20, 0
      %p218 = por %p216, %p217
      %p219 = scmp.ne.s32.totalorder %s208, %s211
      %p220 = scmp.eq.s32.totalorder %s25, 1
      %p221 = por %p219, %p220
      %p222 = scmp.ne.s32.totalorder %s211, %s212
      %p223 = scmp.eq.s32.totalorder %s25, 0
      %p224 = por %p222, %p223
      %p225 = scmp.ne.s32.totalorder %s211, %s212
      %p226 = scmp.eq.s32.totalorder %s26, 1
      %p227 = por %p225, %p226
      %p229 = scmp.ne.s32.totalorder %s212, %s228
      %p230 = scmp.eq.s32.totalorder %s26, 0
      %p231 = por %p229, %p230
      %p232 = scmp.le.s32.totalorder 1, %s20
      %p233 = scmp.lt.s32.totalorder %s20, 3
      %p234 = pnand %p232, %p233
      %p235 = pneg %p234
      // Predicated region
      $region9: #{tpu_custom_call.1} parent=5 // pred_check
        _
      $region10: #{tpu_custom_call.1} parent=5 // pred_check_branch
        %237 = sbr.rel (%p234) target = $region12
      $region11: #{tpu_custom_call.1} parent=5 // pred_region
        %s238 = ssub.s32 %s20, 1
        // Predicated region
        $region13: #{tpu_custom_call.1} parent=11 // pred_check
          %p239 = pneg %p93
        $region14: #{tpu_custom_call.1} parent=11 // pred_check_branch
          %241 = sbr.rel (%p239) target = $region16
        $region15: #{tpu_custom_call.1} parent=11 // pred_region
          _
        $region16: #{tpu_custom_call.1} parent=11 // pred_fallthru
          _
        // Predicated region
        $region17: #{tpu_custom_call.1} parent=11 // pred_check
          %p242 = pneg %p114
        $region18: #{tpu_custom_call.1} parent=11 // pred_check_branch
          %244 = sbr.rel (%p242) target = $region20
        $region19: #{tpu_custom_call.1} parent=11 // pred_region
          _
        $region20: #{tpu_custom_call.1} parent=11 // pred_fallthru
          _
        // Predicated region
        $region21: #{tpu_custom_call.1} parent=11 // pred_check
          %p245 = pneg %p135
        $region22: #{tpu_custom_call.1} parent=11 // pred_check_branch
          %247 = sbr.rel (%p245) target = $region24
        $region23: #{tpu_custom_call.1} parent=11 // pred_region
          _
        $region24: #{tpu_custom_call.1} parent=11 // pred_fallthru
          _
        // Predicated region
        $region25: #{tpu_custom_call.1} parent=11 // pred_check
          %p248 = pneg %p156
        $region26: #{tpu_custom_call.1} parent=11 // pred_check_branch
          %250 = sbr.rel (%p248) target = $region28
        $region27: #{tpu_custom_call.1} parent=11 // pred_region
          _
        $region28: #{tpu_custom_call.1} parent=11 // pred_fallthru
          _
        // Predicated region
        $region29: #{tpu_custom_call.1} parent=11 // pred_check
          %p251 = pneg %p177
        $region30: #{tpu_custom_call.1} parent=11 // pred_check_branch
          %253 = sbr.rel (%p251) target = $region32
        $region31: #{tpu_custom_call.1} parent=11 // pred_region
          _
        $region32: #{tpu_custom_call.1} parent=11 // pred_fallthru
          _
        // Predicated region
        $region33: #{tpu_custom_call.1} parent=11 // pred_check
          %p254 = pneg %p198
        $region34: #{tpu_custom_call.1} parent=11 // pred_check_branch
          %256 = sbr.rel (%p254) target = $region36
        $region35: #{tpu_custom_call.1} parent=11 // pred_region
          _
        $region36: #{tpu_custom_call.1} parent=11 // pred_fallthru
          _
      $region12: #{tpu_custom_call.1} parent=5 // pred_fallthru
        _
      %p257 = scmp.lt.s32.totalorder %s20, 2
      // Predicated region
      $region37: #{tpu_custom_call.1} parent=5 // pred_check
        %p258 = pneg %p257
      $region38: #{tpu_custom_call.1} parent=5 // pred_check_branch
        %260 = sbr.rel (%p258) target = $region40
      $region39: #{tpu_custom_call.1} parent=5 // pred_region
        // Predicated region
        $region41: #{tpu_custom_call.1} parent=39 // pred_check
          %p261 = pneg %p40
        $region42: #{tpu_custom_call.1} parent=39 // pred_check_branch
          %263 = sbr.rel (%p261) target = $region44
        $region43: #{tpu_custom_call.1} parent=39 // pred_region
          %p264 = scmp.lt.s32.totalorder %s20, 1
          %s265 = scalar_select %p264, %s20, 1
          %s266 = smul.addr %s265, 2
          %s267 = smul.addr %s266, 8
          %s268 = scalar_lea.vmem %s0, %s267
        $region44: #{tpu_custom_call.1} parent=39 // pred_fallthru
          _
        // Predicated region
        $region45: #{tpu_custom_call.1} parent=39 // pred_check
          %p269 = pneg %p66
        $region46: #{tpu_custom_call.1} parent=39 // pred_check_branch
          %271 = sbr.rel (%p269) target = $region48
        $region47: #{tpu_custom_call.1} parent=39 // pred_region
          %s272 = sand.u32 %s56, 1
          %s273 = scalar_lea.sflag [#allocation3], %s272
          %s274 = sand.u32 %s56, 1
          %s275 = scalar_lea.vmem [#allocation2], %s274
          %s277 = ssub.s32 16, 16
          %278 = vsyncadd %s273, %s277
          %s279 = smul.addr %s20, 16
          %s280 = scalar_lea.hbm %s1, %s279
          %s282 = sshll.u32 %s275, 4
          %s283 = int_to_ptr.vmem [resolvable:$true] %s282
          %285 = dma.hbm_to_vmem [thread:$0]  %s280, 16, %s283, %s273
        $region48: #{tpu_custom_call.1} parent=39 // pred_fallthru
          _
      $region40: #{tpu_custom_call.1} parent=5 // pred_fallthru
        _
      %p286 = scmp.le.s32.totalorder 1, %s20
      %p287 = scmp.lt.s32.totalorder %s20, 3
      %p288 = pnand %p286, %p287
      %p289 = pneg %p288
      // Predicated region
      $region49: #{tpu_custom_call.1} parent=5 // pred_check
        _
      $region50: #{tpu_custom_call.1} parent=5 // pred_check_branch
        %291 = sbr.rel (%p288) target = $region52
      $region51: #{tpu_custom_call.1} parent=5 // pred_region
        %s292 = ssub.s32 %s20, 1
        %s293 = sand.u32 %s59, 1
        %s294 = scalar_lea.sflag [#allocation3], %s293
        %s295 = sand.u32 %s59, 1
        %s296 = scalar_lea.vmem [#allocation2], %s295
        // Predicated region
        $region53: #{tpu_custom_call.1} parent=51 // pred_check
          %p297 = pneg %p72
        $region54: #{tpu_custom_call.1} parent=51 // pred_check_branch
          %299 = sbr.rel (%p297) target = $region56
        $region55: #{tpu_custom_call.1} parent=51 // pred_region
          %300 = dma.done %s294, 16
        $region56: #{tpu_custom_call.1} parent=51 // pred_fallthru
          _
        %p301 = scmp.lt.s32.totalorder %s25, 1
        %s302 = scalar_select %p301, %s25, 1
        %s303 = smul.addr %s302, 2
        %s304 = smul.addr %s303, 8
        %s305 = scalar_lea.vmem %s0, %s304
        %p306 = pneg %p46
        %p307 = pneg %p43
        %s308 = sand.u32 %s59, 1
        %s309 = scalar_lea.sflag [#allocation3], %s308
        %s310 = sand.u32 %s59, 1
        %s311 = scalar_lea.vmem [#allocation2], %s310
        %p312 = pneg %p72
        %p313 = pneg %p69
        %p314 = pneg %p93
        %p315 = pneg %p90
        %p316 = pneg %p114
        %p317 = pneg %p111
        %p318 = pneg %p135
        %p319 = pneg %p132
        %p320 = pneg %p156
        %p321 = pneg %p153
        %p322 = pneg %p177
        %p323 = pneg %p174
        %p324 = pneg %p198
        %p325 = pneg %p195
        %p326 = pneg %p224
        %p327 = pneg %p221
        %s328 = sand.u32 %s211, 1
        %s329 = scalar_lea.sflag [#allocation4], %s328
        %s330 = sand.u32 %s211, 1
        %s331 = smul.addr %s330, 16
        %s332 = scalar_lea.vmem [#allocation5], %s331
        %p333 = scmp.lt.s32.totalorder %s25, 1
        %s334 = scalar_select %p333, %s25, 1
        %s335 = smul.addr %s334, 2
        %s336 = smul.addr %s335, 8
        %s337 = scalar_lea.vmem %s0, %s336
        %v339 = vld [vmem:[%s4] sm:$0xff]
        %v340 = vld [vmem:[%s5] sm:$0xff]
        %v341 = vld [vmem:[%s5 + $0x8] sm:$0xff]
        %v342 = vld [vmem:[%s6] sm:$0xff]
        %v343 = vld [vmem:[%s337] sm:$0xff]
        %v344 = vld [vmem:[%s337 + $0x8] sm:$0xff]
        %v345 = vlaneseq
        %v346 = vshrl.u32 %v345, 7
        %v347 = vadd.s32 %v346, 8
        %vm348 = vcmp.eq.s32.totalorder %v346, 0
        %vm349 = vcmp.eq.s32.totalorder %v347, 0
        %v350 = vrot.slane %v343, 7
        %v351 = vrot.slane %v344, 7
        %vm352 = vcmp.lt.s32.totalorder %v346, 1
        %v353 = vsel %vm352, %v350, %v351
        %v354 = vsel %vm352, %v351, %v350
        %v355 = vsel %vm348, 0.0, %v354
        %v356 = vsel %vm349, 0.0, %v353
        %vm357 = vcmp.eq.s32.totalorder %v346, 15
        %vm358 = vcmp.eq.s32.totalorder %v347, 15
        %v359 = vrot.slane %v343, 1
        %v360 = vrot.slane %v344, 1
        %vm361 = vcmp.lt.s32.totalorder %v346, 7
        %v362 = vsel %vm361, %v359, %v360
        %v363 = vsel %vm361, %v360, %v359
        %v364 = vsel %vm357, 0.0, %v362
        %v365 = vsel %vm358, 0.0, %v363
        %v366 = vpack.c.bf16 %v356, %v355
        %v367 = vld [vmem:[%s2] sm:$0xf]
        %v368 = vpack.c.bf16 %v344, %v343
        %s369 = scalar_lea.vmem %s2, 4
        %v370 = vld [vmem:[%s369] sm:$0xf]
        %vm371 = vcmask 64512
        %v373 = vsel %vm371, %v368, 0
        %vm375 = vcmask 1043456
        %v377 = vsel %vm375, %v370, 0
        %379 = vmatprep.subr.bf16.mxu0 0
        %380 = vmatpush1.bf16.msra.mxu0 0
        %381 = vmatprep.subr.bf16.mxu0 0
        %382 = vmatpush1.bf16.msra.mxu0 0
        %383 = vmatprep.subr.bf16.mxu0 0
        %384 = vmatpush1.bf16.msra.mxu0 0
        %385 = vmatprep.subr.bf16.mxu0 0
        %386 = vmatpush1.bf16.msra.mxu0 0
        %387 = vmatprep.subr.bf16.mxu0 0
        %388 = vmatpush1.bf16.msra.mxu0 0
        %389 = vmatprep.subr.bf16.mxu0 0
        %390 = vmatpush1.bf16.msra.mxu0 0
        %391 = vmatprep.subr.bf16.mxu0 0
        %392 = vmatpush1.bf16.msra.mxu0 0
        %393 = vmatprep.subr.bf16.mxu0 0
        %394 = vmatpush1.bf16.msra.mxu0 %v377
        %395 = vmatprep.subr.bf16.mxu0 0
        %396 = vmatpush2.bf16.msra.mxu0 0
        %397 = vmatprep.subr.bf16.mxu0 0
        %398 = vmatpush2.bf16.msra.mxu0 0
        %399 = vmatprep.subr.bf16.mxu0 0
        %400 = vmatpush2.bf16.msra.mxu0 0
        %401 = vmatprep.subr.bf16.mxu0 0
        %402 = vmatpush2.bf16.msra.mxu0 0
        %403 = vmatprep.subr.bf16.mxu0 0
        %404 = vmatpush2.bf16.msra.mxu0 0
        %405 = vmatprep.subr.bf16.mxu0 0
        %406 = vmatpush2.bf16.msra.mxu0 0
        %407 = vmatprep.subr.bf16.mxu0 0
        %408 = vmatpush2.bf16.msra.mxu0 0
        %409 = vmatprep.subr.bf16.mxu0 0
        %410 = vmatpush2.bf16.msra.mxu0 0
        %411 = vmatprep.mubr.bf16.mxu0 0
        %412 = vmatmul.mubr.bf16.gmra.mxu0 %v373
        %v413 = vpop.f32.mrf.mxu0
        %v414 = vadd.f32 0.0, %v413
        %v415 = vpop.f32.mrf.mxu0
        %v416 = vpop.f32.mrf.mxu0
        %v417 = vadd.f32 0.0, %v416
        %v418 = vpop.f32.mrf.mxu0
        %419 = vdwg.mxu0
        %v421 = vsel %vm371, %v366, 0
        %v424 = vsel %vm375, %v367, 0
        %426 = vmatprep.subr.bf16.mxu0 0
        %427 = vmatpush1.bf16.msra.mxu0 0
        %428 = vmatprep.subr.bf16.mxu0 0
        %429 = vmatpush1.bf16.msra.mxu0 0
        %430 = vmatprep.subr.bf16.mxu0 0
        %431 = vmatpush1.bf16.msra.mxu0 0
        %432 = vmatprep.subr.bf16.mxu0 0
        %433 = vmatpush1.bf16.msra.mxu0 0
        %434 = vmatprep.subr.bf16.mxu0 0
        %435 = vmatpush1.bf16.msra.mxu0 0
        %436 = vmatprep.subr.bf16.mxu0 0
        %437 = vmatpush1.bf16.msra.mxu0 0
        %438 = vmatprep.subr.bf16.mxu0 0
        %439 = vmatpush1.bf16.msra.mxu0 0
        %440 = vmatprep.subr.bf16.mxu0 0
        %441 = vmatpush1.bf16.msra.mxu0 %v424
        %442 = vmatprep.subr.bf16.mxu0 0
        %443 = vmatpush2.bf16.msra.mxu0 0
        %444 = vmatprep.subr.bf16.mxu0 0
        %445 = vmatpush2.bf16.msra.mxu0 0
        %446 = vmatprep.subr.bf16.mxu0 0
        %447 = vmatpush2.bf16.msra.mxu0 0
        %448 = vmatprep.subr.bf16.mxu0 0
        %449 = vmatpush2.bf16.msra.mxu0 0
        %450 = vmatprep.subr.bf16.mxu0 0
        %451 = vmatpush2.bf16.msra.mxu0 0
        %452 = vmatprep.subr.bf16.mxu0 0
        %453 = vmatpush2.bf16.msra.mxu0 0
        %454 = vmatprep.subr.bf16.mxu0 0
        %455 = vmatpush2.bf16.msra.mxu0 0
        %456 = vmatprep.subr.bf16.mxu0 0
        %457 = vmatpush2.bf16.msra.mxu0 0
        %458 = vmatprep.mubr.bf16.mxu0 0
        %459 = vmatmul.mubr.bf16.gmra.mxu0 %v421
        %v460 = vpop.f32.mrf.mxu0
        %v461 = vadd.f32 %v414, %v460
        %v462 = vpop.f32.mrf.mxu0
        %v463 = vpop.f32.mrf.mxu0
        %v464 = vadd.f32 %v417, %v463
        %v465 = vpop.f32.mrf.mxu0
        %466 = vdwg.mxu0
        %v467 = vpack.c.bf16 %v365, %v364
        %s468 = scalar_lea.vmem %s2, 8
        %v469 = vld [vmem:[%s468] sm:$0xf]
        %v471 = vsel %vm371, %v467, 0
        %v474 = vsel %vm375, %v469, 0
        %476 = vmatprep.subr.bf16.mxu0 0
        %477 = vmatpush1.bf16.msra.mxu0 0
        %478 = vmatprep.subr.bf16.mxu0 0
        %479 = vmatpush1.bf16.msra.mxu0 0
        %480 = vmatprep.subr.bf16.mxu0 0
        %481 = vmatpush1.bf16.msra.mxu0 0
        %482 = vmatprep.subr.bf16.mxu0 0
        %483 = vmatpush1.bf16.msra.mxu0 0
        %484 = vmatprep.subr.bf16.mxu0 0
        %485 = vmatpush1.bf16.msra.mxu0 0
        %486 = vmatprep.subr.bf16.mxu0 0
        %487 = vmatpush1.bf16.msra.mxu0 0
        %488 = vmatprep.subr.bf16.mxu0 0
        %489 = vmatpush1.bf16.msra.mxu0 0
        %490 = vmatprep.subr.bf16.mxu0 0
        %491 = vmatpush1.bf16.msra.mxu0 %v474
        %492 = vmatprep.subr.bf16.mxu0 0
        %493 = vmatpush2.bf16.msra.mxu0 0
        %494 = vmatprep.subr.bf16.mxu0 0
        %495 = vmatpush2.bf16.msra.mxu0 0
        %496 = vmatprep.subr.bf16.mxu0 0
        %497 = vmatpush2.bf16.msra.mxu0 0
        %498 = vmatprep.subr.bf16.mxu0 0
        %499 = vmatpush2.bf16.msra.mxu0 0
        %500 = vmatprep.subr.bf16.mxu0 0
        %501 = vmatpush2.bf16.msra.mxu0 0
        %502 = vmatprep.subr.bf16.mxu0 0
        %503 = vmatpush2.bf16.msra.mxu0 0
        %504 = vmatprep.subr.bf16.mxu0 0
        %505 = vmatpush2.bf16.msra.mxu0 0
        %506 = vmatprep.subr.bf16.mxu0 0
        %507 = vmatpush2.bf16.msra.mxu0 0
        %508 = vmatprep.mubr.bf16.mxu0 0
        %509 = vmatmul.mubr.bf16.gmra.mxu0 %v471
        %v510 = vpop.f32.mrf.mxu0
        %v511 = vadd.f32 0.0, %v510
        %v512 = vpop.f32.mrf.mxu0
        %v513 = vpop.f32.mrf.mxu0
        %v514 = vadd.f32 0.0, %v513
        %v515 = vpop.f32.mrf.mxu0
        %516 = vdwg.mxu0
        %v517 = vadd.f32 %v461, %v511
        %v518 = vadd.f32 %v464, %v514
        %v519 = vlaneseq
        %v520 = vshrl.u32 %v519, 7
        %v521 = vsub.s32 0, %v520
        %v522 = vrot.slane %v339, %v521
        %v523 = vadd.f32 %v517, %v522
        %v524 = vadd.f32 %v518, %v522
        %vm525 = vcmask 130048
        %v526 = vsel %vm525, %v523, 0.0
        %v527 = vsel %vm525, %v524, 0.0
        %v528 = vadd.f32 %v526, %v527
        %v529 = vrot.slane %v528, 4
        %v530 = vadd.f32 %v528, %v529
        %v531 = vrot.slane %v530, 2
        %v532 = vadd.f32 %v530, %v531
        %v533 = vrot.slane %v532, 1
        %v534 = vadd.f32 %v532, %v533
        %v535 = vmul.f32 %v523, %v523
        %v536 = vmul.f32 %v524, %v524
        %v537 = vsel %vm525, %v535, 0.0
        %v538 = vsel %vm525, %v536, 0.0
        %v539 = vadd.f32 %v537, %v538
        %v540 = vrot.slane %v539, 4
        %v541 = vadd.f32 %v539, %v540
        %v542 = vrot.slane %v541, 2
        %v543 = vadd.f32 %v541, %v542
        %v544 = vrot.slane %v543, 1
        %v545 = vadd.f32 %v543, %v544
        %v547 = vsel %vm525, %v534, 0
        %549 = vmatprep.subr.mxu0 0.0
        %550 = vmatpush1.msra.mxu0 0.0
        %551 = vmatprep.subr.mxu0 0.0
        %552 = vmatpush1.msra.mxu0 0.0
        %553 = vmatprep.subr.mxu0 0.0
        %554 = vmatpush1.msra.mxu0 0.0
        %555 = vmatprep.subr.mxu0 0.0
        %556 = vmatpush1.msra.mxu0 0.0
        %557 = vmatprep.subr.mxu0 0.0
        %558 = vmatpush1.msra.mxu0 0.0
        %559 = vmatprep.subr.mxu0 0.0
        %560 = vmatpush1.msra.mxu0 0.0
        %561 = vmatprep.subr.mxu0 0.0
        %562 = vmatpush1.msra.mxu0 0.0
        %563 = vmatprep.subr.mxu0 0.0
        %564 = vmatpush1.msra.mxu0 0.0
        %565 = vmatprep.subr.mxu0 0.0
        %566 = vmatpush1.msra.mxu0 0.0
        %567 = vmatprep.subr.mxu0 0.0
        %568 = vmatpush1.msra.mxu0 0.0
        %569 = vmatprep.subr.mxu0 0.0
        %570 = vmatpush1.msra.mxu0 0.0
        %571 = vmatprep.subr.mxu0 0.0
        %572 = vmatpush1.msra.mxu0 0.0
        %573 = vmatprep.subr.mxu0 0.0
        %574 = vmatpush1.msra.mxu0 0.0
        %575 = vmatprep.subr.mxu0 0.0
        %576 = vmatpush1.msra.mxu0 0.0
        %577 = vmatprep.subr.mxu0 0.0
        %v578 = vand.u32 %v341, 4294901760
        %579 = vmatpush1.msra.mxu0 %v578
        %580 = vmatprep.subr.mxu0 0.0
        %v581 = vand.u32 %v340, 4294901760
        %582 = vmatpush1.msra.mxu0 %v581
        %583 = vmatprep.subr.mxu0 0.0
        %584 = vmatpush2.msra.mxu0 0.0
        %585 = vmatprep.subr.mxu0 0.0
        %586 = vmatpush2.msra.mxu0 0.0
        %587 = vmatprep.subr.mxu0 0.0
        %588 = vmatpush2.msra.mxu0 0.0
        %589 = vmatprep.subr.mxu0 0.0
        %590 = vmatpush2.msra.mxu0 0.0
        %591 = vmatprep.subr.mxu0 0.0
        %592 = vmatpush2.msra.mxu0 0.0
        %593 = vmatprep.subr.mxu0 0.0
        %594 = vmatpush2.msra.mxu0 0.0
        %595 = vmatprep.subr.mxu0 0.0
        %596 = vmatpush2.msra.mxu0 0.0
        %597 = vmatprep.subr.mxu0 0.0
        %598 = vmatpush2.msra.mxu0 0.0
        %599 = vmatprep.subr.mxu0 0.0
        %600 = vmatpush2.msra.mxu0 0.0
        %601 = vmatprep.subr.mxu0 0.0
        %602 = vmatpush2.msra.mxu0 0.0
        %603 = vmatprep.subr.mxu0 0.0
        %604 = vmatpush2.msra.mxu0 0.0
        %605 = vmatprep.subr.mxu0 0.0
        %606 = vmatpush2.msra.mxu0 0.0
        %607 = vmatprep.subr.mxu0 0.0
        %608 = vmatpush2.msra.mxu0 0.0
        %609 = vmatprep.subr.mxu0 0.0
        %610 = vmatpush2.msra.mxu0 0.0
        %611 = vmatprep.subr.mxu0 0.0
        %612 = vmatpush2.msra.mxu0 0.0
        %613 = vmatprep.subr.mxu0 0.0
        %614 = vmatpush2.msra.mxu0 0.0
        %615 = vmatprep.mubr.f32.mxu0 0.0
        %v616 = vand.u32 %v547, 4294901760
        %v617 = vsub.f32 %v547, %v616
        %v618 = vand.u32 %v617, 4294901760
        %v619 = vsub.f32 %v617, %v618
        %v620 = vand.u32 %v619, 4294901760
        %621 = vmatmul.mubr.f32.gmra.mxu0 %v620
        %v622 = vpop.f32.mrf.mxu0
        %v623 = vadd.f32 0.0, %v622
        %v624 = vpop.f32.mrf.mxu0
        %625 = vdwg.mxu0
        %626 = vmatprep.subr.mxu0 0.0
        %627 = vmatpush1.msra.mxu0 0.0
        %628 = vmatprep.subr.mxu0 0.0
        %629 = vmatpush1.msra.mxu0 0.0
        %630 = vmatprep.subr.mxu0 0.0
        %631 = vmatpush1.msra.mxu0 0.0
        %632 = vmatprep.subr.mxu0 0.0
        %633 = vmatpush1.msra.mxu0 0.0
        %634 = vmatprep.subr.mxu0 0.0
        %635 = vmatpush1.msra.mxu0 0.0
        %636 = vmatprep.subr.mxu0 0.0
        %637 = vmatpush1.msra.mxu0 0.0
        %638 = vmatprep.subr.mxu0 0.0
        %639 = vmatpush1.msra.mxu0 0.0
        %640 = vmatprep.subr.mxu0 0.0
        %641 = vmatpush1.msra.mxu0 0.0
        %642 = vmatprep.subr.mxu0 0.0
        %643 = vmatpush1.msra.mxu0 0.0
        %644 = vmatprep.subr.mxu0 0.0
        %645 = vmatpush1.msra.mxu0 0.0
        %646 = vmatprep.subr.mxu0 0.0
        %647 = vmatpush1.msra.mxu0 0.0
        %648 = vmatprep.subr.mxu0 0.0
        %649 = vmatpush1.msra.mxu0 0.0
        %650 = vmatprep.subr.mxu0 0.0
        %651 = vmatpush1.msra.mxu0 0.0
        %652 = vmatprep.subr.mxu0 0.0
        %653 = vmatpush1.msra.mxu0 0.0
        %654 = vmatprep.subr.mxu0 0.0
        %v655 = vand.u32 %v341, 4294901760
        %v656 = vsub.f32 %v341, %v655
        %v657 = vand.u32 %v656, 4294901760
        %v658 = vsub.f32 %v656, %v657
        %v659 = vand.u32 %v658, 4294901760
        %660 = vmatpush1.msra.mxu0 %v659
        %661 = vmatprep.subr.mxu0 0.0
        %v662 = vand.u32 %v340, 4294901760
        %v663 = vsub.f32 %v340, %v662
        %v664 = vand.u32 %v663, 4294901760
        %v665 = vsub.f32 %v663, %v664
        %v666 = vand.u32 %v665, 4294901760
        %667 = vmatpush1.msra.mxu0 %v666
        %668 = vmatprep.subr.mxu0 0.0
        %669 = vmatpush2.msra.mxu0 0.0
        %670 = vmatprep.subr.mxu0 0.0
        %671 = vmatpush2.msra.mxu0 0.0
        %672 = vmatprep.subr.mxu0 0.0
        %673 = vmatpush2.msra.mxu0 0.0
        %674 = vmatprep.subr.mxu0 0.0
        %675 = vmatpush2.msra.mxu0 0.0
        %676 = vmatprep.subr.mxu0 0.0
        %677 = vmatpush2.msra.mxu0 0.0
        %678 = vmatprep.subr.mxu0 0.0
        %679 = vmatpush2.msra.mxu0 0.0
        %680 = vmatprep.subr.mxu0 0.0
        %681 = vmatpush2.msra.mxu0 0.0
        %682 = vmatprep.subr.mxu0 0.0
        %683 = vmatpush2.msra.mxu0 0.0
        %684 = vmatprep.subr.mxu0 0.0
        %685 = vmatpush2.msra.mxu0 0.0
        %686 = vmatprep.subr.mxu0 0.0
        %687 = vmatpush2.msra.mxu0 0.0
        %688 = vmatprep.subr.mxu0 0.0
        %689 = vmatpush2.msra.mxu0 0.0
        %690 = vmatprep.subr.mxu0 0.0
        %691 = vmatpush2.msra.mxu0 0.0
        %692 = vmatprep.subr.mxu0 0.0
        %693 = vmatpush2.msra.mxu0 0.0
        %694 = vmatprep.subr.mxu0 0.0
        %695 = vmatpush2.msra.mxu0 0.0
        %696 = vmatprep.subr.mxu0 0.0
        %697 = vmatpush2.msra.mxu0 0.0
        %698 = vmatprep.subr.mxu0 0.0
        %699 = vmatpush2.msra.mxu0 0.0
        %700 = vmatprep.mubr.f32.mxu0 0.0
        %v701 = vand.u32 %v547, 4294901760
        %702 = vmatmul.mubr.f32.gmra.mxu0 %v701
        %v703 = vpop.f32.mrf.mxu0
        %v704 = vadd.f32 %v623, %v703
        %v705 = vpop.f32.mrf.mxu0
        %706 = vdwg.mxu0
        %707 = vmatprep.subr.mxu0 0.0
        %708 = vmatpush1.msra.mxu0 0.0
        %709 = vmatprep.subr.mxu0 0.0
        %710 = vmatpush1.msra.mxu0 0.0
        %711 = vmatprep.subr.mxu0 0.0
        %712 = vmatpush1.msra.mxu0 0.0
        %713 = vmatprep.subr.mxu0 0.0
        %714 = vmatpush1.msra.mxu0 0.0
        %715 = vmatprep.subr.mxu0 0.0
        %716 = vmatpush1.msra.mxu0 0.0
        %717 = vmatprep.subr.mxu0 0.0
        %718 = vmatpush1.msra.mxu0 0.0
        %719 = vmatprep.subr.mxu0 0.0
        %720 = vmatpush1.msra.mxu0 0.0
        %721 = vmatprep.subr.mxu0 0.0
        %722 = vmatpush1.msra.mxu0 0.0
        %723 = vmatprep.subr.mxu0 0.0
        %724 = vmatpush1.msra.mxu0 0.0
        %725 = vmatprep.subr.mxu0 0.0
        %726 = vmatpush1.msra.mxu0 0.0
        %727 = vmatprep.subr.mxu0 0.0
        %728 = vmatpush1.msra.mxu0 0.0
        %729 = vmatprep.subr.mxu0 0.0
        %730 = vmatpush1.msra.mxu0 0.0
        %731 = vmatprep.subr.mxu0 0.0
        %732 = vmatpush1.msra.mxu0 0.0
        %733 = vmatprep.subr.mxu0 0.0
        %734 = vmatpush1.msra.mxu0 0.0
        %735 = vmatprep.subr.mxu0 0.0
        %v736 = vand.u32 %v341, 4294901760
        %v737 = vsub.f32 %v341, %v736
        %738 = vmatpush1.msra.mxu0 %v737
        %739 = vmatprep.subr.mxu0 0.0
        %v740 = vand.u32 %v340, 4294901760
        %v741 = vsub.f32 %v340, %v740
        %742 = vmatpush1.msra.mxu0 %v741
        %743 = vmatprep.subr.mxu0 0.0
        %744 = vmatpush2.msra.mxu0 0.0
        %745 = vmatprep.subr.mxu0 0.0
        %746 = vmatpush2.msra.mxu0 0.0
        %747 = vmatprep.subr.mxu0 0.0
        %748 = vmatpush2.msra.mxu0 0.0
        %749 = vmatprep.subr.mxu0 0.0
        %750 = vmatpush2.msra.mxu0 0.0
        %751 = vmatprep.subr.mxu0 0.0
        %752 = vmatpush2.msra.mxu0 0.0
        %753 = vmatprep.subr.mxu0 0.0
        %754 = vmatpush2.msra.mxu0 0.0
        %755 = vmatprep.subr.mxu0 0.0
        %756 = vmatpush2.msra.mxu0 0.0
        %757 = vmatprep.subr.mxu0 0.0
        %758 = vmatpush2.msra.mxu0 0.0
        %759 = vmatprep.subr.mxu0 0.0
        %760 = vmatpush2.msra.mxu0 0.0
        %761 = vmatprep.subr.mxu0 0.0
        %762 = vmatpush2.msra.mxu0 0.0
        %763 = vmatprep.subr.mxu0 0.0
        %764 = vmatpush2.msra.mxu0 0.0
        %765 = vmatprep.subr.mxu0 0.0
        %766 = vmatpush2.msra.mxu0 0.0
        %767 = vmatprep.subr.mxu0 0.0
        %768 = vmatpush2.msra.mxu0 0.0
        %769 = vmatprep.subr.mxu0 0.0
        %770 = vmatpush2.msra.mxu0 0.0
        %771 = vmatprep.subr.mxu0 0.0
        %772 = vmatpush2.msra.mxu0 0.0
        %773 = vmatprep.subr.mxu0 0.0
        %774 = vmatpush2.msra.mxu0 0.0
        %775 = vmatprep.mubr.f32.mxu0 0.0
        %v776 = vand.u32 %v547, 4294901760
        %v777 = vsub.f32 %v547, %v776
        %778 = vmatmul.mubr.f32.gmra.mxu0 %v777
        %v779 = vpop.f32.mrf.mxu0
        %v780 = vadd.f32 %v704, %v779
        %v781 = vpop.f32.mrf.mxu0
        %782 = vdwg.mxu0
        %783 = vmatprep.subr.mxu0 0.0
        %784 = vmatpush1.msra.mxu0 0.0
        %785 = vmatprep.subr.mxu0 0.0
        %786 = vmatpush1.msra.mxu0 0.0
        %787 = vmatprep.subr.mxu0 0.0
        %788 = vmatpush1.msra.mxu0 0.0
        %789 = vmatprep.subr.mxu0 0.0
        %790 = vmatpush1.msra.mxu0 0.0
        %791 = vmatprep.subr.mxu0 0.0
        %792 = vmatpush1.msra.mxu0 0.0
        %793 = vmatprep.subr.mxu0 0.0
        %794 = vmatpush1.msra.mxu0 0.0
        %795 = vmatprep.subr.mxu0 0.0
        %796 = vmatpush1.msra.mxu0 0.0
        %797 = vmatprep.subr.mxu0 0.0
        %798 = vmatpush1.msra.mxu0 0.0
        %799 = vmatprep.subr.mxu0 0.0
        %800 = vmatpush1.msra.mxu0 0.0
        %801 = vmatprep.subr.mxu0 0.0
        %802 = vmatpush1.msra.mxu0 0.0
        %803 = vmatprep.subr.mxu0 0.0
        %804 = vmatpush1.msra.mxu0 0.0
        %805 = vmatprep.subr.mxu0 0.0
        %806 = vmatpush1.msra.mxu0 0.0
        %807 = vmatprep.subr.mxu0 0.0
        %808 = vmatpush1.msra.mxu0 0.0
        %809 = vmatprep.subr.mxu0 0.0
        %810 = vmatpush1.msra.mxu0 0.0
        %811 = vmatprep.subr.mxu0 0.0
        %v812 = vand.u32 %v341, 4294901760
        %813 = vmatpush1.msra.mxu0 %v812
        %814 = vmatprep.subr.mxu0 0.0
        %v815 = vand.u32 %v340, 4294901760
        %816 = vmatpush1.msra.mxu0 %v815
        %817 = vmatprep.subr.mxu0 0.0
        %818 = vmatpush2.msra.mxu0 0.0
        %819 = vmatprep.subr.mxu0 0.0
        %820 = vmatpush2.msra.mxu0 0.0
        %821 = vmatprep.subr.mxu0 0.0
        %822 = vmatpush2.msra.mxu0 0.0
        %823 = vmatprep.subr.mxu0 0.0
        %824 = vmatpush2.msra.mxu0 0.0
        %825 = vmatprep.subr.mxu0 0.0
        %826 = vmatpush2.msra.mxu0 0.0
        %827 = vmatprep.subr.mxu0 0.0
        %828 = vmatpush2.msra.mxu0 0.0
        %829 = vmatprep.subr.mxu0 0.0
        %830 = vmatpush2.msra.mxu0 0.0
        %831 = vmatprep.subr.mxu0 0.0
        %832 = vmatpush2.msra.mxu0 0.0
        %833 = vmatprep.subr.mxu0 0.0
        %834 = vmatpush2.msra.mxu0 0.0
        %835 = vmatprep.subr.mxu0 0.0
        %836 = vmatpush2.msra.mxu0 0.0
        %837 = vmatprep.subr.mxu0 0.0
        %838 = vmatpush2.msra.mxu0 0.0
        %839 = vmatprep.subr.mxu0 0.0
        %840 = vmatpush2.msra.mxu0 0.0
        %841 = vmatprep.subr.mxu0 0.0
        %842 = vmatpush2.msra.mxu0 0.0
        %843 = vmatprep.subr.mxu0 0.0
        %844 = vmatpush2.msra.mxu0 0.0
        %845 = vmatprep.subr.mxu0 0.0
        %846 = vmatpush2.msra.mxu0 0.0
        %847 = vmatprep.subr.mxu0 0.0
        %848 = vmatpush2.msra.mxu0 0.0
        %849 = vmatprep.mubr.f32.mxu0 0.0
        %v850 = vand.u32 %v547, 4294901760
        %v851 = vsub.f32 %v547, %v850
        %v852 = vand.u32 %v851, 4294901760
        %853 = vmatmul.mubr.f32.gmra.mxu0 %v852
        %v854 = vpop.f32.mrf.mxu0
        %v855 = vadd.f32 %v780, %v854
        %v856 = vpop.f32.mrf.mxu0
        %857 = vdwg.mxu0
        %858 = vmatprep.subr.mxu0 0.0
        %859 = vmatpush1.msra.mxu0 0.0
        %860 = vmatprep.subr.mxu0 0.0
        %861 = vmatpush1.msra.mxu0 0.0
        %862 = vmatprep.subr.mxu0 0.0
        %863 = vmatpush1.msra.mxu0 0.0
        %864 = vmatprep.subr.mxu0 0.0
        %865 = vmatpush1.msra.mxu0 0.0
        %866 = vmatprep.subr.mxu0 0.0
        %867 = vmatpush1.msra.mxu0 0.0
        %868 = vmatprep.subr.mxu0 0.0
        %869 = vmatpush1.msra.mxu0 0.0
        %870 = vmatprep.subr.mxu0 0.0
        %871 = vmatpush1.msra.mxu0 0.0
        %872 = vmatprep.subr.mxu0 0.0
        %873 = vmatpush1.msra.mxu0 0.0
        %874 = vmatprep.subr.mxu0 0.0
        %875 = vmatpush1.msra.mxu0 0.0
        %876 = vmatprep.subr.mxu0 0.0
        %877 = vmatpush1.msra.mxu0 0.0
        %878 = vmatprep.subr.mxu0 0.0
        %879 = vmatpush1.msra.mxu0 0.0
        %880 = vmatprep.subr.mxu0 0.0
        %881 = vmatpush1.msra.mxu0 0.0
        %882 = vmatprep.subr.mxu0 0.0
        %883 = vmatpush1.msra.mxu0 0.0
        %884 = vmatprep.subr.mxu0 0.0
        %885 = vmatpush1.msra.mxu0 0.0
        %886 = vmatprep.subr.mxu0 0.0
        %v887 = vand.u32 %v341, 4294901760
        %v888 = vsub.f32 %v341, %v887
        %v889 = vand.u32 %v888, 4294901760
        %890 = vmatpush1.msra.mxu0 %v889
        %891 = vmatprep.subr.mxu0 0.0
        %v892 = vand.u32 %v340, 4294901760
        %v893 = vsub.f32 %v340, %v892
        %v894 = vand.u32 %v893, 4294901760
        %895 = vmatpush1.msra.mxu0 %v894
        %896 = vmatprep.subr.mxu0 0.0
        %897 = vmatpush2.msra.mxu0 0.0
        %898 = vmatprep.subr.mxu0 0.0
        %899 = vmatpush2.msra.mxu0 0.0
        %900 = vmatprep.subr.mxu0 0.0
        %901 = vmatpush2.msra.mxu0 0.0
        %902 = vmatprep.subr.mxu0 0.0
        %903 = vmatpush2.msra.mxu0 0.0
        %904 = vmatprep.subr.mxu0 0.0
        %905 = vmatpush2.msra.mxu0 0.0
        %906 = vmatprep.subr.mxu0 0.0
        %907 = vmatpush2.msra.mxu0 0.0
        %908 = vmatprep.subr.mxu0 0.0
        %909 = vmatpush2.msra.mxu0 0.0
        %910 = vmatprep.subr.mxu0 0.0
        %911 = vmatpush2.msra.mxu0 0.0
        %912 = vmatprep.subr.mxu0 0.0
        %913 = vmatpush2.msra.mxu0 0.0
        %914 = vmatprep.subr.mxu0 0.0
        %915 = vmatpush2.msra.mxu0 0.0
        %916 = vmatprep.subr.mxu0 0.0
        %917 = vmatpush2.msra.mxu0 0.0
        %918 = vmatprep.subr.mxu0 0.0
        %919 = vmatpush2.msra.mxu0 0.0
        %920 = vmatprep.subr.mxu0 0.0
        %921 = vmatpush2.msra.mxu0 0.0
        %922 = vmatprep.subr.mxu0 0.0
        %923 = vmatpush2.msra.mxu0 0.0
        %924 = vmatprep.subr.mxu0 0.0
        %925 = vmatpush2.msra.mxu0 0.0
        %926 = vmatprep.subr.mxu0 0.0
        %927 = vmatpush2.msra.mxu0 0.0
        %928 = vmatprep.mubr.f32.mxu0 0.0
        %v929 = vand.u32 %v547, 4294901760
        %930 = vmatmul.mubr.f32.gmra.mxu0 %v929
        %v931 = vpop.f32.mrf.mxu0
        %v932 = vadd.f32 %v855, %v931
        %v933 = vpop.f32.mrf.mxu0
        %934 = vdwg.mxu0
        %935 = vmatprep.subr.mxu0 0.0
        %936 = vmatpush1.msra.mxu0 0.0
        %937 = vmatprep.subr.mxu0 0.0
        %938 = vmatpush1.msra.mxu0 0.0
        %939 = vmatprep.subr.mxu0 0.0
        %940 = vmatpush1.msra.mxu0 0.0
        %941 = vmatprep.subr.mxu0 0.0
        %942 = vmatpush1.msra.mxu0 0.0
        %943 = vmatprep.subr.mxu0 0.0
        %944 = vmatpush1.msra.mxu0 0.0
        %945 = vmatprep.subr.mxu0 0.0
        %946 = vmatpush1.msra.mxu0 0.0
        %947 = vmatprep.subr.mxu0 0.0
        %948 = vmatpush1.msra.mxu0 0.0
        %949 = vmatprep.subr.mxu0 0.0
        %950 = vmatpush1.msra.mxu0 0.0
        %951 = vmatprep.subr.mxu0 0.0
        %952 = vmatpush1.msra.mxu0 0.0
        %953 = vmatprep.subr.mxu0 0.0
        %954 = vmatpush1.msra.mxu0 0.0
        %955 = vmatprep.subr.mxu0 0.0
        %956 = vmatpush1.msra.mxu0 0.0
        %957 = vmatprep.subr.mxu0 0.0
        %958 = vmatpush1.msra.mxu0 0.0
        %959 = vmatprep.subr.mxu0 0.0
        %960 = vmatpush1.msra.mxu0 0.0
        %961 = vmatprep.subr.mxu0 0.0
        %962 = vmatpush1.msra.mxu0 0.0
        %963 = vmatprep.subr.mxu0 0.0
        %v964 = vand.u32 %v341, 4294901760
        %965 = vmatpush1.msra.mxu0 %v964
        %966 = vmatprep.subr.mxu0 0.0
        %v967 = vand.u32 %v340, 4294901760
        %968 = vmatpush1.msra.mxu0 %v967
        %969 = vmatprep.subr.mxu0 0.0
        %970 = vmatpush2.msra.mxu0 0.0
        %971 = vmatprep.subr.mxu0 0.0
        %972 = vmatpush2.msra.mxu0 0.0
        %973 = vmatprep.subr.mxu0 0.0
        %974 = vmatpush2.msra.mxu0 0.0
        %975 = vmatprep.subr.mxu0 0.0
        %976 = vmatpush2.msra.mxu0 0.0
        %977 = vmatprep.subr.mxu0 0.0
        %978 = vmatpush2.msra.mxu0 0.0
        %979 = vmatprep.subr.mxu0 0.0
        %980 = vmatpush2.msra.mxu0 0.0
        %981 = vmatprep.subr.mxu0 0.0
        %982 = vmatpush2.msra.mxu0 0.0
        %983 = vmatprep.subr.mxu0 0.0
        %984 = vmatpush2.msra.mxu0 0.0
        %985 = vmatprep.subr.mxu0 0.0
        %986 = vmatpush2.msra.mxu0 0.0
        %987 = vmatprep.subr.mxu0 0.0
        %988 = vmatpush2.msra.mxu0 0.0
        %989 = vmatprep.subr.mxu0 0.0
        %990 = vmatpush2.msra.mxu0 0.0
        %991 = vmatprep.subr.mxu0 0.0
        %992 = vmatpush2.msra.mxu0 0.0
        %993 = vmatprep.subr.mxu0 0.0
        %994 = vmatpush2.msra.mxu0 0.0
        %995 = vmatprep.subr.mxu0 0.0
        %996 = vmatpush2.msra.mxu0 0.0
        %997 = vmatprep.subr.mxu0 0.0
        %998 = vmatpush2.msra.mxu0 0.0
        %999 = vmatprep.subr.mxu0 0.0
        %1000 = vmatpush2.msra.mxu0 0.0
        %1001 = vmatprep.mubr.f32.mxu0 0.0
        %v1002 = vand.u32 %v547, 4294901760
        %1003 = vmatmul.mubr.f32.gmra.mxu0 %v1002
        %v1004 = vpop.f32.mrf.mxu0
        %v1005 = vadd.f32 %v932, %v1004
        %v1006 = vpop.f32.mrf.mxu0
        %1007 = vdwg.mxu0
        %v1009 = vsel %vm525, %v545, 0
        %1011 = vmatprep.subr.mxu0 0.0
        %1012 = vmatpush1.msra.mxu0 0.0
        %1013 = vmatprep.subr.mxu0 0.0
        %1014 = vmatpush1.msra.mxu0 0.0
        %1015 = vmatprep.subr.mxu0 0.0
        %1016 = vmatpush1.msra.mxu0 0.0
        %1017 = vmatprep.subr.mxu0 0.0
        %1018 = vmatpush1.msra.mxu0 0.0
        %1019 = vmatprep.subr.mxu0 0.0
        %1020 = vmatpush1.msra.mxu0 0.0
        %1021 = vmatprep.subr.mxu0 0.0
        %1022 = vmatpush1.msra.mxu0 0.0
        %1023 = vmatprep.subr.mxu0 0.0
        %1024 = vmatpush1.msra.mxu0 0.0
        %1025 = vmatprep.subr.mxu0 0.0
        %1026 = vmatpush1.msra.mxu0 0.0
        %1027 = vmatprep.subr.mxu0 0.0
        %1028 = vmatpush1.msra.mxu0 0.0
        %1029 = vmatprep.subr.mxu0 0.0
        %1030 = vmatpush1.msra.mxu0 0.0
        %1031 = vmatprep.subr.mxu0 0.0
        %1032 = vmatpush1.msra.mxu0 0.0
        %1033 = vmatprep.subr.mxu0 0.0
        %1034 = vmatpush1.msra.mxu0 0.0
        %1035 = vmatprep.subr.mxu0 0.0
        %1036 = vmatpush1.msra.mxu0 0.0
        %1037 = vmatprep.subr.mxu0 0.0
        %1038 = vmatpush1.msra.mxu0 0.0
        %1039 = vmatprep.subr.mxu0 0.0
        %v1040 = vand.u32 %v341, 4294901760
        %1041 = vmatpush1.msra.mxu0 %v1040
        %1042 = vmatprep.subr.mxu0 0.0
        %v1043 = vand.u32 %v340, 4294901760
        %1044 = vmatpush1.msra.mxu0 %v1043
        %1045 = vmatprep.subr.mxu0 0.0
        %1046 = vmatpush2.msra.mxu0 0.0
        %1047 = vmatprep.subr.mxu0 0.0
        %1048 = vmatpush2.msra.mxu0 0.0
        %1049 = vmatprep.subr.mxu0 0.0
        %1050 = vmatpush2.msra.mxu0 0.0
        %1051 = vmatprep.subr.mxu0 0.0
        %1052 = vmatpush2.msra.mxu0 0.0
        %1053 = vmatprep.subr.mxu0 0.0
        %1054 = vmatpush2.msra.mxu0 0.0
        %1055 = vmatprep.subr.mxu0 0.0
        %1056 = vmatpush2.msra.mxu0 0.0
        %1057 = vmatprep.subr.mxu0 0.0
        %1058 = vmatpush2.msra.mxu0 0.0
        %1059 = vmatprep.subr.mxu0 0.0
        %1060 = vmatpush2.msra.mxu0 0.0
        %1061 = vmatprep.subr.mxu0 0.0
        %1062 = vmatpush2.msra.mxu0 0.0
        %1063 = vmatprep.subr.mxu0 0.0
        %1064 = vmatpush2.msra.mxu0 0.0
        %1065 = vmatprep.subr.mxu0 0.0
        %1066 = vmatpush2.msra.mxu0 0.0
        %1067 = vmatprep.subr.mxu0 0.0
        %1068 = vmatpush2.msra.mxu0 0.0
        %1069 = vmatprep.subr.mxu0 0.0
        %1070 = vmatpush2.msra.mxu0 0.0
        %1071 = vmatprep.subr.mxu0 0.0
        %1072 = vmatpush2.msra.mxu0 0.0
        %1073 = vmatprep.subr.mxu0 0.0
        %1074 = vmatpush2.msra.mxu0 0.0
        %1075 = vmatprep.subr.mxu0 0.0
        %1076 = vmatpush2.msra.mxu0 0.0
        %1077 = vmatprep.mubr.f32.mxu0 0.0
        %v1078 = vand.u32 %v1009, 4294901760
        %v1079 = vsub.f32 %v1009, %v1078
        %v1080 = vand.u32 %v1079, 4294901760
        %v1081 = vsub.f32 %v1079, %v1080
        %v1082 = vand.u32 %v1081, 4294901760
        %1083 = vmatmul.mubr.f32.gmra.mxu0 %v1082
        %v1084 = vpop.f32.mrf.mxu0
        %v1085 = vadd.f32 0.0, %v1084
        %v1086 = vpop.f32.mrf.mxu0
        %1087 = vdwg.mxu0
        %1088 = vmatprep.subr.mxu0 0.0
        %1089 = vmatpush1.msra.mxu0 0.0
        %1090 = vmatprep.subr.mxu0 0.0
        %1091 = vmatpush1.msra.mxu0 0.0
        %1092 = vmatprep.subr.mxu0 0.0
        %1093 = vmatpush1.msra.mxu0 0.0
        %1094 = vmatprep.subr.mxu0 0.0
        %1095 = vmatpush1.msra.mxu0 0.0
        %1096 = vmatprep.subr.mxu0 0.0
        %1097 = vmatpush1.msra.mxu0 0.0
        %1098 = vmatprep.subr.mxu0 0.0
        %1099 = vmatpush1.msra.mxu0 0.0
        %1100 = vmatprep.subr.mxu0 0.0
        %1101 = vmatpush1.msra.mxu0 0.0
        %1102 = vmatprep.subr.mxu0 0.0
        %1103 = vmatpush1.msra.mxu0 0.0
        %1104 = vmatprep.subr.mxu0 0.0
        %1105 = vmatpush1.msra.mxu0 0.0
        %1106 = vmatprep.subr.mxu0 0.0
        %1107 = vmatpush1.msra.mxu0 0.0
        %1108 = vmatprep.subr.mxu0 0.0
        %1109 = vmatpush1.msra.mxu0 0.0
        %1110 = vmatprep.subr.mxu0 0.0
        %1111 = vmatpush1.msra.mxu0 0.0
        %1112 = vmatprep.subr.mxu0 0.0
        %1113 = vmatpush1.msra.mxu0 0.0
        %1114 = vmatprep.subr.mxu0 0.0
        %1115 = vmatpush1.msra.mxu0 0.0
        %1116 = vmatprep.subr.mxu0 0.0
        %v1117 = vand.u32 %v341, 4294901760
        %v1118 = vsub.f32 %v341, %v1117
        %v1119 = vand.u32 %v1118, 4294901760
        %v1120 = vsub.f32 %v1118, %v1119
        %v1121 = vand.u32 %v1120, 4294901760
        %1122 = vmatpush1.msra.mxu0 %v1121
        %1123 = vmatprep.subr.mxu0 0.0
        %v1124 = vand.u32 %v340, 4294901760
        %v1125 = vsub.f32 %v340, %v1124
        %v1126 = vand.u32 %v1125, 4294901760
        %v1127 = vsub.f32 %v1125, %v1126
        %v1128 = vand.u32 %v1127, 4294901760
        %1129 = vmatpush1.msra.mxu0 %v1128
        %1130 = vmatprep.subr.mxu0 0.0
        %1131 = vmatpush2.msra.mxu0 0.0
        %1132 = vmatprep.subr.mxu0 0.0
        %1133 = vmatpush2.msra.mxu0 0.0
        %1134 = vmatprep.subr.mxu0 0.0
        %1135 = vmatpush2.msra.mxu0 0.0
        %1136 = vmatprep.subr.mxu0 0.0
        %1137 = vmatpush2.msra.mxu0 0.0
        %1138 = vmatprep.subr.mxu0 0.0
        %1139 = vmatpush2.msra.mxu0 0.0
        %1140 = vmatprep.subr.mxu0 0.0
        %1141 = vmatpush2.msra.mxu0 0.0
        %1142 = vmatprep.subr.mxu0 0.0
        %1143 = vmatpush2.msra.mxu0 0.0
        %1144 = vmatprep.subr.mxu0 0.0
        %1145 = vmatpush2.msra.mxu0 0.0
        %1146 = vmatprep.subr.mxu0 0.0
        %1147 = vmatpush2.msra.mxu0 0.0
        %1148 = vmatprep.subr.mxu0 0.0
        %1149 = vmatpush2.msra.mxu0 0.0
        %1150 = vmatprep.subr.mxu0 0.0
        %1151 = vmatpush2.msra.mxu0 0.0
        %1152 = vmatprep.subr.mxu0 0.0
        %1153 = vmatpush2.msra.mxu0 0.0
        %1154 = vmatprep.subr.mxu0 0.0
        %1155 = vmatpush2.msra.mxu0 0.0
        %1156 = vmatprep.subr.mxu0 0.0
        %1157 = vmatpush2.msra.mxu0 0.0
        %1158 = vmatprep.subr.mxu0 0.0
        %1159 = vmatpush2.msra.mxu0 0.0
        %1160 = vmatprep.subr.mxu0 0.0
        %1161 = vmatpush2.msra.mxu0 0.0
        %1162 = vmatprep.mubr.f32.mxu0 0.0
        %v1163 = vand.u32 %v1009, 4294901760
        %1164 = vmatmul.mubr.f32.gmra.mxu0 %v1163
        %v1165 = vpop.f32.mrf.mxu0
        %v1166 = vadd.f32 %v1085, %v1165
        %v1167 = vpop.f32.mrf.mxu0
        %1168 = vdwg.mxu0
        %1169 = vmatprep.subr.mxu0 0.0
        %1170 = vmatpush1.msra.mxu0 0.0
        %1171 = vmatprep.subr.mxu0 0.0
        %1172 = vmatpush1.msra.mxu0 0.0
        %1173 = vmatprep.subr.mxu0 0.0
        %1174 = vmatpush1.msra.mxu0 0.0
        %1175 = vmatprep.subr.mxu0 0.0
        %1176 = vmatpush1.msra.mxu0 0.0
        %1177 = vmatprep.subr.mxu0 0.0
        %1178 = vmatpush1.msra.mxu0 0.0
        %1179 = vmatprep.subr.mxu0 0.0
        %1180 = vmatpush1.msra.mxu0 0.0
        %1181 = vmatprep.subr.mxu0 0.0
        %1182 = vmatpush1.msra.mxu0 0.0
        %1183 = vmatprep.subr.mxu0 0.0
        %1184 = vmatpush1.msra.mxu0 0.0
        %1185 = vmatprep.subr.mxu0 0.0
        %1186 = vmatpush1.msra.mxu0 0.0
        %1187 = vmatprep.subr.mxu0 0.0
        %1188 = vmatpush1.msra.mxu0 0.0
        %1189 = vmatprep.subr.mxu0 0.0
        %1190 = vmatpush1.msra.mxu0 0.0
        %1191 = vmatprep.subr.mxu0 0.0
        %1192 = vmatpush1.msra.mxu0 0.0
        %1193 = vmatprep.subr.mxu0 0.0
        %1194 = vmatpush1.msra.mxu0 0.0
        %1195 = vmatprep.subr.mxu0 0.0
        %1196 = vmatpush1.msra.mxu0 0.0
        %1197 = vmatprep.subr.mxu0 0.0
        %v1198 = vand.u32 %v341, 4294901760
        %v1199 = vsub.f32 %v341, %v1198
        %1200 = vmatpush1.msra.mxu0 %v1199
        %1201 = vmatprep.subr.mxu0 0.0
        %v1202 = vand.u32 %v340, 4294901760
        %v1203 = vsub.f32 %v340, %v1202
        %1204 = vmatpush1.msra.mxu0 %v1203
        %1205 = vmatprep.subr.mxu0 0.0
        %1206 = vmatpush2.msra.mxu0 0.0
        %1207 = vmatprep.subr.mxu0 0.0
        %1208 = vmatpush2.msra.mxu0 0.0
        %1209 = vmatprep.subr.mxu0 0.0
        %1210 = vmatpush2.msra.mxu0 0.0
        %1211 = vmatprep.subr.mxu0 0.0
        %1212 = vmatpush2.msra.mxu0 0.0
        %1213 = vmatprep.subr.mxu0 0.0
        %1214 = vmatpush2.msra.mxu0 0.0
        %1215 = vmatprep.subr.mxu0 0.0
        %1216 = vmatpush2.msra.mxu0 0.0
        %1217 = vmatprep.subr.mxu0 0.0
        %1218 = vmatpush2.msra.mxu0 0.0
        %1219 = vmatprep.subr.mxu0 0.0
        %1220 = vmatpush2.msra.mxu0 0.0
        %1221 = vmatprep.subr.mxu0 0.0
        %1222 = vmatpush2.msra.mxu0 0.0
        %1223 = vmatprep.subr.mxu0 0.0
        %1224 = vmatpush2.msra.mxu0 0.0
        %1225 = vmatprep.subr.mxu0 0.0
        %1226 = vmatpush2.msra.mxu0 0.0
        %1227 = vmatprep.subr.mxu0 0.0
        %1228 = vmatpush2.msra.mxu0 0.0
        %1229 = vmatprep.subr.mxu0 0.0
        %1230 = vmatpush2.msra.mxu0 0.0
        %1231 = vmatprep.subr.mxu0 0.0
        %1232 = vmatpush2.msra.mxu0 0.0
        %1233 = vmatprep.subr.mxu0 0.0
        %1234 = vmatpush2.msra.mxu0 0.0
        %1235 = vmatprep.subr.mxu0 0.0
        %1236 = vmatpush2.msra.mxu0 0.0
        %1237 = vmatprep.mubr.f32.mxu0 0.0
        %v1238 = vand.u32 %v1009, 4294901760
        %v1239 = vsub.f32 %v1009, %v1238
        %1240 = vmatmul.mubr.f32.gmra.mxu0 %v1239
        %v1241 = vpop.f32.mrf.mxu0
        %v1242 = vadd.f32 %v1166, %v1241
        %v1243 = vpop.f32.mrf.mxu0
        %1244 = vdwg.mxu0
        %1245 = vmatprep.subr.mxu0 0.0
        %1246 = vmatpush1.msra.mxu0 0.0
        %1247 = vmatprep.subr.mxu0 0.0
        %1248 = vmatpush1.msra.mxu0 0.0
        %1249 = vmatprep.subr.mxu0 0.0
        %1250 = vmatpush1.msra.mxu0 0.0
        %1251 = vmatprep.subr.mxu0 0.0
        %1252 = vmatpush1.msra.mxu0 0.0
        %1253 = vmatprep.subr.mxu0 0.0
        %1254 = vmatpush1.msra.mxu0 0.0
        %1255 = vmatprep.subr.mxu0 0.0
        %1256 = vmatpush1.msra.mxu0 0.0
        %1257 = vmatprep.subr.mxu0 0.0
        %1258 = vmatpush1.msra.mxu0 0.0
        %1259 = vmatprep.subr.mxu0 0.0
        %1260 = vmatpush1.msra.mxu0 0.0
        %1261 = vmatprep.subr.mxu0 0.0
        %1262 = vmatpush1.msra.mxu0 0.0
        %1263 = vmatprep.subr.mxu0 0.0
        %1264 = vmatpush1.msra.mxu0 0.0
        %1265 = vmatprep.subr.mxu0 0.0
        %1266 = vmatpush1.msra.mxu0 0.0
        %1267 = vmatprep.subr.mxu0 0.0
        %1268 = vmatpush1.msra.mxu0 0.0
        %1269 = vmatprep.subr.mxu0 0.0
        %1270 = vmatpush1.msra.mxu0 0.0
        %1271 = vmatprep.subr.mxu0 0.0
        %1272 = vmatpush1.msra.mxu0 0.0
        %1273 = vmatprep.subr.mxu0 0.0
        %v1274 = vand.u32 %v341, 4294901760
        %1275 = vmatpush1.msra.mxu0 %v1274
        %1276 = vmatprep.subr.mxu0 0.0
        %v1277 = vand.u32 %v340, 4294901760
        %1278 = vmatpush1.msra.mxu0 %v1277
        %1279 = vmatprep.subr.mxu0 0.0
        %1280 = vmatpush2.msra.mxu0 0.0
        %1281 = vmatprep.subr.mxu0 0.0
        %1282 = vmatpush2.msra.mxu0 0.0
        %1283 = vmatprep.subr.mxu0 0.0
        %1284 = vmatpush2.msra.mxu0 0.0
        %1285 = vmatprep.subr.mxu0 0.0
        %1286 = vmatpush2.msra.mxu0 0.0
        %1287 = vmatprep.subr.mxu0 0.0
        %1288 = vmatpush2.msra.mxu0 0.0
        %1289 = vmatprep.subr.mxu0 0.0
        %1290 = vmatpush2.msra.mxu0 0.0
        %1291 = vmatprep.subr.mxu0 0.0
        %1292 = vmatpush2.msra.mxu0 0.0
        %1293 = vmatprep.subr.mxu0 0.0
        %1294 = vmatpush2.msra.mxu0 0.0
        %1295 = vmatprep.subr.mxu0 0.0
        %1296 = vmatpush2.msra.mxu0 0.0
        %1297 = vmatprep.subr.mxu0 0.0
        %1298 = vmatpush2.msra.mxu0 0.0
        %1299 = vmatprep.subr.mxu0 0.0
        %1300 = vmatpush2.msra.mxu0 0.0
        %1301 = vmatprep.subr.mxu0 0.0
        %1302 = vmatpush2.msra.mxu0 0.0
        %1303 = vmatprep.subr.mxu0 0.0
        %1304 = vmatpush2.msra.mxu0 0.0
        %1305 = vmatprep.subr.mxu0 0.0
        %1306 = vmatpush2.msra.mxu0 0.0
        %1307 = vmatprep.subr.mxu0 0.0
        %1308 = vmatpush2.msra.mxu0 0.0
        %1309 = vmatprep.subr.mxu0 0.0
        %1310 = vmatpush2.msra.mxu0 0.0
        %1311 = vmatprep.mubr.f32.mxu0 0.0
        %v1312 = vand.u32 %v1009, 4294901760
        %v1313 = vsub.f32 %v1009, %v1312
        %v1314 = vand.u32 %v1313, 4294901760
        %1315 = vmatmul.mubr.f32.gmra.mxu0 %v1314
        %v1316 = vpop.f32.mrf.mxu0
        %v1317 = vadd.f32 %v1242, %v1316
        %v1318 = vpop.f32.mrf.mxu0
        %1319 = vdwg.mxu0
        %1320 = vmatprep.subr.mxu0 0.0
        %1321 = vmatpush1.msra.mxu0 0.0
        %1322 = vmatprep.subr.mxu0 0.0
        %1323 = vmatpush1.msra.mxu0 0.0
        %1324 = vmatprep.subr.mxu0 0.0
        %1325 = vmatpush1.msra.mxu0 0.0
        %1326 = vmatprep.subr.mxu0 0.0
        %1327 = vmatpush1.msra.mxu0 0.0
        %1328 = vmatprep.subr.mxu0 0.0
        %1329 = vmatpush1.msra.mxu0 0.0
        %1330 = vmatprep.subr.mxu0 0.0
        %1331 = vmatpush1.msra.mxu0 0.0
        %1332 = vmatprep.subr.mxu0 0.0
        %1333 = vmatpush1.msra.mxu0 0.0
        %1334 = vmatprep.subr.mxu0 0.0
        %1335 = vmatpush1.msra.mxu0 0.0
        %1336 = vmatprep.subr.mxu0 0.0
        %1337 = vmatpush1.msra.mxu0 0.0
        %1338 = vmatprep.subr.mxu0 0.0
        %1339 = vmatpush1.msra.mxu0 0.0
        %1340 = vmatprep.subr.mxu0 0.0
        %1341 = vmatpush1.msra.mxu0 0.0
        %1342 = vmatprep.subr.mxu0 0.0
        %1343 = vmatpush1.msra.mxu0 0.0
        %1344 = vmatprep.subr.mxu0 0.0
        %1345 = vmatpush1.msra.mxu0 0.0
        %1346 = vmatprep.subr.mxu0 0.0
        %1347 = vmatpush1.msra.mxu0 0.0
        %1348 = vmatprep.subr.mxu0 0.0
        %v1349 = vand.u32 %v341, 4294901760
        %v1350 = vsub.f32 %v341, %v1349
        %v1351 = vand.u32 %v1350, 4294901760
        %1352 = vmatpush1.msra.mxu0 %v1351
        %1353 = vmatprep.subr.mxu0 0.0
        %v1354 = vand.u32 %v340, 4294901760
        %v1355 = vsub.f32 %v340, %v1354
        %v1356 = vand.u32 %v1355, 4294901760
        %1357 = vmatpush1.msra.mxu0 %v1356
        %1358 = vmatprep.subr.mxu0 0.0
        %1359 = vmatpush2.msra.mxu0 0.0
        %1360 = vmatprep.subr.mxu0 0.0
        %1361 = vmatpush2.msra.mxu0 0.0
        %1362 = vmatprep.subr.mxu0 0.0
        %1363 = vmatpush2.msra.mxu0 0.0
        %1364 = vmatprep.subr.mxu0 0.0
        %1365 = vmatpush2.msra.mxu0 0.0
        %1366 = vmatprep.subr.mxu0 0.0
        %1367 = vmatpush2.msra.mxu0 0.0
        %1368 = vmatprep.subr.mxu0 0.0
        %1369 = vmatpush2.msra.mxu0 0.0
        %1370 = vmatprep.subr.mxu0 0.0
        %1371 = vmatpush2.msra.mxu0 0.0
        %1372 = vmatprep.subr.mxu0 0.0
        %1373 = vmatpush2.msra.mxu0 0.0
        %1374 = vmatprep.subr.mxu0 0.0
        %1375 = vmatpush2.msra.mxu0 0.0
        %1376 = vmatprep.subr.mxu0 0.0
        %1377 = vmatpush2.msra.mxu0 0.0
        %1378 = vmatprep.subr.mxu0 0.0
        %1379 = vmatpush2.msra.mxu0 0.0
        %1380 = vmatprep.subr.mxu0 0.0
        %1381 = vmatpush2.msra.mxu0 0.0
        %1382 = vmatprep.subr.mxu0 0.0
        %1383 = vmatpush2.msra.mxu0 0.0
        %1384 = vmatprep.subr.mxu0 0.0
        %1385 = vmatpush2.msra.mxu0 0.0
        %1386 = vmatprep.subr.mxu0 0.0
        %1387 = vmatpush2.msra.mxu0 0.0
        %1388 = vmatprep.subr.mxu0 0.0
        %1389 = vmatpush2.msra.mxu0 0.0
        %1390 = vmatprep.mubr.f32.mxu0 0.0
        %v1391 = vand.u32 %v1009, 4294901760
        %1392 = vmatmul.mubr.f32.gmra.mxu0 %v1391
        %v1393 = vpop.f32.mrf.mxu0
        %v1394 = vadd.f32 %v1317, %v1393
        %v1395 = vpop.f32.mrf.mxu0
        %1396 = vdwg.mxu0
        %1397 = vmatprep.subr.mxu0 0.0
        %1398 = vmatpush1.msra.mxu0 0.0
        %1399 = vmatprep.subr.mxu0 0.0
        %1400 = vmatpush1.msra.mxu0 0.0
        %1401 = vmatprep.subr.mxu0 0.0
        %1402 = vmatpush1.msra.mxu0 0.0
        %1403 = vmatprep.subr.mxu0 0.0
        %1404 = vmatpush1.msra.mxu0 0.0
        %1405 = vmatprep.subr.mxu0 0.0
        %1406 = vmatpush1.msra.mxu0 0.0
        %1407 = vmatprep.subr.mxu0 0.0
        %1408 = vmatpush1.msra.mxu0 0.0
        %1409 = vmatprep.subr.mxu0 0.0
        %1410 = vmatpush1.msra.mxu0 0.0
        %1411 = vmatprep.subr.mxu0 0.0
        %1412 = vmatpush1.msra.mxu0 0.0
        %1413 = vmatprep.subr.mxu0 0.0
        %1414 = vmatpush1.msra.mxu0 0.0
        %1415 = vmatprep.subr.mxu0 0.0
        %1416 = vmatpush1.msra.mxu0 0.0
        %1417 = vmatprep.subr.mxu0 0.0
        %1418 = vmatpush1.msra.mxu0 0.0
        %1419 = vmatprep.subr.mxu0 0.0
        %1420 = vmatpush1.msra.mxu0 0.0
        %1421 = vmatprep.subr.mxu0 0.0
        %1422 = vmatpush1.msra.mxu0 0.0
        %1423 = vmatprep.subr.mxu0 0.0
        %1424 = vmatpush1.msra.mxu0 0.0
        %1425 = vmatprep.subr.mxu0 0.0
        %v1426 = vand.u32 %v341, 4294901760
        %1427 = vmatpush1.msra.mxu0 %v1426
        %1428 = vmatprep.subr.mxu0 0.0
        %v1429 = vand.u32 %v340, 4294901760
        %1430 = vmatpush1.msra.mxu0 %v1429
        %1431 = vmatprep.subr.mxu0 0.0
        %1432 = vmatpush2.msra.mxu0 0.0
        %1433 = vmatprep.subr.mxu0 0.0
        %1434 = vmatpush2.msra.mxu0 0.0
        %1435 = vmatprep.subr.mxu0 0.0
        %1436 = vmatpush2.msra.mxu0 0.0
        %1437 = vmatprep.subr.mxu0 0.0
        %1438 = vmatpush2.msra.mxu0 0.0
        %1439 = vmatprep.subr.mxu0 0.0
        %1440 = vmatpush2.msra.mxu0 0.0
        %1441 = vmatprep.subr.mxu0 0.0
        %1442 = vmatpush2.msra.mxu0 0.0
        %1443 = vmatprep.subr.mxu0 0.0
        %1444 = vmatpush2.msra.mxu0 0.0
        %1445 = vmatprep.subr.mxu0 0.0
        %1446 = vmatpush2.msra.mxu0 0.0
        %1447 = vmatprep.subr.mxu0 0.0
        %1448 = vmatpush2.msra.mxu0 0.0
        %1449 = vmatprep.subr.mxu0 0.0
        %1450 = vmatpush2.msra.mxu0 0.0
        %1451 = vmatprep.subr.mxu0 0.0
        %1452 = vmatpush2.msra.mxu0 0.0
        %1453 = vmatprep.subr.mxu0 0.0
        %1454 = vmatpush2.msra.mxu0 0.0
        %1455 = vmatprep.subr.mxu0 0.0
        %1456 = vmatpush2.msra.mxu0 0.0
        %1457 = vmatprep.subr.mxu0 0.0
        %1458 = vmatpush2.msra.mxu0 0.0
        %1459 = vmatprep.subr.mxu0 0.0
        %1460 = vmatpush2.msra.mxu0 0.0
        %1461 = vmatprep.subr.mxu0 0.0
        %1462 = vmatpush2.msra.mxu0 0.0
        %1463 = vmatprep.mubr.f32.mxu0 0.0
        %v1464 = vand.u32 %v1009, 4294901760
        %1465 = vmatmul.mubr.f32.gmra.mxu0 %v1464
        %v1466 = vpop.f32.mrf.mxu0
        %v1467 = vadd.f32 %v1394, %v1466
        %v1468 = vpop.f32.mrf.mxu0
        %1469 = vdwg.mxu0
        %v1470 = vmul.f32 %v1005, 0.03125
        %v1471 = vmul.f32 %v1467, 0.03125
        %v1472 = vmul.f32 %v1470, %v1470
        %v1473 = vsub.f32 %v1471, %v1472
        %v1474 = vmax.f32 %v1473, 0.0
        %v1475 = vadd.f32 %v1474, 1e-05
        %v1476 = vrsqrt.pop %v1475
        %v1478 = vsel %vm371, %v1470, 0
        %1480 = vmatprep.subr.mxu0 0.0
        %1481 = vmatpush1.msra.mxu0 0.0
        %1482 = vmatprep.subr.mxu0 0.0
        %1483 = vmatpush1.msra.mxu0 0.0
        %1484 = vmatprep.subr.mxu0 0.0
        %1485 = vmatpush1.msra.mxu0 0.0
        %1486 = vmatprep.subr.mxu0 0.0
        %1487 = vmatpush1.msra.mxu0 0.0
        %1488 = vmatprep.subr.mxu0 0.0
        %1489 = vmatpush1.msra.mxu0 0.0
        %1490 = vmatprep.subr.mxu0 0.0
        %1491 = vmatpush1.msra.mxu0 0.0
        %1492 = vmatprep.subr.mxu0 0.0
        %1493 = vmatpush1.msra.mxu0 0.0
        %1494 = vmatprep.subr.mxu0 0.0
        %1495 = vmatpush1.msra.mxu0 0.0
        %1496 = vmatprep.subr.mxu0 0.0
        %1497 = vmatpush1.msra.mxu0 0.0
        %1498 = vmatprep.subr.mxu0 0.0
        %1499 = vmatpush1.msra.mxu0 0.0
        %1500 = vmatprep.subr.mxu0 0.0
        %1501 = vmatpush1.msra.mxu0 0.0
        %1502 = vmatprep.subr.mxu0 0.0
        %1503 = vmatpush1.msra.mxu0 0.0
        %1504 = vmatprep.subr.mxu0 0.0
        %1505 = vmatpush1.msra.mxu0 0.0
        %1506 = vmatprep.subr.mxu0 0.0
        %1507 = vmatpush1.msra.mxu0 0.0
        %1508 = vmatprep.subr.mxu0 0.0
        %1509 = vmatpush1.msra.mxu0 0.0
        %1510 = vmatprep.subr.mxu0 0.0
        %v1511 = vand.u32 %v342, 4294901760
        %1512 = vmatpush1.msra.mxu0 %v1511
        %1513 = vmatprep.subr.mxu0 0.0
        %1514 = vmatpush2.msra.mxu0 0.0
        %1515 = vmatprep.subr.mxu0 0.0
        %1516 = vmatpush2.msra.mxu0 0.0
        %1517 = vmatprep.subr.mxu0 0.0
        %1518 = vmatpush2.msra.mxu0 0.0
        %1519 = vmatprep.subr.mxu0 0.0
        %1520 = vmatpush2.msra.mxu0 0.0
        %1521 = vmatprep.subr.mxu0 0.0
        %1522 = vmatpush2.msra.mxu0 0.0
        %1523 = vmatprep.subr.mxu0 0.0
        %1524 = vmatpush2.msra.mxu0 0.0
        %1525 = vmatprep.subr.mxu0 0.0
        %1526 = vmatpush2.msra.mxu0 0.0
        %1527 = vmatprep.subr.mxu0 0.0
        %1528 = vmatpush2.msra.mxu0 0.0
        %1529 = vmatprep.subr.mxu0 0.0
        %1530 = vmatpush2.msra.mxu0 0.0
        %1531 = vmatprep.subr.mxu0 0.0
        %1532 = vmatpush2.msra.mxu0 0.0
        %1533 = vmatprep.subr.mxu0 0.0
        %1534 = vmatpush2.msra.mxu0 0.0
        %1535 = vmatprep.subr.mxu0 0.0
        %1536 = vmatpush2.msra.mxu0 0.0
        %1537 = vmatprep.subr.mxu0 0.0
        %1538 = vmatpush2.msra.mxu0 0.0
        %1539 = vmatprep.subr.mxu0 0.0
        %1540 = vmatpush2.msra.mxu0 0.0
        %1541 = vmatprep.subr.mxu0 0.0
        %1542 = vmatpush2.msra.mxu0 0.0
        %1543 = vmatprep.subr.mxu0 0.0
        %1544 = vmatpush2.msra.mxu0 0.0
        %1545 = vmatprep.mubr.f32.mxu0 0.0
        %v1546 = vand.u32 %v1478, 4294901760
        %v1547 = vsub.f32 %v1478, %v1546
        %v1548 = vand.u32 %v1547, 4294901760
        %v1549 = vsub.f32 %v1547, %v1548
        %v1550 = vand.u32 %v1549, 4294901760
        %1551 = vmatmul.mubr.f32.gmra.mxu0 %v1550
        %v1552 = vpop.f32.mrf.mxu0
        %v1553 = vadd.f32 0.0, %v1552
        %v1554 = vpop.f32.mrf.mxu0
        %1555 = vdwg.mxu0
        %1556 = vmatprep.subr.mxu0 0.0
        %1557 = vmatpush1.msra.mxu0 0.0
        %1558 = vmatprep.subr.mxu0 0.0
        %1559 = vmatpush1.msra.mxu0 0.0
        %1560 = vmatprep.subr.mxu0 0.0
        %1561 = vmatpush1.msra.mxu0 0.0
        %1562 = vmatprep.subr.mxu0 0.0
        %1563 = vmatpush1.msra.mxu0 0.0
        %1564 = vmatprep.subr.mxu0 0.0
        %1565 = vmatpush1.msra.mxu0 0.0
        %1566 = vmatprep.subr.mxu0 0.0
        %1567 = vmatpush1.msra.mxu0 0.0
        %1568 = vmatprep.subr.mxu0 0.0
        %1569 = vmatpush1.msra.mxu0 0.0
        %1570 = vmatprep.subr.mxu0 0.0
        %1571 = vmatpush1.msra.mxu0 0.0
        %1572 = vmatprep.subr.mxu0 0.0
        %1573 = vmatpush1.msra.mxu0 0.0
        %1574 = vmatprep.subr.mxu0 0.0
        %1575 = vmatpush1.msra.mxu0 0.0
        %1576 = vmatprep.subr.mxu0 0.0
        %1577 = vmatpush1.msra.mxu0 0.0
        %1578 = vmatprep.subr.mxu0 0.0
        %1579 = vmatpush1.msra.mxu0 0.0
        %1580 = vmatprep.subr.mxu0 0.0
        %1581 = vmatpush1.msra.mxu0 0.0
        %1582 = vmatprep.subr.mxu0 0.0
        %1583 = vmatpush1.msra.mxu0 0.0
        %1584 = vmatprep.subr.mxu0 0.0
        %1585 = vmatpush1.msra.mxu0 0.0
        %1586 = vmatprep.subr.mxu0 0.0
        %v1587 = vand.u32 %v342, 4294901760
        %v1588 = vsub.f32 %v342, %v1587
        %v1589 = vand.u32 %v1588, 4294901760
        %v1590 = vsub.f32 %v1588, %v1589
        %v1591 = vand.u32 %v1590, 4294901760
        %1592 = vmatpush1.msra.mxu0 %v1591
        %1593 = vmatprep.subr.mxu0 0.0
        %1594 = vmatpush2.msra.mxu0 0.0
        %1595 = vmatprep.subr.mxu0 0.0
        %1596 = vmatpush2.msra.mxu0 0.0
        %1597 = vmatprep.subr.mxu0 0.0
        %1598 = vmatpush2.msra.mxu0 0.0
        %1599 = vmatprep.subr.mxu0 0.0
        %1600 = vmatpush2.msra.mxu0 0.0
        %1601 = vmatprep.subr.mxu0 0.0
        %1602 = vmatpush2.msra.mxu0 0.0
        %1603 = vmatprep.subr.mxu0 0.0
        %1604 = vmatpush2.msra.mxu0 0.0
        %1605 = vmatprep.subr.mxu0 0.0
        %1606 = vmatpush2.msra.mxu0 0.0
        %1607 = vmatprep.subr.mxu0 0.0
        %1608 = vmatpush2.msra.mxu0 0.0
        %1609 = vmatprep.subr.mxu0 0.0
        %1610 = vmatpush2.msra.mxu0 0.0
        %1611 = vmatprep.subr.mxu0 0.0
        %1612 = vmatpush2.msra.mxu0 0.0
        %1613 = vmatprep.subr.mxu0 0.0
        %1614 = vmatpush2.msra.mxu0 0.0
        %1615 = vmatprep.subr.mxu0 0.0
        %1616 = vmatpush2.msra.mxu0 0.0
        %1617 = vmatprep.subr.mxu0 0.0
        %1618 = vmatpush2.msra.mxu0 0.0
        %1619 = vmatprep.subr.mxu0 0.0
        %1620 = vmatpush2.msra.mxu0 0.0
        %1621 = vmatprep.subr.mxu0 0.0
        %1622 = vmatpush2.msra.mxu0 0.0
        %1623 = vmatprep.subr.mxu0 0.0
        %1624 = vmatpush2.msra.mxu0 0.0
        %1625 = vmatprep.mubr.f32.mxu0 0.0
        %v1626 = vand.u32 %v1478, 4294901760
        %1627 = vmatmul.mubr.f32.gmra.mxu0 %v1626
        %v1628 = vpop.f32.mrf.mxu0
        %v1629 = vadd.f32 %v1553, %v1628
        %v1630 = vpop.f32.mrf.mxu0
        %1631 = vdwg.mxu0
        %1632 = vmatprep.subr.mxu0 0.0
        %1633 = vmatpush1.msra.mxu0 0.0
        %1634 = vmatprep.subr.mxu0 0.0
        %1635 = vmatpush1.msra.mxu0 0.0
        %1636 = vmatprep.subr.mxu0 0.0
        %1637 = vmatpush1.msra.mxu0 0.0
        %1638 = vmatprep.subr.mxu0 0.0
        %1639 = vmatpush1.msra.mxu0 0.0
        %1640 = vmatprep.subr.mxu0 0.0
        %1641 = vmatpush1.msra.mxu0 0.0
        %1642 = vmatprep.subr.mxu0 0.0
        %1643 = vmatpush1.msra.mxu0 0.0
        %1644 = vmatprep.subr.mxu0 0.0
        %1645 = vmatpush1.msra.mxu0 0.0
        %1646 = vmatprep.subr.mxu0 0.0
        %1647 = vmatpush1.msra.mxu0 0.0
        %1648 = vmatprep.subr.mxu0 0.0
        %1649 = vmatpush1.msra.mxu0 0.0
        %1650 = vmatprep.subr.mxu0 0.0
        %1651 = vmatpush1.msra.mxu0 0.0
        %1652 = vmatprep.subr.mxu0 0.0
        %1653 = vmatpush1.msra.mxu0 0.0
        %1654 = vmatprep.subr.mxu0 0.0
        %1655 = vmatpush1.msra.mxu0 0.0
        %1656 = vmatprep.subr.mxu0 0.0
        %1657 = vmatpush1.msra.mxu0 0.0
        %1658 = vmatprep.subr.mxu0 0.0
        %1659 = vmatpush1.msra.mxu0 0.0
        %1660 = vmatprep.subr.mxu0 0.0
        %1661 = vmatpush1.msra.mxu0 0.0
        %1662 = vmatprep.subr.mxu0 0.0
        %v1663 = vand.u32 %v342, 4294901760
        %v1664 = vsub.f32 %v342, %v1663
        %1665 = vmatpush1.msra.mxu0 %v1664
        %1666 = vmatprep.subr.mxu0 0.0
        %1667 = vmatpush2.msra.mxu0 0.0
        %1668 = vmatprep.subr.mxu0 0.0
        %1669 = vmatpush2.msra.mxu0 0.0
        %1670 = vmatprep.subr.mxu0 0.0
        %1671 = vmatpush2.msra.mxu0 0.0
        %1672 = vmatprep.subr.mxu0 0.0
        %1673 = vmatpush2.msra.mxu0 0.0
        %1674 = vmatprep.subr.mxu0 0.0
        %1675 = vmatpush2.msra.mxu0 0.0
        %1676 = vmatprep.subr.mxu0 0.0
        %1677 = vmatpush2.msra.mxu0 0.0
        %1678 = vmatprep.subr.mxu0 0.0
        %1679 = vmatpush2.msra.mxu0 0.0
        %1680 = vmatprep.subr.mxu0 0.0
        %1681 = vmatpush2.msra.mxu0 0.0
        %1682 = vmatprep.subr.mxu0 0.0
        %1683 = vmatpush2.msra.mxu0 0.0
        %1684 = vmatprep.subr.mxu0 0.0
        %1685 = vmatpush2.msra.mxu0 0.0
        %1686 = vmatprep.subr.mxu0 0.0
        %1687 = vmatpush2.msra.mxu0 0.0
        %1688 = vmatprep.subr.mxu0 0.0
        %1689 = vmatpush2.msra.mxu0 0.0
        %1690 = vmatprep.subr.mxu0 0.0
        %1691 = vmatpush2.msra.mxu0 0.0
        %1692 = vmatprep.subr.mxu0 0.0
        %1693 = vmatpush2.msra.mxu0 0.0
        %1694 = vmatprep.subr.mxu0 0.0
        %1695 = vmatpush2.msra.mxu0 0.0
        %1696 = vmatprep.subr.mxu0 0.0
        %1697 = vmatpush2.msra.mxu0 0.0
        %1698 = vmatprep.mubr.f32.mxu0 0.0
        %v1699 = vand.u32 %v1478, 4294901760
        %v1700 = vsub.f32 %v1478, %v1699
        %1701 = vmatmul.mubr.f32.gmra.mxu0 %v1700
        %v1702 = vpop.f32.mrf.mxu0
        %v1703 = vadd.f32 %v1629, %v1702
        %v1704 = vpop.f32.mrf.mxu0
        %1705 = vdwg.mxu0
        %1706 = vmatprep.subr.mxu0 0.0
        %1707 = vmatpush1.msra.mxu0 0.0
        %1708 = vmatprep.subr.mxu0 0.0
        %1709 = vmatpush1.msra.mxu0 0.0
        %1710 = vmatprep.subr.mxu0 0.0
        %1711 = vmatpush1.msra.mxu0 0.0
        %1712 = vmatprep.subr.mxu0 0.0
        %1713 = vmatpush1.msra.mxu0 0.0
        %1714 = vmatprep.subr.mxu0 0.0
        %1715 = vmatpush1.msra.mxu0 0.0
        %1716 = vmatprep.subr.mxu0 0.0
        %1717 = vmatpush1.msra.mxu0 0.0
        %1718 = vmatprep.subr.mxu0 0.0
        %1719 = vmatpush1.msra.mxu0 0.0
        %1720 = vmatprep.subr.mxu0 0.0
        %1721 = vmatpush1.msra.mxu0 0.0
        %1722 = vmatprep.subr.mxu0 0.0
        %1723 = vmatpush1.msra.mxu0 0.0
        %1724 = vmatprep.subr.mxu0 0.0
        %1725 = vmatpush1.msra.mxu0 0.0
        %1726 = vmatprep.subr.mxu0 0.0
        %1727 = vmatpush1.msra.mxu0 0.0
        %1728 = vmatprep.subr.mxu0 0.0
        %1729 = vmatpush1.msra.mxu0 0.0
        %1730 = vmatprep.subr.mxu0 0.0
        %1731 = vmatpush1.msra.mxu0 0.0
        %1732 = vmatprep.subr.mxu0 0.0
        %1733 = vmatpush1.msra.mxu0 0.0
        %1734 = vmatprep.subr.mxu0 0.0
        %1735 = vmatpush1.msra.mxu0 0.0
        %1736 = vmatprep.subr.mxu0 0.0
        %v1737 = vand.u32 %v342, 4294901760
        %1738 = vmatpush1.msra.mxu0 %v1737
        %1739 = vmatprep.subr.mxu0 0.0
        %1740 = vmatpush2.msra.mxu0 0.0
        %1741 = vmatprep.subr.mxu0 0.0
        %1742 = vmatpush2.msra.mxu0 0.0
        %1743 = vmatprep.subr.mxu0 0.0
        %1744 = vmatpush2.msra.mxu0 0.0
        %1745 = vmatprep.subr.mxu0 0.0
        %1746 = vmatpush2.msra.mxu0 0.0
        %1747 = vmatprep.subr.mxu0 0.0
        %1748 = vmatpush2.msra.mxu0 0.0
        %1749 = vmatprep.subr.mxu0 0.0
        %1750 = vmatpush2.msra.mxu0 0.0
        %1751 = vmatprep.subr.mxu0 0.0
        %1752 = vmatpush2.msra.mxu0 0.0
        %1753 = vmatprep.subr.mxu0 0.0
        %1754 = vmatpush2.msra.mxu0 0.0
        %1755 = vmatprep.subr.mxu0 0.0
        %1756 = vmatpush2.msra.mxu0 0.0
        %1757 = vmatprep.subr.mxu0 0.0
        %1758 = vmatpush2.msra.mxu0 0.0
        %1759 = vmatprep.subr.mxu0 0.0
        %1760 = vmatpush2.msra.mxu0 0.0
        %1761 = vmatprep.subr.mxu0 0.0
        %1762 = vmatpush2.msra.mxu0 0.0
        %1763 = vmatprep.subr.mxu0 0.0
        %1764 = vmatpush2.msra.mxu0 0.0
        %1765 = vmatprep.subr.mxu0 0.0
        %1766 = vmatpush2.msra.mxu0 0.0
        %1767 = vmatprep.subr.mxu0 0.0
        %1768 = vmatpush2.msra.mxu0 0.0
        %1769 = vmatprep.subr.mxu0 0.0
        %1770 = vmatpush2.msra.mxu0 0.0
        %1771 = vmatprep.mubr.f32.mxu0 0.0
        %v1772 = vand.u32 %v1478, 4294901760
        %v1773 = vsub.f32 %v1478, %v1772
        %v1774 = vand.u32 %v1773, 4294901760
        %1775 = vmatmul.mubr.f32.gmra.mxu0 %v1774
        %v1776 = vpop.f32.mrf.mxu0
        %v1777 = vadd.f32 %v1703, %v1776
        %v1778 = vpop.f32.mrf.mxu0
        %1779 = vdwg.mxu0
        %1780 = vmatprep.subr.mxu0 0.0
        %1781 = vmatpush1.msra.mxu0 0.0
        %1782 = vmatprep.subr.mxu0 0.0
        %1783 = vmatpush1.msra.mxu0 0.0
        %1784 = vmatprep.subr.mxu0 0.0
        %1785 = vmatpush1.msra.mxu0 0.0
        %1786 = vmatprep.subr.mxu0 0.0
        %1787 = vmatpush1.msra.mxu0 0.0
        %1788 = vmatprep.subr.mxu0 0.0
        %1789 = vmatpush1.msra.mxu0 0.0
        %1790 = vmatprep.subr.mxu0 0.0
        %1791 = vmatpush1.msra.mxu0 0.0
        %1792 = vmatprep.subr.mxu0 0.0
        %1793 = vmatpush1.msra.mxu0 0.0
        %1794 = vmatprep.subr.mxu0 0.0
        %1795 = vmatpush1.msra.mxu0 0.0
        %1796 = vmatprep.subr.mxu0 0.0
        %1797 = vmatpush1.msra.mxu0 0.0
        %1798 = vmatprep.subr.mxu0 0.0
        %1799 = vmatpush1.msra.mxu0 0.0
        %1800 = vmatprep.subr.mxu0 0.0
        %1801 = vmatpush1.msra.mxu0 0.0
        %1802 = vmatprep.subr.mxu0 0.0
        %1803 = vmatpush1.msra.mxu0 0.0
        %1804 = vmatprep.subr.mxu0 0.0
        %1805 = vmatpush1.msra.mxu0 0.0
        %1806 = vmatprep.subr.mxu0 0.0
        %1807 = vmatpush1.msra.mxu0 0.0
        %1808 = vmatprep.subr.mxu0 0.0
        %1809 = vmatpush1.msra.mxu0 0.0
        %1810 = vmatprep.subr.mxu0 0.0
        %v1811 = vand.u32 %v342, 4294901760
        %v1812 = vsub.f32 %v342, %v1811
        %v1813 = vand.u32 %v1812, 4294901760
        %1814 = vmatpush1.msra.mxu0 %v1813
        %1815 = vmatprep.subr.mxu0 0.0
        %1816 = vmatpush2.msra.mxu0 0.0
        %1817 = vmatprep.subr.mxu0 0.0
        %1818 = vmatpush2.msra.mxu0 0.0
        %1819 = vmatprep.subr.mxu0 0.0
        %1820 = vmatpush2.msra.mxu0 0.0
        %1821 = vmatprep.subr.mxu0 0.0
        %1822 = vmatpush2.msra.mxu0 0.0
        %1823 = vmatprep.subr.mxu0 0.0
        %1824 = vmatpush2.msra.mxu0 0.0
        %1825 = vmatprep.subr.mxu0 0.0
        %1826 = vmatpush2.msra.mxu0 0.0
        %1827 = vmatprep.subr.mxu0 0.0
        %1828 = vmatpush2.msra.mxu0 0.0
        %1829 = vmatprep.subr.mxu0 0.0
        %1830 = vmatpush2.msra.mxu0 0.0
        %1831 = vmatprep.subr.mxu0 0.0
        %1832 = vmatpush2.msra.mxu0 0.0
        %1833 = vmatprep.subr.mxu0 0.0
        %1834 = vmatpush2.msra.mxu0 0.0
        %1835 = vmatprep.subr.mxu0 0.0
        %1836 = vmatpush2.msra.mxu0 0.0
        %1837 = vmatprep.subr.mxu0 0.0
        %1838 = vmatpush2.msra.mxu0 0.0
        %1839 = vmatprep.subr.mxu0 0.0
        %1840 = vmatpush2.msra.mxu0 0.0
        %1841 = vmatprep.subr.mxu0 0.0
        %1842 = vmatpush2.msra.mxu0 0.0
        %1843 = vmatprep.subr.mxu0 0.0
        %1844 = vmatpush2.msra.mxu0 0.0
        %1845 = vmatprep.subr.mxu0 0.0
        %1846 = vmatpush2.msra.mxu0 0.0
        %1847 = vmatprep.mubr.f32.mxu0 0.0
        %v1848 = vand.u32 %v1478, 4294901760
        %1849 = vmatmul.mubr.f32.gmra.mxu0 %v1848
        %v1850 = vpop.f32.mrf.mxu0
        %v1851 = vadd.f32 %v1777, %v1850
        %v1852 = vpop.f32.mrf.mxu0
        %1853 = vdwg.mxu0
        %1854 = vmatprep.subr.mxu0 0.0
        %1855 = vmatpush1.msra.mxu0 0.0
        %1856 = vmatprep.subr.mxu0 0.0
        %1857 = vmatpush1.msra.mxu0 0.0
        %1858 = vmatprep.subr.mxu0 0.0
        %1859 = vmatpush1.msra.mxu0 0.0
        %1860 = vmatprep.subr.mxu0 0.0
        %1861 = vmatpush1.msra.mxu0 0.0
        %1862 = vmatprep.subr.mxu0 0.0
        %1863 = vmatpush1.msra.mxu0 0.0
        %1864 = vmatprep.subr.mxu0 0.0
        %1865 = vmatpush1.msra.mxu0 0.0
        %1866 = vmatprep.subr.mxu0 0.0
        %1867 = vmatpush1.msra.mxu0 0.0
        %1868 = vmatprep.subr.mxu0 0.0
        %1869 = vmatpush1.msra.mxu0 0.0
        %1870 = vmatprep.subr.mxu0 0.0
        %1871 = vmatpush1.msra.mxu0 0.0
        %1872 = vmatprep.subr.mxu0 0.0
        %1873 = vmatpush1.msra.mxu0 0.0
        %1874 = vmatprep.subr.mxu0 0.0
        %1875 = vmatpush1.msra.mxu0 0.0
        %1876 = vmatprep.subr.mxu0 0.0
        %1877 = vmatpush1.msra.mxu0 0.0
        %1878 = vmatprep.subr.mxu0 0.0
        %1879 = vmatpush1.msra.mxu0 0.0
        %1880 = vmatprep.subr.mxu0 0.0
        %1881 = vmatpush1.msra.mxu0 0.0
        %1882 = vmatprep.subr.mxu0 0.0
        %1883 = vmatpush1.msra.mxu0 0.0
        %1884 = vmatprep.subr.mxu0 0.0
        %v1885 = vand.u32 %v342, 4294901760
        %1886 = vmatpush1.msra.mxu0 %v1885
        %1887 = vmatprep.subr.mxu0 0.0
        %1888 = vmatpush2.msra.mxu0 0.0
        %1889 = vmatprep.subr.mxu0 0.0
        %1890 = vmatpush2.msra.mxu0 0.0
        %1891 = vmatprep.subr.mxu0 0.0
        %1892 = vmatpush2.msra.mxu0 0.0
        %1893 = vmatprep.subr.mxu0 0.0
        %1894 = vmatpush2.msra.mxu0 0.0
        %1895 = vmatprep.subr.mxu0 0.0
        %1896 = vmatpush2.msra.mxu0 0.0
        %1897 = vmatprep.subr.mxu0 0.0
        %1898 = vmatpush2.msra.mxu0 0.0
        %1899 = vmatprep.subr.mxu0 0.0
        %1900 = vmatpush2.msra.mxu0 0.0
        %1901 = vmatprep.subr.mxu0 0.0
        %1902 = vmatpush2.msra.mxu0 0.0
        %1903 = vmatprep.subr.mxu0 0.0
        %1904 = vmatpush2.msra.mxu0 0.0
        %1905 = vmatprep.subr.mxu0 0.0
        %1906 = vmatpush2.msra.mxu0 0.0
        %1907 = vmatprep.subr.mxu0 0.0
        %1908 = vmatpush2.msra.mxu0 0.0
        %1909 = vmatprep.subr.mxu0 0.0
        %1910 = vmatpush2.msra.mxu0 0.0
        %1911 = vmatprep.subr.mxu0 0.0
        %1912 = vmatpush2.msra.mxu0 0.0
        %1913 = vmatprep.subr.mxu0 0.0
        %1914 = vmatpush2.msra.mxu0 0.0
        %1915 = vmatprep.subr.mxu0 0.0
        %1916 = vmatpush2.msra.mxu0 0.0
        %1917 = vmatprep.subr.mxu0 0.0
        %1918 = vmatpush2.msra.mxu0 0.0
        %1919 = vmatprep.mubr.f32.mxu0 0.0
        %v1920 = vand.u32 %v1478, 4294901760
        %1921 = vmatmul.mubr.f32.gmra.mxu0 %v1920
        %v1922 = vpop.f32.mrf.mxu0
        %v1923 = vadd.f32 %v1851, %v1922
        %v1924 = vpop.f32.mrf.mxu0
        %1925 = vdwg.mxu0
        %v1927 = vsel %vm371, %v1476, 0
        %1929 = vmatprep.subr.mxu0 0.0
        %1930 = vmatpush1.msra.mxu0 0.0
        %1931 = vmatprep.subr.mxu0 0.0
        %1932 = vmatpush1.msra.mxu0 0.0
        %1933 = vmatprep.subr.mxu0 0.0
        %1934 = vmatpush1.msra.mxu0 0.0
        %1935 = vmatprep.subr.mxu0 0.0
        %1936 = vmatpush1.msra.mxu0 0.0
        %1937 = vmatprep.subr.mxu0 0.0
        %1938 = vmatpush1.msra.mxu0 0.0
        %1939 = vmatprep.subr.mxu0 0.0
        %1940 = vmatpush1.msra.mxu0 0.0
        %1941 = vmatprep.subr.mxu0 0.0
        %1942 = vmatpush1.msra.mxu0 0.0
        %1943 = vmatprep.subr.mxu0 0.0
        %1944 = vmatpush1.msra.mxu0 0.0
        %1945 = vmatprep.subr.mxu0 0.0
        %1946 = vmatpush1.msra.mxu0 0.0
        %1947 = vmatprep.subr.mxu0 0.0
        %1948 = vmatpush1.msra.mxu0 0.0
        %1949 = vmatprep.subr.mxu0 0.0
        %1950 = vmatpush1.msra.mxu0 0.0
        %1951 = vmatprep.subr.mxu0 0.0
        %1952 = vmatpush1.msra.mxu0 0.0
        %1953 = vmatprep.subr.mxu0 0.0
        %1954 = vmatpush1.msra.mxu0 0.0
        %1955 = vmatprep.subr.mxu0 0.0
        %1956 = vmatpush1.msra.mxu0 0.0
        %1957 = vmatprep.subr.mxu0 0.0
        %1958 = vmatpush1.msra.mxu0 0.0
        %1959 = vmatprep.subr.mxu0 0.0
        %v1960 = vand.u32 %v342, 4294901760
        %1961 = vmatpush1.msra.mxu0 %v1960
        %1962 = vmatprep.subr.mxu0 0.0
        %1963 = vmatpush2.msra.mxu0 0.0
        %1964 = vmatprep.subr.mxu0 0.0
        %1965 = vmatpush2.msra.mxu0 0.0
        %1966 = vmatprep.subr.mxu0 0.0
        %1967 = vmatpush2.msra.mxu0 0.0
        %1968 = vmatprep.subr.mxu0 0.0
        %1969 = vmatpush2.msra.mxu0 0.0
        %1970 = vmatprep.subr.mxu0 0.0
        %1971 = vmatpush2.msra.mxu0 0.0
        %1972 = vmatprep.subr.mxu0 0.0
        %1973 = vmatpush2.msra.mxu0 0.0
        %1974 = vmatprep.subr.mxu0 0.0
        %1975 = vmatpush2.msra.mxu0 0.0
        %1976 = vmatprep.subr.mxu0 0.0
        %1977 = vmatpush2.msra.mxu0 0.0
        %1978 = vmatprep.subr.mxu0 0.0
        %1979 = vmatpush2.msra.mxu0 0.0
        %1980 = vmatprep.subr.mxu0 0.0
        %1981 = vmatpush2.msra.mxu0 0.0
        %1982 = vmatprep.subr.mxu0 0.0
        %1983 = vmatpush2.msra.mxu0 0.0
        %1984 = vmatprep.subr.mxu0 0.0
        %1985 = vmatpush2.msra.mxu0 0.0
        %1986 = vmatprep.subr.mxu0 0.0
        %1987 = vmatpush2.msra.mxu0 0.0
        %1988 = vmatprep.subr.mxu0 0.0
        %1989 = vmatpush2.msra.mxu0 0.0
        %1990 = vmatprep.subr.mxu0 0.0
        %1991 = vmatpush2.msra.mxu0 0.0
        %1992 = vmatprep.subr.mxu0 0.0
        %1993 = vmatpush2.msra.mxu0 0.0
        %1994 = vmatprep.mubr.f32.mxu0 0.0
        %v1995 = vand.u32 %v1927, 4294901760
        %v1996 = vsub.f32 %v1927, %v1995
        %v1997 = vand.u32 %v1996, 4294901760
        %v1998 = vsub.f32 %v1996, %v1997
        %v1999 = vand.u32 %v1998, 4294901760
        %2000 = vmatmul.mubr.f32.gmra.mxu0 %v1999
        %v2001 = vpop.f32.mrf.mxu0
        %v2002 = vadd.f32 0.0, %v2001
        %v2003 = vpop.f32.mrf.mxu0
        %2004 = vdwg.mxu0
        %2005 = vmatprep.subr.mxu0 0.0
        %2006 = vmatpush1.msra.mxu0 0.0
        %2007 = vmatprep.subr.mxu0 0.0
        %2008 = vmatpush1.msra.mxu0 0.0
        %2009 = vmatprep.subr.mxu0 0.0
        %2010 = vmatpush1.msra.mxu0 0.0
        %2011 = vmatprep.subr.mxu0 0.0
        %2012 = vmatpush1.msra.mxu0 0.0
        %2013 = vmatprep.subr.mxu0 0.0
        %2014 = vmatpush1.msra.mxu0 0.0
        %2015 = vmatprep.subr.mxu0 0.0
        %2016 = vmatpush1.msra.mxu0 0.0
        %2017 = vmatprep.subr.mxu0 0.0
        %2018 = vmatpush1.msra.mxu0 0.0
        %2019 = vmatprep.subr.mxu0 0.0
        %2020 = vmatpush1.msra.mxu0 0.0
        %2021 = vmatprep.subr.mxu0 0.0
        %2022 = vmatpush1.msra.mxu0 0.0
        %2023 = vmatprep.subr.mxu0 0.0
        %2024 = vmatpush1.msra.mxu0 0.0
        %2025 = vmatprep.subr.mxu0 0.0
        %2026 = vmatpush1.msra.mxu0 0.0
        %2027 = vmatprep.subr.mxu0 0.0
        %2028 = vmatpush1.msra.mxu0 0.0
        %2029 = vmatprep.subr.mxu0 0.0
        %2030 = vmatpush1.msra.mxu0 0.0
        %2031 = vmatprep.subr.mxu0 0.0
        %2032 = vmatpush1.msra.mxu0 0.0
        %2033 = vmatprep.subr.mxu0 0.0
        %2034 = vmatpush1.msra.mxu0 0.0
        %2035 = vmatprep.subr.mxu0 0.0
        %v2036 = vand.u32 %v342, 4294901760
        %v2037 = vsub.f32 %v342, %v2036
        %v2038 = vand.u32 %v2037, 4294901760
        %v2039 = vsub.f32 %v2037, %v2038
        %v2040 = vand.u32 %v2039, 4294901760
        %2041 = vmatpush1.msra.mxu0 %v2040
        %2042 = vmatprep.subr.mxu0 0.0
        %2043 = vmatpush2.msra.mxu0 0.0
        %2044 = vmatprep.subr.mxu0 0.0
        %2045 = vmatpush2.msra.mxu0 0.0
        %2046 = vmatprep.subr.mxu0 0.0
        %2047 = vmatpush2.msra.mxu0 0.0
        %2048 = vmatprep.subr.mxu0 0.0
        %2049 = vmatpush2.msra.mxu0 0.0
        %2050 = vmatprep.subr.mxu0 0.0
        %2051 = vmatpush2.msra.mxu0 0.0
        %2052 = vmatprep.subr.mxu0 0.0
        %2053 = vmatpush2.msra.mxu0 0.0
        %2054 = vmatprep.subr.mxu0 0.0
        %2055 = vmatpush2.msra.mxu0 0.0
        %2056 = vmatprep.subr.mxu0 0.0
        %2057 = vmatpush2.msra.mxu0 0.0
        %2058 = vmatprep.subr.mxu0 0.0
        %2059 = vmatpush2.msra.mxu0 0.0
        %2060 = vmatprep.subr.mxu0 0.0
        %2061 = vmatpush2.msra.mxu0 0.0
        %2062 = vmatprep.subr.mxu0 0.0
        %2063 = vmatpush2.msra.mxu0 0.0
        %2064 = vmatprep.subr.mxu0 0.0
        %2065 = vmatpush2.msra.mxu0 0.0
        %2066 = vmatprep.subr.mxu0 0.0
        %2067 = vmatpush2.msra.mxu0 0.0
        %2068 = vmatprep.subr.mxu0 0.0
        %2069 = vmatpush2.msra.mxu0 0.0
        %2070 = vmatprep.subr.mxu0 0.0
        %2071 = vmatpush2.msra.mxu0 0.0
        %2072 = vmatprep.subr.mxu0 0.0
        %2073 = vmatpush2.msra.mxu0 0.0
        %2074 = vmatprep.mubr.f32.mxu0 0.0
        %v2075 = vand.u32 %v1927, 4294901760
        %2076 = vmatmul.mubr.f32.gmra.mxu0 %v2075
        %v2077 = vpop.f32.mrf.mxu0
        %v2078 = vadd.f32 %v2002, %v2077
        %v2079 = vpop.f32.mrf.mxu0
        %2080 = vdwg.mxu0
        %2081 = vmatprep.subr.mxu0 0.0
        %2082 = vmatpush1.msra.mxu0 0.0
        %2083 = vmatprep.subr.mxu0 0.0
        %2084 = vmatpush1.msra.mxu0 0.0
        %2085 = vmatprep.subr.mxu0 0.0
        %2086 = vmatpush1.msra.mxu0 0.0
        %2087 = vmatprep.subr.mxu0 0.0
        %2088 = vmatpush1.msra.mxu0 0.0
        %2089 = vmatprep.subr.mxu0 0.0
        %2090 = vmatpush1.msra.mxu0 0.0
        %2091 = vmatprep.subr.mxu0 0.0
        %2092 = vmatpush1.msra.mxu0 0.0
        %2093 = vmatprep.subr.mxu0 0.0
        %2094 = vmatpush1.msra.mxu0 0.0
        %2095 = vmatprep.subr.mxu0 0.0
        %2096 = vmatpush1.msra.mxu0 0.0
        %2097 = vmatprep.subr.mxu0 0.0
        %2098 = vmatpush1.msra.mxu0 0.0
        %2099 = vmatprep.subr.mxu0 0.0
        %2100 = vmatpush1.msra.mxu0 0.0
        %2101 = vmatprep.subr.mxu0 0.0
        %2102 = vmatpush1.msra.mxu0 0.0
        %2103 = vmatprep.subr.mxu0 0.0
        %2104 = vmatpush1.msra.mxu0 0.0
        %2105 = vmatprep.subr.mxu0 0.0
        %2106 = vmatpush1.msra.mxu0 0.0
        %2107 = vmatprep.subr.mxu0 0.0
        %2108 = vmatpush1.msra.mxu0 0.0
        %2109 = vmatprep.subr.mxu0 0.0
        %2110 = vmatpush1.msra.mxu0 0.0
        %2111 = vmatprep.subr.mxu0 0.0
        %v2112 = vand.u32 %v342, 4294901760
        %v2113 = vsub.f32 %v342, %v2112
        %2114 = vmatpush1.msra.mxu0 %v2113
        %2115 = vmatprep.subr.mxu0 0.0
        %2116 = vmatpush2.msra.mxu0 0.0
        %2117 = vmatprep.subr.mxu0 0.0
        %2118 = vmatpush2.msra.mxu0 0.0
        %2119 = vmatprep.subr.mxu0 0.0
        %2120 = vmatpush2.msra.mxu0 0.0
        %2121 = vmatprep.subr.mxu0 0.0
        %2122 = vmatpush2.msra.mxu0 0.0
        %2123 = vmatprep.subr.mxu0 0.0
        %2124 = vmatpush2.msra.mxu0 0.0
        %2125 = vmatprep.subr.mxu0 0.0
        %2126 = vmatpush2.msra.mxu0 0.0
        %2127 = vmatprep.subr.mxu0 0.0
        %2128 = vmatpush2.msra.mxu0 0.0
        %2129 = vmatprep.subr.mxu0 0.0
        %2130 = vmatpush2.msra.mxu0 0.0
        %2131 = vmatprep.subr.mxu0 0.0
        %2132 = vmatpush2.msra.mxu0 0.0
        %2133 = vmatprep.subr.mxu0 0.0
        %2134 = vmatpush2.msra.mxu0 0.0
        %2135 = vmatprep.subr.mxu0 0.0
        %2136 = vmatpush2.msra.mxu0 0.0
        %2137 = vmatprep.subr.mxu0 0.0
        %2138 = vmatpush2.msra.mxu0 0.0
        %2139 = vmatprep.subr.mxu0 0.0
        %2140 = vmatpush2.msra.mxu0 0.0
        %2141 = vmatprep.subr.mxu0 0.0
        %2142 = vmatpush2.msra.mxu0 0.0
        %2143 = vmatprep.subr.mxu0 0.0
        %2144 = vmatpush2.msra.mxu0 0.0
        %2145 = vmatprep.subr.mxu0 0.0
        %2146 = vmatpush2.msra.mxu0 0.0
        %2147 = vmatprep.mubr.f32.mxu0 0.0
        %v2148 = vand.u32 %v1927, 4294901760
        %v2149 = vsub.f32 %v1927, %v2148
        %2150 = vmatmul.mubr.f32.gmra.mxu0 %v2149
        %v2151 = vpop.f32.mrf.mxu0
        %v2152 = vadd.f32 %v2078, %v2151
        %v2153 = vpop.f32.mrf.mxu0
        %2154 = vdwg.mxu0
        %2155 = vmatprep.subr.mxu0 0.0
        %2156 = vmatpush1.msra.mxu0 0.0
        %2157 = vmatprep.subr.mxu0 0.0
        %2158 = vmatpush1.msra.mxu0 0.0
        %2159 = vmatprep.subr.mxu0 0.0
        %2160 = vmatpush1.msra.mxu0 0.0
        %2161 = vmatprep.subr.mxu0 0.0
        %2162 = vmatpush1.msra.mxu0 0.0
        %2163 = vmatprep.subr.mxu0 0.0
        %2164 = vmatpush1.msra.mxu0 0.0
        %2165 = vmatprep.subr.mxu0 0.0
        %2166 = vmatpush1.msra.mxu0 0.0
        %2167 = vmatprep.subr.mxu0 0.0
        %2168 = vmatpush1.msra.mxu0 0.0
        %2169 = vmatprep.subr.mxu0 0.0
        %2170 = vmatpush1.msra.mxu0 0.0
        %2171 = vmatprep.subr.mxu0 0.0
        %2172 = vmatpush1.msra.mxu0 0.0
        %2173 = vmatprep.subr.mxu0 0.0
        %2174 = vmatpush1.msra.mxu0 0.0
        %2175 = vmatprep.subr.mxu0 0.0
        %2176 = vmatpush1.msra.mxu0 0.0
        %2177 = vmatprep.subr.mxu0 0.0
        %2178 = vmatpush1.msra.mxu0 0.0
        %2179 = vmatprep.subr.mxu0 0.0
        %2180 = vmatpush1.msra.mxu0 0.0
        %2181 = vmatprep.subr.mxu0 0.0
        %2182 = vmatpush1.msra.mxu0 0.0
        %2183 = vmatprep.subr.mxu0 0.0
        %2184 = vmatpush1.msra.mxu0 0.0
        %2185 = vmatprep.subr.mxu0 0.0
        %v2186 = vand.u32 %v342, 4294901760
        %2187 = vmatpush1.msra.mxu0 %v2186
        %2188 = vmatprep.subr.mxu0 0.0
        %2189 = vmatpush2.msra.mxu0 0.0
        %2190 = vmatprep.subr.mxu0 0.0
        %2191 = vmatpush2.msra.mxu0 0.0
        %2192 = vmatprep.subr.mxu0 0.0
        %2193 = vmatpush2.msra.mxu0 0.0
        %2194 = vmatprep.subr.mxu0 0.0
        %2195 = vmatpush2.msra.mxu0 0.0
        %2196 = vmatprep.subr.mxu0 0.0
        %2197 = vmatpush2.msra.mxu0 0.0
        %2198 = vmatprep.subr.mxu0 0.0
        %2199 = vmatpush2.msra.mxu0 0.0
        %2200 = vmatprep.subr.mxu0 0.0
        %2201 = vmatpush2.msra.mxu0 0.0
        %2202 = vmatprep.subr.mxu0 0.0
        %2203 = vmatpush2.msra.mxu0 0.0
        %2204 = vmatprep.subr.mxu0 0.0
        %2205 = vmatpush2.msra.mxu0 0.0
        %2206 = vmatprep.subr.mxu0 0.0
        %2207 = vmatpush2.msra.mxu0 0.0
        %2208 = vmatprep.subr.mxu0 0.0
        %2209 = vmatpush2.msra.mxu0 0.0
        %2210 = vmatprep.subr.mxu0 0.0
        %2211 = vmatpush2.msra.mxu0 0.0
        %2212 = vmatprep.subr.mxu0 0.0
        %2213 = vmatpush2.msra.mxu0 0.0
        %2214 = vmatprep.subr.mxu0 0.0
        %2215 = vmatpush2.msra.mxu0 0.0
        %2216 = vmatprep.subr.mxu0 0.0
        %2217 = vmatpush2.msra.mxu0 0.0
        %2218 = vmatprep.subr.mxu0 0.0
        %2219 = vmatpush2.msra.mxu0 0.0
        %2220 = vmatprep.mubr.f32.mxu0 0.0
        %v2221 = vand.u32 %v1927, 4294901760
        %v2222 = vsub.f32 %v1927, %v2221
        %v2223 = vand.u32 %v2222, 4294901760
        %2224 = vmatmul.mubr.f32.gmra.mxu0 %v2223
        %v2225 = vpop.f32.mrf.mxu0
        %v2226 = vadd.f32 %v2152, %v2225
        %v2227 = vpop.f32.mrf.mxu0
        %2228 = vdwg.mxu0
        %2229 = vmatprep.subr.mxu0 0.0
        %2230 = vmatpush1.msra.mxu0 0.0
        %2231 = vmatprep.subr.mxu0 0.0
        %2232 = vmatpush1.msra.mxu0 0.0
        %2233 = vmatprep.subr.mxu0 0.0
        %2234 = vmatpush1.msra.mxu0 0.0
        %2235 = vmatprep.subr.mxu0 0.0
        %2236 = vmatpush1.msra.mxu0 0.0
        %2237 = vmatprep.subr.mxu0 0.0
        %2238 = vmatpush1.msra.mxu0 0.0
        %2239 = vmatprep.subr.mxu0 0.0
        %2240 = vmatpush1.msra.mxu0 0.0
        %2241 = vmatprep.subr.mxu0 0.0
        %2242 = vmatpush1.msra.mxu0 0.0
        %2243 = vmatprep.subr.mxu0 0.0
        %2244 = vmatpush1.msra.mxu0 0.0
        %2245 = vmatprep.subr.mxu0 0.0
        %2246 = vmatpush1.msra.mxu0 0.0
        %2247 = vmatprep.subr.mxu0 0.0
        %2248 = vmatpush1.msra.mxu0 0.0
        %2249 = vmatprep.subr.mxu0 0.0
        %2250 = vmatpush1.msra.mxu0 0.0
        %2251 = vmatprep.subr.mxu0 0.0
        %2252 = vmatpush1.msra.mxu0 0.0
        %2253 = vmatprep.subr.mxu0 0.0
        %2254 = vmatpush1.msra.mxu0 0.0
        %2255 = vmatprep.subr.mxu0 0.0
        %2256 = vmatpush1.msra.mxu0 0.0
        %2257 = vmatprep.subr.mxu0 0.0
        %2258 = vmatpush1.msra.mxu0 0.0
        %2259 = vmatprep.subr.mxu0 0.0
        %v2260 = vand.u32 %v342, 4294901760
        %v2261 = vsub.f32 %v342, %v2260
        %v2262 = vand.u32 %v2261, 4294901760
        %2263 = vmatpush1.msra.mxu0 %v2262
        %2264 = vmatprep.subr.mxu0 0.0
        %2265 = vmatpush2.msra.mxu0 0.0
        %2266 = vmatprep.subr.mxu0 0.0
        %2267 = vmatpush2.msra.mxu0 0.0
        %2268 = vmatprep.subr.mxu0 0.0
        %2269 = vmatpush2.msra.mxu0 0.0
        %2270 = vmatprep.subr.mxu0 0.0
        %2271 = vmatpush2.msra.mxu0 0.0
        %2272 = vmatprep.subr.mxu0 0.0
        %2273 = vmatpush2.msra.mxu0 0.0
        %2274 = vmatprep.subr.mxu0 0.0
        %2275 = vmatpush2.msra.mxu0 0.0
        %2276 = vmatprep.subr.mxu0 0.0
        %2277 = vmatpush2.msra.mxu0 0.0
        %2278 = vmatprep.subr.mxu0 0.0
        %2279 = vmatpush2.msra.mxu0 0.0
        %2280 = vmatprep.subr.mxu0 0.0
        %2281 = vmatpush2.msra.mxu0 0.0
        %2282 = vmatprep.subr.mxu0 0.0
        %2283 = vmatpush2.msra.mxu0 0.0
        %2284 = vmatprep.subr.mxu0 0.0
        %2285 = vmatpush2.msra.mxu0 0.0
        %2286 = vmatprep.subr.mxu0 0.0
        %2287 = vmatpush2.msra.mxu0 0.0
        %2288 = vmatprep.subr.mxu0 0.0
        %2289 = vmatpush2.msra.mxu0 0.0
        %2290 = vmatprep.subr.mxu0 0.0
        %2291 = vmatpush2.msra.mxu0 0.0
        %2292 = vmatprep.subr.mxu0 0.0
        %2293 = vmatpush2.msra.mxu0 0.0
        %2294 = vmatprep.subr.mxu0 0.0
        %2295 = vmatpush2.msra.mxu0 0.0
        %2296 = vmatprep.mubr.f32.mxu0 0.0
        %v2297 = vand.u32 %v1927, 4294901760
        %2298 = vmatmul.mubr.f32.gmra.mxu0 %v2297
        %v2299 = vpop.f32.mrf.mxu0
        %v2300 = vadd.f32 %v2226, %v2299
        %v2301 = vpop.f32.mrf.mxu0
        %2302 = vdwg.mxu0
        %2303 = vmatprep.subr.mxu0 0.0
        %2304 = vmatpush1.msra.mxu0 0.0
        %2305 = vmatprep.subr.mxu0 0.0
        %2306 = vmatpush1.msra.mxu0 0.0
        %2307 = vmatprep.subr.mxu0 0.0
        %2308 = vmatpush1.msra.mxu0 0.0
        %2309 = vmatprep.subr.mxu0 0.0
        %2310 = vmatpush1.msra.mxu0 0.0
        %2311 = vmatprep.subr.mxu0 0.0
        %2312 = vmatpush1.msra.mxu0 0.0
        %2313 = vmatprep.subr.mxu0 0.0
        %2314 = vmatpush1.msra.mxu0 0.0
        %2315 = vmatprep.subr.mxu0 0.0
        %2316 = vmatpush1.msra.mxu0 0.0
        %2317 = vmatprep.subr.mxu0 0.0
        %2318 = vmatpush1.msra.mxu0 0.0
        %2319 = vmatprep.subr.mxu0 0.0
        %2320 = vmatpush1.msra.mxu0 0.0
        %2321 = vmatprep.subr.mxu0 0.0
        %2322 = vmatpush1.msra.mxu0 0.0
        %2323 = vmatprep.subr.mxu0 0.0
        %2324 = vmatpush1.msra.mxu0 0.0
        %2325 = vmatprep.subr.mxu0 0.0
        %2326 = vmatpush1.msra.mxu0 0.0
        %2327 = vmatprep.subr.mxu0 0.0
        %2328 = vmatpush1.msra.mxu0 0.0
        %2329 = vmatprep.subr.mxu0 0.0
        %2330 = vmatpush1.msra.mxu0 0.0
        %2331 = vmatprep.subr.mxu0 0.0
        %2332 = vmatpush1.msra.mxu0 0.0
        %2333 = vmatprep.subr.mxu0 0.0
        %v2334 = vand.u32 %v342, 4294901760
        %2335 = vmatpush1.msra.mxu0 %v2334
        %2336 = vmatprep.subr.mxu0 0.0
        %2337 = vmatpush2.msra.mxu0 0.0
        %2338 = vmatprep.subr.mxu0 0.0
        %2339 = vmatpush2.msra.mxu0 0.0
        %2340 = vmatprep.subr.mxu0 0.0
        %2341 = vmatpush2.msra.mxu0 0.0
        %2342 = vmatprep.subr.mxu0 0.0
        %2343 = vmatpush2.msra.mxu0 0.0
        %2344 = vmatprep.subr.mxu0 0.0
        %2345 = vmatpush2.msra.mxu0 0.0
        %2346 = vmatprep.subr.mxu0 0.0
        %2347 = vmatpush2.msra.mxu0 0.0
        %2348 = vmatprep.subr.mxu0 0.0
        %2349 = vmatpush2.msra.mxu0 0.0
        %2350 = vmatprep.subr.mxu0 0.0
        %2351 = vmatpush2.msra.mxu0 0.0
        %2352 = vmatprep.subr.mxu0 0.0
        %2353 = vmatpush2.msra.mxu0 0.0
        %2354 = vmatprep.subr.mxu0 0.0
        %2355 = vmatpush2.msra.mxu0 0.0
        %2356 = vmatprep.subr.mxu0 0.0
        %2357 = vmatpush2.msra.mxu0 0.0
        %2358 = vmatprep.subr.mxu0 0.0
        %2359 = vmatpush2.msra.mxu0 0.0
        %2360 = vmatprep.subr.mxu0 0.0
        %2361 = vmatpush2.msra.mxu0 0.0
        %2362 = vmatprep.subr.mxu0 0.0
        %2363 = vmatpush2.msra.mxu0 0.0
        %2364 = vmatprep.subr.mxu0 0.0
        %2365 = vmatpush2.msra.mxu0 0.0
        %2366 = vmatprep.subr.mxu0 0.0
        %2367 = vmatpush2.msra.mxu0 0.0
        %2368 = vmatprep.mubr.f32.mxu0 0.0
        %v2369 = vand.u32 %v1927, 4294901760
        %2370 = vmatmul.mubr.f32.gmra.mxu0 %v2369
        %v2371 = vpop.f32.mrf.mxu0
        %v2372 = vadd.f32 %v2300, %v2371
        %v2373 = vpop.f32.mrf.mxu0
        %2374 = vdwg.mxu0
        %v2375 = vlaneseq
        %v2376 = vshrl.u32 %v2375, 7
        %v2377 = vsub.s32 0, %v2376
        %v2378 = vrot.slane %v1923, %v2377
        %v2379 = vsub.f32 %v523, %v2378
        %v2380 = vsub.f32 %v524, %v2378
        %v2381 = vlaneseq
        %v2382 = vshrl.u32 %v2381, 7
        %v2383 = vsub.s32 0, %v2382
        %v2384 = vrot.slane %v2372, %v2383
        %v2385 = vmul.f32 %v2379, %v2384
        %v2386 = vmul.f32 %v2380, %v2384
        %v2387 = vlaneseq
        %v2388 = vshrl.u32 %v2387, 7
        %v2389 = vsub.s32 1, %v2388
        %v2390 = vrot.slane %v339, %v2389
        %v2391 = vmul.f32 %v2385, %v2390
        %v2392 = vmul.f32 %v2386, %v2390
        %v2393 = vlaneseq
        %v2394 = vshrl.u32 %v2393, 7
        %v2395 = vsub.s32 2, %v2394
        %v2396 = vrot.slane %v339, %v2395
        %v2397 = vadd.f32 %v2391, %v2396
        %v2398 = vadd.f32 %v2392, %v2396
        %v2399 = vmin.f32 %v2397, 20.0
        %v2400 = vmin.f32 %v2398, 20.0
        %v2401 = vmul.f32 %v2399, 1.442695
        %v2402 = vpow.pop %v2401
        %v2403 = vmul.f32 %v2400, 1.442695
        %v2404 = vpow.pop %v2403
        %v2405 = vadd.f32 %v2402, 2.0
        %v2406 = vadd.f32 %v2404, 2.0
        %v2407 = vmul.f32 %v2402, %v2405
        %v2408 = vmul.f32 %v2404, %v2406
        %v2409 = vadd.f32 %v2407, 2.0
        %v2410 = vadd.f32 %v2408, 2.0
        %v2411 = vrcp.pop %v2409
        %v2412 = vrcp.pop %v2410
        %v2413 = vmul.f32 %v2407, %v2411
        %v2414 = vmul.f32 %v2408, %v2412
        %v2415 = vmul.f32 %v2397, %v2413
        %v2416 = vmul.f32 %v2398, %v2414
        %v2417 = vld [vmem:[%s296] sm:$0x1]
        %v2419 = vlaneseq
        %v2420 = vshrl.u32 %v2419, 7
        %v2421 = vsub.s32 0, %v2420
        %v2422 = vrot.slane %v2417, %v2421
        %v2424 = vadd.f32 %v2415, %v2422
        %v2425 = vadd.f32 %v2416, %v2422
        %v2426 = vrot.slane %v2424, 7
        %v2427 = vrot.slane %v2425, 7
        %v2428 = vsel %vm352, %v2426, %v2427
        %v2429 = vsel %vm352, %v2427, %v2426
        %v2430 = vsel %vm348, 0.0, %v2429
        %v2431 = vsel %vm349, 0.0, %v2428
        %v2432 = vrot.slane %v2424, 1
        %v2433 = vrot.slane %v2425, 1
        %v2434 = vsel %vm361, %v2432, %v2433
        %v2435 = vsel %vm361, %v2433, %v2432
        %v2436 = vsel %vm357, 0.0, %v2434
        %v2437 = vsel %vm358, 0.0, %v2435
        %v2438 = vpack.c.bf16 %v2431, %v2430
        %v2439 = vld [vmem:[%s3] sm:$0xf]
        %v2440 = vld [vmem:[%s3 + $0x4] sm:$0xf]
        %v2441 = vpack.c.bf16 %v2425, %v2424
        %s2442 = scalar_lea.vmem %s3, 8
        %v2443 = vld [vmem:[%s2442] sm:$0xf]
        %v2444 = vld [vmem:[%s2442 + $0x4] sm:$0xf]
        %v2447 = vunpack.c.l.b16 %v2443
        %v2448 = vunpack.c.l.b16 %v2444
        %v2449 = vpack.c.b16 %v2448, %v2447
        %v2452 = vsel %vm525, %v2441, 0
        %2454 = vmatprep.subr.bf16.mxu0 0
        %2455 = vmatpush1.bf16.msra.mxu0 0
        %2456 = vmatprep.subr.bf16.mxu0 0
        %2457 = vmatpush1.bf16.msra.mxu0 0
        %2458 = vmatprep.subr.bf16.mxu0 0
        %2459 = vmatpush1.bf16.msra.mxu0 0
        %2460 = vmatprep.subr.bf16.mxu0 0
        %2461 = vmatpush1.bf16.msra.mxu0 0
        %2462 = vmatprep.subr.bf16.mxu0 0
        %2463 = vmatpush1.bf16.msra.mxu0 0
        %2464 = vmatprep.subr.bf16.mxu0 0
        %2465 = vmatpush1.bf16.msra.mxu0 0
        %2466 = vmatprep.subr.bf16.mxu0 0
        %2467 = vmatpush1.bf16.msra.mxu0 0
        %2468 = vmatprep.subr.bf16.mxu0 0
        %2469 = vmatpush1.bf16.msra.mxu0 %v2449
        %2470 = vmatprep.subr.bf16.mxu0 0
        %2471 = vmatpush2.bf16.msra.mxu0 0
        %2472 = vmatprep.subr.bf16.mxu0 0
        %2473 = vmatpush2.bf16.msra.mxu0 0
        %2474 = vmatprep.subr.bf16.mxu0 0
        %2475 = vmatpush2.bf16.msra.mxu0 0
        %2476 = vmatprep.subr.bf16.mxu0 0
        %2477 = vmatpush2.bf16.msra.mxu0 0
        %2478 = vmatprep.subr.bf16.mxu0 0
        %2479 = vmatpush2.bf16.msra.mxu0 0
        %2480 = vmatprep.subr.bf16.mxu0 0
        %2481 = vmatpush2.bf16.msra.mxu0 0
        %2482 = vmatprep.subr.bf16.mxu0 0
        %2483 = vmatpush2.bf16.msra.mxu0 0
        %2484 = vmatprep.subr.bf16.mxu0 0
        %2485 = vmatpush2.bf16.msra.mxu0 0
        %2486 = vmatprep.mubr.bf16.mxu0 0
        %2487 = vmatmul.mubr.bf16.gmra.mxu0 %v2452
        %v2488 = vpop.f32.mrf.mxu0
        %v2489 = vadd.f32 0.0, %v2488
        %v2490 = vpop.f32.mrf.mxu0
        %v2491 = vpop.f32.mrf.mxu0
        %v2492 = vadd.f32 0.0, %v2491
        %v2493 = vpop.f32.mrf.mxu0
        %2494 = vdwg.mxu0
        %v2497 = vunpack.c.l.b16 %v2439
        %v2498 = vunpack.c.l.b16 %v2440
        %v2499 = vpack.c.b16 %v2498, %v2497
        %v2502 = vsel %vm525, %v2438, 0
        %2504 = vmatprep.subr.bf16.mxu0 0
        %2505 = vmatpush1.bf16.msra.mxu0 0
        %2506 = vmatprep.subr.bf16.mxu0 0
        %2507 = vmatpush1.bf16.msra.mxu0 0
        %2508 = vmatprep.subr.bf16.mxu0 0
        %2509 = vmatpush1.bf16.msra.mxu0 0
        %2510 = vmatprep.subr.bf16.mxu0 0
        %2511 = vmatpush1.bf16.msra.mxu0 0
        %2512 = vmatprep.subr.bf16.mxu0 0
        %2513 = vmatpush1.bf16.msra.mxu0 0
        %2514 = vmatprep.subr.bf16.mxu0 0
        %2515 = vmatpush1.bf16.msra.mxu0 0
        %2516 = vmatprep.subr.bf16.mxu0 0
        %2517 = vmatpush1.bf16.msra.mxu0 0
        %2518 = vmatprep.subr.bf16.mxu0 0
        %2519 = vmatpush1.bf16.msra.mxu0 %v2499
        %2520 = vmatprep.subr.bf16.mxu0 0
        %2521 = vmatpush2.bf16.msra.mxu0 0
        %2522 = vmatprep.subr.bf16.mxu0 0
        %2523 = vmatpush2.bf16.msra.mxu0 0
        %2524 = vmatprep.subr.bf16.mxu0 0
        %2525 = vmatpush2.bf16.msra.mxu0 0
        %2526 = vmatprep.subr.bf16.mxu0 0
        %2527 = vmatpush2.bf16.msra.mxu0 0
        %2528 = vmatprep.subr.bf16.mxu0 0
        %2529 = vmatpush2.bf16.msra.mxu0 0
        %2530 = vmatprep.subr.bf16.mxu0 0
        %2531 = vmatpush2.bf16.msra.mxu0 0
        %2532 = vmatprep.subr.bf16.mxu0 0
        %2533 = vmatpush2.bf16.msra.mxu0 0
        %2534 = vmatprep.subr.bf16.mxu0 0
        %2535 = vmatpush2.bf16.msra.mxu0 0
        %2536 = vmatprep.mubr.bf16.mxu0 0
        %2537 = vmatmul.mubr.bf16.gmra.mxu0 %v2502
        %v2538 = vpop.f32.mrf.mxu0
        %v2539 = vadd.f32 %v2489, %v2538
        %v2540 = vpop.f32.mrf.mxu0
        %v2541 = vpop.f32.mrf.mxu0
        %v2542 = vadd.f32 %v2492, %v2541
        %v2543 = vpop.f32.mrf.mxu0
        %2544 = vdwg.mxu0
        %v2545 = vpack.c.bf16 %v2437, %v2436
        %s2546 = scalar_lea.vmem %s3, 16
        %v2547 = vld [vmem:[%s2546] sm:$0xf]
        %v2548 = vld [vmem:[%s2546 + $0x4] sm:$0xf]
        %v2551 = vunpack.c.l.b16 %v2547
        %v2552 = vunpack.c.l.b16 %v2548
        %v2553 = vpack.c.b16 %v2552, %v2551
        %v2556 = vsel %vm525, %v2545, 0
        %2558 = vmatprep.subr.bf16.mxu0 0
        %2559 = vmatpush1.bf16.msra.mxu0 0
        %2560 = vmatprep.subr.bf16.mxu0 0
        %2561 = vmatpush1.bf16.msra.mxu0 0
        %2562 = vmatprep.subr.bf16.mxu0 0
        %2563 = vmatpush1.bf16.msra.mxu0 0
        %2564 = vmatprep.subr.bf16.mxu0 0
        %2565 = vmatpush1.bf16.msra.mxu0 0
        %2566 = vmatprep.subr.bf16.mxu0 0
        %2567 = vmatpush1.bf16.msra.mxu0 0
        %2568 = vmatprep.subr.bf16.mxu0 0
        %2569 = vmatpush1.bf16.msra.mxu0 0
        %2570 = vmatprep.subr.bf16.mxu0 0
        %2571 = vmatpush1.bf16.msra.mxu0 0
        %2572 = vmatprep.subr.bf16.mxu0 0
        %2573 = vmatpush1.bf16.msra.mxu0 %v2553
        %2574 = vmatprep.subr.bf16.mxu0 0
        %2575 = vmatpush2.bf16.msra.mxu0 0
        %2576 = vmatprep.subr.bf16.mxu0 0
        %2577 = vmatpush2.bf16.msra.mxu0 0
        %2578 = vmatprep.subr.bf16.mxu0 0
        %2579 = vmatpush2.bf16.msra.mxu0 0
        %2580 = vmatprep.subr.bf16.mxu0 0
        %2581 = vmatpush2.bf16.msra.mxu0 0
        %2582 = vmatprep.subr.bf16.mxu0 0
        %2583 = vmatpush2.bf16.msra.mxu0 0
        %2584 = vmatprep.subr.bf16.mxu0 0
        %2585 = vmatpush2.bf16.msra.mxu0 0
        %2586 = vmatprep.subr.bf16.mxu0 0
        %2587 = vmatpush2.bf16.msra.mxu0 0
        %2588 = vmatprep.subr.bf16.mxu0 0
        %2589 = vmatpush2.bf16.msra.mxu0 0
        %2590 = vmatprep.mubr.bf16.mxu0 0
        %2591 = vmatmul.mubr.bf16.gmra.mxu0 %v2556
        %v2592 = vpop.f32.mrf.mxu0
        %v2593 = vadd.f32 0.0, %v2592
        %v2594 = vpop.f32.mrf.mxu0
        %v2595 = vpop.f32.mrf.mxu0
        %v2596 = vadd.f32 0.0, %v2595
        %v2597 = vpop.f32.mrf.mxu0
        %2598 = vdwg.mxu0
        %v2599 = vadd.f32 %v2539, %v2593
        %v2600 = vadd.f32 %v2542, %v2596
        %v2601 = vlaneseq
        %v2602 = vshrl.u32 %v2601, 7
        %v2603 = vsub.s32 3, %v2602
        %v2604 = vrot.slane %v339, %v2603
        %v2605 = vadd.f32 %v2599, %v2604
        %v2606 = vadd.f32 %v2600, %v2604
        %v2607 = vsel %vm525, %v2605, 0.0
        %v2608 = vsel %vm525, %v2606, 0.0
        %v2609 = vadd.f32 %v2607, %v2608
        %v2610 = vrot.slane %v2609, 4
        %v2611 = vadd.f32 %v2609, %v2610
        %v2612 = vrot.slane %v2611, 2
        %v2613 = vadd.f32 %v2611, %v2612
        %v2614 = vrot.slane %v2613, 1
        %v2615 = vadd.f32 %v2613, %v2614
        %v2616 = vmul.f32 %v2605, %v2605
        %v2617 = vmul.f32 %v2606, %v2606
        %v2618 = vsel %vm525, %v2616, 0.0
        %v2619 = vsel %vm525, %v2617, 0.0
        %v2620 = vadd.f32 %v2618, %v2619
        %v2621 = vrot.slane %v2620, 4
        %v2622 = vadd.f32 %v2620, %v2621
        %v2623 = vrot.slane %v2622, 2
        %v2624 = vadd.f32 %v2622, %v2623
        %v2625 = vrot.slane %v2624, 1
        %v2626 = vadd.f32 %v2624, %v2625
        %v2628 = vsel %vm525, %v2615, 0
        %2630 = vmatprep.subr.mxu0 0.0
        %2631 = vmatpush1.msra.mxu0 0.0
        %2632 = vmatprep.subr.mxu0 0.0
        %2633 = vmatpush1.msra.mxu0 0.0
        %2634 = vmatprep.subr.mxu0 0.0
        %2635 = vmatpush1.msra.mxu0 0.0
        %2636 = vmatprep.subr.mxu0 0.0
        %2637 = vmatpush1.msra.mxu0 0.0
        %2638 = vmatprep.subr.mxu0 0.0
        %2639 = vmatpush1.msra.mxu0 0.0
        %2640 = vmatprep.subr.mxu0 0.0
        %2641 = vmatpush1.msra.mxu0 0.0
        %2642 = vmatprep.subr.mxu0 0.0
        %2643 = vmatpush1.msra.mxu0 0.0
        %2644 = vmatprep.subr.mxu0 0.0
        %2645 = vmatpush1.msra.mxu0 0.0
        %2646 = vmatprep.subr.mxu0 0.0
        %2647 = vmatpush1.msra.mxu0 0.0
        %2648 = vmatprep.subr.mxu0 0.0
        %2649 = vmatpush1.msra.mxu0 0.0
        %2650 = vmatprep.subr.mxu0 0.0
        %2651 = vmatpush1.msra.mxu0 0.0
        %2652 = vmatprep.subr.mxu0 0.0
        %2653 = vmatpush1.msra.mxu0 0.0
        %2654 = vmatprep.subr.mxu0 0.0
        %2655 = vmatpush1.msra.mxu0 0.0
        %2656 = vmatprep.subr.mxu0 0.0
        %2657 = vmatpush1.msra.mxu0 0.0
        %2658 = vmatprep.subr.mxu0 0.0
        %v2659 = vand.u32 %v341, 4294901760
        %2660 = vmatpush1.msra.mxu0 %v2659
        %2661 = vmatprep.subr.mxu0 0.0
        %v2662 = vand.u32 %v340, 4294901760
        %2663 = vmatpush1.msra.mxu0 %v2662
        %2664 = vmatprep.subr.mxu0 0.0
        %2665 = vmatpush2.msra.mxu0 0.0
        %2666 = vmatprep.subr.mxu0 0.0
        %2667 = vmatpush2.msra.mxu0 0.0
        %2668 = vmatprep.subr.mxu0 0.0
        %2669 = vmatpush2.msra.mxu0 0.0
        %2670 = vmatprep.subr.mxu0 0.0
        %2671 = vmatpush2.msra.mxu0 0.0
        %2672 = vmatprep.subr.mxu0 0.0
        %2673 = vmatpush2.msra.mxu0 0.0
        %2674 = vmatprep.subr.mxu0 0.0
        %2675 = vmatpush2.msra.mxu0 0.0
        %2676 = vmatprep.subr.mxu0 0.0
        %2677 = vmatpush2.msra.mxu0 0.0
        %2678 = vmatprep.subr.mxu0 0.0
        %2679 = vmatpush2.msra.mxu0 0.0
        %2680 = vmatprep.subr.mxu0 0.0
        %2681 = vmatpush2.msra.mxu0 0.0
        %2682 = vmatprep.subr.mxu0 0.0
        %2683 = vmatpush2.msra.mxu0 0.0
        %2684 = vmatprep.subr.mxu0 0.0
        %2685 = vmatpush2.msra.mxu0 0.0
        %2686 = vmatprep.subr.mxu0 0.0
        %2687 = vmatpush2.msra.mxu0 0.0
        %2688 = vmatprep.subr.mxu0 0.0
        %2689 = vmatpush2.msra.mxu0 0.0
        %2690 = vmatprep.subr.mxu0 0.0
        %2691 = vmatpush2.msra.mxu0 0.0
        %2692 = vmatprep.subr.mxu0 0.0
        %2693 = vmatpush2.msra.mxu0 0.0
        %2694 = vmatprep.subr.mxu0 0.0
        %2695 = vmatpush2.msra.mxu0 0.0
        %2696 = vmatprep.mubr.f32.mxu0 0.0
        %v2697 = vand.u32 %v2628, 4294901760
        %v2698 = vsub.f32 %v2628, %v2697
        %v2699 = vand.u32 %v2698, 4294901760
        %v2700 = vsub.f32 %v2698, %v2699
        %v2701 = vand.u32 %v2700, 4294901760
        %2702 = vmatmul.mubr.f32.gmra.mxu0 %v2701
        %v2703 = vpop.f32.mrf.mxu0
        %v2704 = vadd.f32 0.0, %v2703
        %v2705 = vpop.f32.mrf.mxu0
        %2706 = vdwg.mxu0
        %2707 = vmatprep.subr.mxu0 0.0
        %2708 = vmatpush1.msra.mxu0 0.0
        %2709 = vmatprep.subr.mxu0 0.0
        %2710 = vmatpush1.msra.mxu0 0.0
        %2711 = vmatprep.subr.mxu0 0.0
        %2712 = vmatpush1.msra.mxu0 0.0
        %2713 = vmatprep.subr.mxu0 0.0
        %2714 = vmatpush1.msra.mxu0 0.0
        %2715 = vmatprep.subr.mxu0 0.0
        %2716 = vmatpush1.msra.mxu0 0.0
        %2717 = vmatprep.subr.mxu0 0.0
        %2718 = vmatpush1.msra.mxu0 0.0
        %2719 = vmatprep.subr.mxu0 0.0
        %2720 = vmatpush1.msra.mxu0 0.0
        %2721 = vmatprep.subr.mxu0 0.0
        %2722 = vmatpush1.msra.mxu0 0.0
        %2723 = vmatprep.subr.mxu0 0.0
        %2724 = vmatpush1.msra.mxu0 0.0
        %2725 = vmatprep.subr.mxu0 0.0
        %2726 = vmatpush1.msra.mxu0 0.0
        %2727 = vmatprep.subr.mxu0 0.0
        %2728 = vmatpush1.msra.mxu0 0.0
        %2729 = vmatprep.subr.mxu0 0.0
        %2730 = vmatpush1.msra.mxu0 0.0
        %2731 = vmatprep.subr.mxu0 0.0
        %2732 = vmatpush1.msra.mxu0 0.0
        %2733 = vmatprep.subr.mxu0 0.0
        %2734 = vmatpush1.msra.mxu0 0.0
        %2735 = vmatprep.subr.mxu0 0.0
        %v2736 = vand.u32 %v341, 4294901760
        %v2737 = vsub.f32 %v341, %v2736
        %v2738 = vand.u32 %v2737, 4294901760
        %v2739 = vsub.f32 %v2737, %v2738
        %v2740 = vand.u32 %v2739, 4294901760
        %2741 = vmatpush1.msra.mxu0 %v2740
        %2742 = vmatprep.subr.mxu0 0.0
        %v2743 = vand.u32 %v340, 4294901760
        %v2744 = vsub.f32 %v340, %v2743
        %v2745 = vand.u32 %v2744, 4294901760
        %v2746 = vsub.f32 %v2744, %v2745
        %v2747 = vand.u32 %v2746, 4294901760
        %2748 = vmatpush1.msra.mxu0 %v2747
        %2749 = vmatprep.subr.mxu0 0.0
        %2750 = vmatpush2.msra.mxu0 0.0
        %2751 = vmatprep.subr.mxu0 0.0
        %2752 = vmatpush2.msra.mxu0 0.0
        %2753 = vmatprep.subr.mxu0 0.0
        %2754 = vmatpush2.msra.mxu0 0.0
        %2755 = vmatprep.subr.mxu0 0.0
        %2756 = vmatpush2.msra.mxu0 0.0
        %2757 = vmatprep.subr.mxu0 0.0
        %2758 = vmatpush2.msra.mxu0 0.0
        %2759 = vmatprep.subr.mxu0 0.0
        %2760 = vmatpush2.msra.mxu0 0.0
        %2761 = vmatprep.subr.mxu0 0.0
        %2762 = vmatpush2.msra.mxu0 0.0
        %2763 = vmatprep.subr.mxu0 0.0
        %2764 = vmatpush2.msra.mxu0 0.0
        %2765 = vmatprep.subr.mxu0 0.0
        %2766 = vmatpush2.msra.mxu0 0.0
        %2767 = vmatprep.subr.mxu0 0.0
        %2768 = vmatpush2.msra.mxu0 0.0
        %2769 = vmatprep.subr.mxu0 0.0
        %2770 = vmatpush2.msra.mxu0 0.0
        %2771 = vmatprep.subr.mxu0 0.0
        %2772 = vmatpush2.msra.mxu0 0.0
        %2773 = vmatprep.subr.mxu0 0.0
        %2774 = vmatpush2.msra.mxu0 0.0
        %2775 = vmatprep.subr.mxu0 0.0
        %2776 = vmatpush2.msra.mxu0 0.0
        %2777 = vmatprep.subr.mxu0 0.0
        %2778 = vmatpush2.msra.mxu0 0.0
        %2779 = vmatprep.subr.mxu0 0.0
        %2780 = vmatpush2.msra.mxu0 0.0
        %2781 = vmatprep.mubr.f32.mxu0 0.0
        %v2782 = vand.u32 %v2628, 4294901760
        %2783 = vmatmul.mubr.f32.gmra.mxu0 %v2782
        %v2784 = vpop.f32.mrf.mxu0
        %v2785 = vadd.f32 %v2704, %v2784
        %v2786 = vpop.f32.mrf.mxu0
        %2787 = vdwg.mxu0
        %2788 = vmatprep.subr.mxu0 0.0
        %2789 = vmatpush1.msra.mxu0 0.0
        %2790 = vmatprep.subr.mxu0 0.0
        %2791 = vmatpush1.msra.mxu0 0.0
        %2792 = vmatprep.subr.mxu0 0.0
        %2793 = vmatpush1.msra.mxu0 0.0
        %2794 = vmatprep.subr.mxu0 0.0
        %2795 = vmatpush1.msra.mxu0 0.0
        %2796 = vmatprep.subr.mxu0 0.0
        %2797 = vmatpush1.msra.mxu0 0.0
        %2798 = vmatprep.subr.mxu0 0.0
        %2799 = vmatpush1.msra.mxu0 0.0
        %2800 = vmatprep.subr.mxu0 0.0
        %2801 = vmatpush1.msra.mxu0 0.0
        %2802 = vmatprep.subr.mxu0 0.0
        %2803 = vmatpush1.msra.mxu0 0.0
        %2804 = vmatprep.subr.mxu0 0.0
        %2805 = vmatpush1.msra.mxu0 0.0
        %2806 = vmatprep.subr.mxu0 0.0
        %2807 = vmatpush1.msra.mxu0 0.0
        %2808 = vmatprep.subr.mxu0 0.0
        %2809 = vmatpush1.msra.mxu0 0.0
        %2810 = vmatprep.subr.mxu0 0.0
        %2811 = vmatpush1.msra.mxu0 0.0
        %2812 = vmatprep.subr.mxu0 0.0
        %2813 = vmatpush1.msra.mxu0 0.0
        %2814 = vmatprep.subr.mxu0 0.0
        %2815 = vmatpush1.msra.mxu0 0.0
        %2816 = vmatprep.subr.mxu0 0.0
        %v2817 = vand.u32 %v341, 4294901760
        %v2818 = vsub.f32 %v341, %v2817
        %2819 = vmatpush1.msra.mxu0 %v2818
        %2820 = vmatprep.subr.mxu0 0.0
        %v2821 = vand.u32 %v340, 4294901760
        %v2822 = vsub.f32 %v340, %v2821
        %2823 = vmatpush1.msra.mxu0 %v2822
        %2824 = vmatprep.subr.mxu0 0.0
        %2825 = vmatpush2.msra.mxu0 0.0
        %2826 = vmatprep.subr.mxu0 0.0
        %2827 = vmatpush2.msra.mxu0 0.0
        %2828 = vmatprep.subr.mxu0 0.0
        %2829 = vmatpush2.msra.mxu0 0.0
        %2830 = vmatprep.subr.mxu0 0.0
        %2831 = vmatpush2.msra.mxu0 0.0
        %2832 = vmatprep.subr.mxu0 0.0
        %2833 = vmatpush2.msra.mxu0 0.0
        %2834 = vmatprep.subr.mxu0 0.0
        %2835 = vmatpush2.msra.mxu0 0.0
        %2836 = vmatprep.subr.mxu0 0.0
        %2837 = vmatpush2.msra.mxu0 0.0
        %2838 = vmatprep.subr.mxu0 0.0
        %2839 = vmatpush2.msra.mxu0 0.0
        %2840 = vmatprep.subr.mxu0 0.0
        %2841 = vmatpush2.msra.mxu0 0.0
        %2842 = vmatprep.subr.mxu0 0.0
        %2843 = vmatpush2.msra.mxu0 0.0
        %2844 = vmatprep.subr.mxu0 0.0
        %2845 = vmatpush2.msra.mxu0 0.0
        %2846 = vmatprep.subr.mxu0 0.0
        %2847 = vmatpush2.msra.mxu0 0.0
        %2848 = vmatprep.subr.mxu0 0.0
        %2849 = vmatpush2.msra.mxu0 0.0
        %2850 = vmatprep.subr.mxu0 0.0
        %2851 = vmatpush2.msra.mxu0 0.0
        %2852 = vmatprep.subr.mxu0 0.0
        %2853 = vmatpush2.msra.mxu0 0.0
        %2854 = vmatprep.subr.mxu0 0.0
        %2855 = vmatpush2.msra.mxu0 0.0
        %2856 = vmatprep.mubr.f32.mxu0 0.0
        %v2857 = vand.u32 %v2628, 4294901760
        %v2858 = vsub.f32 %v2628, %v2857
        %2859 = vmatmul.mubr.f32.gmra.mxu0 %v2858
        %v2860 = vpop.f32.mrf.mxu0
        %v2861 = vadd.f32 %v2785, %v2860
        %v2862 = vpop.f32.mrf.mxu0
        %2863 = vdwg.mxu0
        %2864 = vmatprep.subr.mxu0 0.0
        %2865 = vmatpush1.msra.mxu0 0.0
        %2866 = vmatprep.subr.mxu0 0.0
        %2867 = vmatpush1.msra.mxu0 0.0
        %2868 = vmatprep.subr.mxu0 0.0
        %2869 = vmatpush1.msra.mxu0 0.0
        %2870 = vmatprep.subr.mxu0 0.0
        %2871 = vmatpush1.msra.mxu0 0.0
        %2872 = vmatprep.subr.mxu0 0.0
        %2873 = vmatpush1.msra.mxu0 0.0
        %2874 = vmatprep.subr.mxu0 0.0
        %2875 = vmatpush1.msra.mxu0 0.0
        %2876 = vmatprep.subr.mxu0 0.0
        %2877 = vmatpush1.msra.mxu0 0.0
        %2878 = vmatprep.subr.mxu0 0.0
        %2879 = vmatpush1.msra.mxu0 0.0
        %2880 = vmatprep.subr.mxu0 0.0
        %2881 = vmatpush1.msra.mxu0 0.0
        %2882 = vmatprep.subr.mxu0 0.0
        %2883 = vmatpush1.msra.mxu0 0.0
        %2884 = vmatprep.subr.mxu0 0.0
        %2885 = vmatpush1.msra.mxu0 0.0
        %2886 = vmatprep.subr.mxu0 0.0
        %2887 = vmatpush1.msra.mxu0 0.0
        %2888 = vmatprep.subr.mxu0 0.0
        %2889 = vmatpush1.msra.mxu0 0.0
        %2890 = vmatprep.subr.mxu0 0.0
        %2891 = vmatpush1.msra.mxu0 0.0
        %2892 = vmatprep.subr.mxu0 0.0
        %v2893 = vand.u32 %v341, 4294901760
        %2894 = vmatpush1.msra.mxu0 %v2893
        %2895 = vmatprep.subr.mxu0 0.0
        %v2896 = vand.u32 %v340, 4294901760
        %2897 = vmatpush1.msra.mxu0 %v2896
        %2898 = vmatprep.subr.mxu0 0.0
        %2899 = vmatpush2.msra.mxu0 0.0
        %2900 = vmatprep.subr.mxu0 0.0
        %2901 = vmatpush2.msra.mxu0 0.0
        %2902 = vmatprep.subr.mxu0 0.0
        %2903 = vmatpush2.msra.mxu0 0.0
        %2904 = vmatprep.subr.mxu0 0.0
        %2905 = vmatpush2.msra.mxu0 0.0
        %2906 = vmatprep.subr.mxu0 0.0
        %2907 = vmatpush2.msra.mxu0 0.0
        %2908 = vmatprep.subr.mxu0 0.0
        %2909 = vmatpush2.msra.mxu0 0.0
        %2910 = vmatprep.subr.mxu0 0.0
        %2911 = vmatpush2.msra.mxu0 0.0
        %2912 = vmatprep.subr.mxu0 0.0
        %2913 = vmatpush2.msra.mxu0 0.0
        %2914 = vmatprep.subr.mxu0 0.0
        %2915 = vmatpush2.msra.mxu0 0.0
        %2916 = vmatprep.subr.mxu0 0.0
        %2917 = vmatpush2.msra.mxu0 0.0
        %2918 = vmatprep.subr.mxu0 0.0
        %2919 = vmatpush2.msra.mxu0 0.0
        %2920 = vmatprep.subr.mxu0 0.0
        %2921 = vmatpush2.msra.mxu0 0.0
        %2922 = vmatprep.subr.mxu0 0.0
        %2923 = vmatpush2.msra.mxu0 0.0
        %2924 = vmatprep.subr.mxu0 0.0
        %2925 = vmatpush2.msra.mxu0 0.0
        %2926 = vmatprep.subr.mxu0 0.0
        %2927 = vmatpush2.msra.mxu0 0.0
        %2928 = vmatprep.subr.mxu0 0.0
        %2929 = vmatpush2.msra.mxu0 0.0
        %2930 = vmatprep.mubr.f32.mxu0 0.0
        %v2931 = vand.u32 %v2628, 4294901760
        %v2932 = vsub.f32 %v2628, %v2931
        %v2933 = vand.u32 %v2932, 4294901760
        %2934 = vmatmul.mubr.f32.gmra.mxu0 %v2933
        %v2935 = vpop.f32.mrf.mxu0
        %v2936 = vadd.f32 %v2861, %v2935
        %v2937 = vpop.f32.mrf.mxu0
        %2938 = vdwg.mxu0
        %2939 = vmatprep.subr.mxu0 0.0
        %2940 = vmatpush1.msra.mxu0 0.0
        %2941 = vmatprep.subr.mxu0 0.0
        %2942 = vmatpush1.msra.mxu0 0.0
        %2943 = vmatprep.subr.mxu0 0.0
        %2944 = vmatpush1.msra.mxu0 0.0
        %2945 = vmatprep.subr.mxu0 0.0
        %2946 = vmatpush1.msra.mxu0 0.0
        %2947 = vmatprep.subr.mxu0 0.0
        %2948 = vmatpush1.msra.mxu0 0.0
        %2949 = vmatprep.subr.mxu0 0.0
        %2950 = vmatpush1.msra.mxu0 0.0
        %2951 = vmatprep.subr.mxu0 0.0
        %2952 = vmatpush1.msra.mxu0 0.0
        %2953 = vmatprep.subr.mxu0 0.0
        %2954 = vmatpush1.msra.mxu0 0.0
        %2955 = vmatprep.subr.mxu0 0.0
        %2956 = vmatpush1.msra.mxu0 0.0
        %2957 = vmatprep.subr.mxu0 0.0
        %2958 = vmatpush1.msra.mxu0 0.0
        %2959 = vmatprep.subr.mxu0 0.0
        %2960 = vmatpush1.msra.mxu0 0.0
        %2961 = vmatprep.subr.mxu0 0.0
        %2962 = vmatpush1.msra.mxu0 0.0
        %2963 = vmatprep.subr.mxu0 0.0
        %2964 = vmatpush1.msra.mxu0 0.0
        %2965 = vmatprep.subr.mxu0 0.0
        %2966 = vmatpush1.msra.mxu0 0.0
        %2967 = vmatprep.subr.mxu0 0.0
        %v2968 = vand.u32 %v341, 4294901760
        %v2969 = vsub.f32 %v341, %v2968
        %v2970 = vand.u32 %v2969, 4294901760
        %2971 = vmatpush1.msra.mxu0 %v2970
        %2972 = vmatprep.subr.mxu0 0.0
        %v2973 = vand.u32 %v340, 4294901760
        %v2974 = vsub.f32 %v340, %v2973
        %v2975 = vand.u32 %v2974, 4294901760
        %2976 = vmatpush1.msra.mxu0 %v2975
        %2977 = vmatprep.subr.mxu0 0.0
        %2978 = vmatpush2.msra.mxu0 0.0
        %2979 = vmatprep.subr.mxu0 0.0
        %2980 = vmatpush2.msra.mxu0 0.0
        %2981 = vmatprep.subr.mxu0 0.0
        %2982 = vmatpush2.msra.mxu0 0.0
        %2983 = vmatprep.subr.mxu0 0.0
        %2984 = vmatpush2.msra.mxu0 0.0
        %2985 = vmatprep.subr.mxu0 0.0
        %2986 = vmatpush2.msra.mxu0 0.0
        %2987 = vmatprep.subr.mxu0 0.0
        %2988 = vmatpush2.msra.mxu0 0.0
        %2989 = vmatprep.subr.mxu0 0.0
        %2990 = vmatpush2.msra.mxu0 0.0
        %2991 = vmatprep.subr.mxu0 0.0
        %2992 = vmatpush2.msra.mxu0 0.0
        %2993 = vmatprep.subr.mxu0 0.0
        %2994 = vmatpush2.msra.mxu0 0.0
        %2995 = vmatprep.subr.mxu0 0.0
        %2996 = vmatpush2.msra.mxu0 0.0
        %2997 = vmatprep.subr.mxu0 0.0
        %2998 = vmatpush2.msra.mxu0 0.0
        %2999 = vmatprep.subr.mxu0 0.0
        %3000 = vmatpush2.msra.mxu0 0.0
        %3001 = vmatprep.subr.mxu0 0.0
        %3002 = vmatpush2.msra.mxu0 0.0
        %3003 = vmatprep.subr.mxu0 0.0
        %3004 = vmatpush2.msra.mxu0 0.0
        %3005 = vmatprep.subr.mxu0 0.0
        %3006 = vmatpush2.msra.mxu0 0.0
        %3007 = vmatprep.subr.mxu0 0.0
        %3008 = vmatpush2.msra.mxu0 0.0
        %3009 = vmatprep.mubr.f32.mxu0 0.0
        %v3010 = vand.u32 %v2628, 4294901760
        %3011 = vmatmul.mubr.f32.gmra.mxu0 %v3010
        %v3012 = vpop.f32.mrf.mxu0
        %v3013 = vadd.f32 %v2936, %v3012
        %v3014 = vpop.f32.mrf.mxu0
        %3015 = vdwg.mxu0
        %3016 = vmatprep.subr.mxu0 0.0
        %3017 = vmatpush1.msra.mxu0 0.0
        %3018 = vmatprep.subr.mxu0 0.0
        %3019 = vmatpush1.msra.mxu0 0.0
        %3020 = vmatprep.subr.mxu0 0.0
        %3021 = vmatpush1.msra.mxu0 0.0
        %3022 = vmatprep.subr.mxu0 0.0
        %3023 = vmatpush1.msra.mxu0 0.0
        %3024 = vmatprep.subr.mxu0 0.0
        %3025 = vmatpush1.msra.mxu0 0.0
        %3026 = vmatprep.subr.mxu0 0.0
        %3027 = vmatpush1.msra.mxu0 0.0
        %3028 = vmatprep.subr.mxu0 0.0
        %3029 = vmatpush1.msra.mxu0 0.0
        %3030 = vmatprep.subr.mxu0 0.0
        %3031 = vmatpush1.msra.mxu0 0.0
        %3032 = vmatprep.subr.mxu0 0.0
        %3033 = vmatpush1.msra.mxu0 0.0
        %3034 = vmatprep.subr.mxu0 0.0
        %3035 = vmatpush1.msra.mxu0 0.0
        %3036 = vmatprep.subr.mxu0 0.0
        %3037 = vmatpush1.msra.mxu0 0.0
        %3038 = vmatprep.subr.mxu0 0.0
        %3039 = vmatpush1.msra.mxu0 0.0
        %3040 = vmatprep.subr.mxu0 0.0
        %3041 = vmatpush1.msra.mxu0 0.0
        %3042 = vmatprep.subr.mxu0 0.0
        %3043 = vmatpush1.msra.mxu0 0.0
        %3044 = vmatprep.subr.mxu0 0.0
        %v3045 = vand.u32 %v341, 4294901760
        %3046 = vmatpush1.msra.mxu0 %v3045
        %3047 = vmatprep.subr.mxu0 0.0
        %v3048 = vand.u32 %v340, 4294901760
        %3049 = vmatpush1.msra.mxu0 %v3048
        %3050 = vmatprep.subr.mxu0 0.0
        %3051 = vmatpush2.msra.mxu0 0.0
        %3052 = vmatprep.subr.mxu0 0.0
        %3053 = vmatpush2.msra.mxu0 0.0
        %3054 = vmatprep.subr.mxu0 0.0
        %3055 = vmatpush2.msra.mxu0 0.0
        %3056 = vmatprep.subr.mxu0 0.0
        %3057 = vmatpush2.msra.mxu0 0.0
        %3058 = vmatprep.subr.mxu0 0.0
        %3059 = vmatpush2.msra.mxu0 0.0
        %3060 = vmatprep.subr.mxu0 0.0
        %3061 = vmatpush2.msra.mxu0 0.0
        %3062 = vmatprep.subr.mxu0 0.0
        %3063 = vmatpush2.msra.mxu0 0.0
        %3064 = vmatprep.subr.mxu0 0.0
        %3065 = vmatpush2.msra.mxu0 0.0
        %3066 = vmatprep.subr.mxu0 0.0
        %3067 = vmatpush2.msra.mxu0 0.0
        %3068 = vmatprep.subr.mxu0 0.0
        %3069 = vmatpush2.msra.mxu0 0.0
        %3070 = vmatprep.subr.mxu0 0.0
        %3071 = vmatpush2.msra.mxu0 0.0
        %3072 = vmatprep.subr.mxu0 0.0
        %3073 = vmatpush2.msra.mxu0 0.0
        %3074 = vmatprep.subr.mxu0 0.0
        %3075 = vmatpush2.msra.mxu0 0.0
        %3076 = vmatprep.subr.mxu0 0.0
        %3077 = vmatpush2.msra.mxu0 0.0
        %3078 = vmatprep.subr.mxu0 0.0
        %3079 = vmatpush2.msra.mxu0 0.0
        %3080 = vmatprep.subr.mxu0 0.0
        %3081 = vmatpush2.msra.mxu0 0.0
        %3082 = vmatprep.mubr.f32.mxu0 0.0
        %v3083 = vand.u32 %v2628, 4294901760
        %3084 = vmatmul.mubr.f32.gmra.mxu0 %v3083
        %v3085 = vpop.f32.mrf.mxu0
        %v3086 = vadd.f32 %v3013, %v3085
        %v3087 = vpop.f32.mrf.mxu0
        %3088 = vdwg.mxu0
        %v3090 = vsel %vm525, %v2626, 0
        %3092 = vmatprep.subr.mxu0 0.0
        %3093 = vmatpush1.msra.mxu0 0.0
        %3094 = vmatprep.subr.mxu0 0.0
        %3095 = vmatpush1.msra.mxu0 0.0
        %3096 = vmatprep.subr.mxu0 0.0
        %3097 = vmatpush1.msra.mxu0 0.0
        %3098 = vmatprep.subr.mxu0 0.0
        %3099 = vmatpush1.msra.mxu0 0.0
        %3100 = vmatprep.subr.mxu0 0.0
        %3101 = vmatpush1.msra.mxu0 0.0
        %3102 = vmatprep.subr.mxu0 0.0
        %3103 = vmatpush1.msra.mxu0 0.0
        %3104 = vmatprep.subr.mxu0 0.0
        %3105 = vmatpush1.msra.mxu0 0.0
        %3106 = vmatprep.subr.mxu0 0.0
        %3107 = vmatpush1.msra.mxu0 0.0
        %3108 = vmatprep.subr.mxu0 0.0
        %3109 = vmatpush1.msra.mxu0 0.0
        %3110 = vmatprep.subr.mxu0 0.0
        %3111 = vmatpush1.msra.mxu0 0.0
        %3112 = vmatprep.subr.mxu0 0.0
        %3113 = vmatpush1.msra.mxu0 0.0
        %3114 = vmatprep.subr.mxu0 0.0
        %3115 = vmatpush1.msra.mxu0 0.0
        %3116 = vmatprep.subr.mxu0 0.0
        %3117 = vmatpush1.msra.mxu0 0.0
        %3118 = vmatprep.subr.mxu0 0.0
        %3119 = vmatpush1.msra.mxu0 0.0
        %3120 = vmatprep.subr.mxu0 0.0
        %v3121 = vand.u32 %v341, 4294901760
        %3122 = vmatpush1.msra.mxu0 %v3121
        %3123 = vmatprep.subr.mxu0 0.0
        %v3124 = vand.u32 %v340, 4294901760
        %3125 = vmatpush1.msra.mxu0 %v3124
        %3126 = vmatprep.subr.mxu0 0.0
        %3127 = vmatpush2.msra.mxu0 0.0
        %3128 = vmatprep.subr.mxu0 0.0
        %3129 = vmatpush2.msra.mxu0 0.0
        %3130 = vmatprep.subr.mxu0 0.0
        %3131 = vmatpush2.msra.mxu0 0.0
        %3132 = vmatprep.subr.mxu0 0.0
        %3133 = vmatpush2.msra.mxu0 0.0
        %3134 = vmatprep.subr.mxu0 0.0
        %3135 = vmatpush2.msra.mxu0 0.0
        %3136 = vmatprep.subr.mxu0 0.0
        %3137 = vmatpush2.msra.mxu0 0.0
        %3138 = vmatprep.subr.mxu0 0.0
        %3139 = vmatpush2.msra.mxu0 0.0
        %3140 = vmatprep.subr.mxu0 0.0
        %3141 = vmatpush2.msra.mxu0 0.0
        %3142 = vmatprep.subr.mxu0 0.0
        %3143 = vmatpush2.msra.mxu0 0.0
        %3144 = vmatprep.subr.mxu0 0.0
        %3145 = vmatpush2.msra.mxu0 0.0
        %3146 = vmatprep.subr.mxu0 0.0
        %3147 = vmatpush2.msra.mxu0 0.0
        %3148 = vmatprep.subr.mxu0 0.0
        %3149 = vmatpush2.msra.mxu0 0.0
        %3150 = vmatprep.subr.mxu0 0.0
        %3151 = vmatpush2.msra.mxu0 0.0
        %3152 = vmatprep.subr.mxu0 0.0
        %3153 = vmatpush2.msra.mxu0 0.0
        %3154 = vmatprep.subr.mxu0 0.0
        %3155 = vmatpush2.msra.mxu0 0.0
        %3156 = vmatprep.subr.mxu0 0.0
        %3157 = vmatpush2.msra.mxu0 0.0
        %3158 = vmatprep.mubr.f32.mxu0 0.0
        %v3159 = vand.u32 %v3090, 4294901760
        %v3160 = vsub.f32 %v3090, %v3159
        %v3161 = vand.u32 %v3160, 4294901760
        %v3162 = vsub.f32 %v3160, %v3161
        %v3163 = vand.u32 %v3162, 4294901760
        %3164 = vmatmul.mubr.f32.gmra.mxu0 %v3163
        %v3165 = vpop.f32.mrf.mxu0
        %v3166 = vadd.f32 0.0, %v3165
        %v3167 = vpop.f32.mrf.mxu0
        %3168 = vdwg.mxu0
        %3169 = vmatprep.subr.mxu0 0.0
        %3170 = vmatpush1.msra.mxu0 0.0
        %3171 = vmatprep.subr.mxu0 0.0
        %3172 = vmatpush1.msra.mxu0 0.0
        %3173 = vmatprep.subr.mxu0 0.0
        %3174 = vmatpush1.msra.mxu0 0.0
        %3175 = vmatprep.subr.mxu0 0.0
        %3176 = vmatpush1.msra.mxu0 0.0
        %3177 = vmatprep.subr.mxu0 0.0
        %3178 = vmatpush1.msra.mxu0 0.0
        %3179 = vmatprep.subr.mxu0 0.0
        %3180 = vmatpush1.msra.mxu0 0.0
        %3181 = vmatprep.subr.mxu0 0.0
        %3182 = vmatpush1.msra.mxu0 0.0
        %3183 = vmatprep.subr.mxu0 0.0
        %3184 = vmatpush1.msra.mxu0 0.0
        %3185 = vmatprep.subr.mxu0 0.0
        %3186 = vmatpush1.msra.mxu0 0.0
        %3187 = vmatprep.subr.mxu0 0.0
        %3188 = vmatpush1.msra.mxu0 0.0
        %3189 = vmatprep.subr.mxu0 0.0
        %3190 = vmatpush1.msra.mxu0 0.0
        %3191 = vmatprep.subr.mxu0 0.0
        %3192 = vmatpush1.msra.mxu0 0.0
        %3193 = vmatprep.subr.mxu0 0.0
        %3194 = vmatpush1.msra.mxu0 0.0
        %3195 = vmatprep.subr.mxu0 0.0
        %3196 = vmatpush1.msra.mxu0 0.0
        %3197 = vmatprep.subr.mxu0 0.0
        %v3198 = vand.u32 %v341, 4294901760
        %v3199 = vsub.f32 %v341, %v3198
        %v3200 = vand.u32 %v3199, 4294901760
        %v3201 = vsub.f32 %v3199, %v3200
        %v3202 = vand.u32 %v3201, 4294901760
        %3203 = vmatpush1.msra.mxu0 %v3202
        %3204 = vmatprep.subr.mxu0 0.0
        %v3205 = vand.u32 %v340, 4294901760
        %v3206 = vsub.f32 %v340, %v3205
        %v3207 = vand.u32 %v3206, 4294901760
        %v3208 = vsub.f32 %v3206, %v3207
        %v3209 = vand.u32 %v3208, 4294901760
        %3210 = vmatpush1.msra.mxu0 %v3209
        %3211 = vmatprep.subr.mxu0 0.0
        %3212 = vmatpush2.msra.mxu0 0.0
        %3213 = vmatprep.subr.mxu0 0.0
        %3214 = vmatpush2.msra.mxu0 0.0
        %3215 = vmatprep.subr.mxu0 0.0
        %3216 = vmatpush2.msra.mxu0 0.0
        %3217 = vmatprep.subr.mxu0 0.0
        %3218 = vmatpush2.msra.mxu0 0.0
        %3219 = vmatprep.subr.mxu0 0.0
        %3220 = vmatpush2.msra.mxu0 0.0
        %3221 = vmatprep.subr.mxu0 0.0
        %3222 = vmatpush2.msra.mxu0 0.0
        %3223 = vmatprep.subr.mxu0 0.0
        %3224 = vmatpush2.msra.mxu0 0.0
        %3225 = vmatprep.subr.mxu0 0.0
        %3226 = vmatpush2.msra.mxu0 0.0
        %3227 = vmatprep.subr.mxu0 0.0
        %3228 = vmatpush2.msra.mxu0 0.0
        %3229 = vmatprep.subr.mxu0 0.0
        %3230 = vmatpush2.msra.mxu0 0.0
        %3231 = vmatprep.subr.mxu0 0.0
        %3232 = vmatpush2.msra.mxu0 0.0
        %3233 = vmatprep.subr.mxu0 0.0
        %3234 = vmatpush2.msra.mxu0 0.0
        %3235 = vmatprep.subr.mxu0 0.0
        %3236 = vmatpush2.msra.mxu0 0.0
        %3237 = vmatprep.subr.mxu0 0.0
        %3238 = vmatpush2.msra.mxu0 0.0
        %3239 = vmatprep.subr.mxu0 0.0
        %3240 = vmatpush2.msra.mxu0 0.0
        %3241 = vmatprep.subr.mxu0 0.0
        %3242 = vmatpush2.msra.mxu0 0.0
        %3243 = vmatprep.mubr.f32.mxu0 0.0
        %v3244 = vand.u32 %v3090, 4294901760
        %3245 = vmatmul.mubr.f32.gmra.mxu0 %v3244
        %v3246 = vpop.f32.mrf.mxu0
        %v3247 = vadd.f32 %v3166, %v3246
        %v3248 = vpop.f32.mrf.mxu0
        %3249 = vdwg.mxu0
        %3250 = vmatprep.subr.mxu0 0.0
        %3251 = vmatpush1.msra.mxu0 0.0
        %3252 = vmatprep.subr.mxu0 0.0
        %3253 = vmatpush1.msra.mxu0 0.0
        %3254 = vmatprep.subr.mxu0 0.0
        %3255 = vmatpush1.msra.mxu0 0.0
        %3256 = vmatprep.subr.mxu0 0.0
        %3257 = vmatpush1.msra.mxu0 0.0
        %3258 = vmatprep.subr.mxu0 0.0
        %3259 = vmatpush1.msra.mxu0 0.0
        %3260 = vmatprep.subr.mxu0 0.0
        %3261 = vmatpush1.msra.mxu0 0.0
        %3262 = vmatprep.subr.mxu0 0.0
        %3263 = vmatpush1.msra.mxu0 0.0
        %3264 = vmatprep.subr.mxu0 0.0
        %3265 = vmatpush1.msra.mxu0 0.0
        %3266 = vmatprep.subr.mxu0 0.0
        %3267 = vmatpush1.msra.mxu0 0.0
        %3268 = vmatprep.subr.mxu0 0.0
        %3269 = vmatpush1.msra.mxu0 0.0
        %3270 = vmatprep.subr.mxu0 0.0
        %3271 = vmatpush1.msra.mxu0 0.0
        %3272 = vmatprep.subr.mxu0 0.0
        %3273 = vmatpush1.msra.mxu0 0.0
        %3274 = vmatprep.subr.mxu0 0.0
        %3275 = vmatpush1.msra.mxu0 0.0
        %3276 = vmatprep.subr.mxu0 0.0
        %3277 = vmatpush1.msra.mxu0 0.0
        %3278 = vmatprep.subr.mxu0 0.0
        %v3279 = vand.u32 %v341, 4294901760
        %v3280 = vsub.f32 %v341, %v3279
        %3281 = vmatpush1.msra.mxu0 %v3280
        %3282 = vmatprep.subr.mxu0 0.0
        %v3283 = vand.u32 %v340, 4294901760
        %v3284 = vsub.f32 %v340, %v3283
        %3285 = vmatpush1.msra.mxu0 %v3284
        %3286 = vmatprep.subr.mxu0 0.0
        %3287 = vmatpush2.msra.mxu0 0.0
        %3288 = vmatprep.subr.mxu0 0.0
        %3289 = vmatpush2.msra.mxu0 0.0
        %3290 = vmatprep.subr.mxu0 0.0
        %3291 = vmatpush2.msra.mxu0 0.0
        %3292 = vmatprep.subr.mxu0 0.0
        %3293 = vmatpush2.msra.mxu0 0.0
        %3294 = vmatprep.subr.mxu0 0.0
        %3295 = vmatpush2.msra.mxu0 0.0
        %3296 = vmatprep.subr.mxu0 0.0
        %3297 = vmatpush2.msra.mxu0 0.0
        %3298 = vmatprep.subr.mxu0 0.0
        %3299 = vmatpush2.msra.mxu0 0.0
        %3300 = vmatprep.subr.mxu0 0.0
        %3301 = vmatpush2.msra.mxu0 0.0
        %3302 = vmatprep.subr.mxu0 0.0
        %3303 = vmatpush2.msra.mxu0 0.0
        %3304 = vmatprep.subr.mxu0 0.0
        %3305 = vmatpush2.msra.mxu0 0.0
        %3306 = vmatprep.subr.mxu0 0.0
        %3307 = vmatpush2.msra.mxu0 0.0
        %3308 = vmatprep.subr.mxu0 0.0
        %3309 = vmatpush2.msra.mxu0 0.0
        %3310 = vmatprep.subr.mxu0 0.0
        %3311 = vmatpush2.msra.mxu0 0.0
        %3312 = vmatprep.subr.mxu0 0.0
        %3313 = vmatpush2.msra.mxu0 0.0
        %3314 = vmatprep.subr.mxu0 0.0
        %3315 = vmatpush2.msra.mxu0 0.0
        %3316 = vmatprep.subr.mxu0 0.0
        %3317 = vmatpush2.msra.mxu0 0.0
        %3318 = vmatprep.mubr.f32.mxu0 0.0
        %v3319 = vand.u32 %v3090, 4294901760
        %v3320 = vsub.f32 %v3090, %v3319
        %3321 = vmatmul.mubr.f32.gmra.mxu0 %v3320
        %v3322 = vpop.f32.mrf.mxu0
        %v3323 = vadd.f32 %v3247, %v3322
        %v3324 = vpop.f32.mrf.mxu0
        %3325 = vdwg.mxu0
        %3326 = vmatprep.subr.mxu0 0.0
        %3327 = vmatpush1.msra.mxu0 0.0
        %3328 = vmatprep.subr.mxu0 0.0
        %3329 = vmatpush1.msra.mxu0 0.0
        %3330 = vmatprep.subr.mxu0 0.0
        %3331 = vmatpush1.msra.mxu0 0.0
        %3332 = vmatprep.subr.mxu0 0.0
        %3333 = vmatpush1.msra.mxu0 0.0
        %3334 = vmatprep.subr.mxu0 0.0
        %3335 = vmatpush1.msra.mxu0 0.0
        %3336 = vmatprep.subr.mxu0 0.0
        %3337 = vmatpush1.msra.mxu0 0.0
        %3338 = vmatprep.subr.mxu0 0.0
        %3339 = vmatpush1.msra.mxu0 0.0
        %3340 = vmatprep.subr.mxu0 0.0
        %3341 = vmatpush1.msra.mxu0 0.0
        %3342 = vmatprep.subr.mxu0 0.0
        %3343 = vmatpush1.msra.mxu0 0.0
        %3344 = vmatprep.subr.mxu0 0.0
        %3345 = vmatpush1.msra.mxu0 0.0
        %3346 = vmatprep.subr.mxu0 0.0
        %3347 = vmatpush1.msra.mxu0 0.0
        %3348 = vmatprep.subr.mxu0 0.0
        %3349 = vmatpush1.msra.mxu0 0.0
        %3350 = vmatprep.subr.mxu0 0.0
        %3351 = vmatpush1.msra.mxu0 0.0
        %3352 = vmatprep.subr.mxu0 0.0
        %3353 = vmatpush1.msra.mxu0 0.0
        %3354 = vmatprep.subr.mxu0 0.0
        %v3355 = vand.u32 %v341, 4294901760
        %3356 = vmatpush1.msra.mxu0 %v3355
        %3357 = vmatprep.subr.mxu0 0.0
        %v3358 = vand.u32 %v340, 4294901760
        %3359 = vmatpush1.msra.mxu0 %v3358
        %3360 = vmatprep.subr.mxu0 0.0
        %3361 = vmatpush2.msra.mxu0 0.0
        %3362 = vmatprep.subr.mxu0 0.0
        %3363 = vmatpush2.msra.mxu0 0.0
        %3364 = vmatprep.subr.mxu0 0.0
        %3365 = vmatpush2.msra.mxu0 0.0
        %3366 = vmatprep.subr.mxu0 0.0
        %3367 = vmatpush2.msra.mxu0 0.0
        %3368 = vmatprep.subr.mxu0 0.0
        %3369 = vmatpush2.msra.mxu0 0.0
        %3370 = vmatprep.subr.mxu0 0.0
        %3371 = vmatpush2.msra.mxu0 0.0
        %3372 = vmatprep.subr.mxu0 0.0
        %3373 = vmatpush2.msra.mxu0 0.0
        %3374 = vmatprep.subr.mxu0 0.0
        %3375 = vmatpush2.msra.mxu0 0.0
        %3376 = vmatprep.subr.mxu0 0.0
        %3377 = vmatpush2.msra.mxu0 0.0
        %3378 = vmatprep.subr.mxu0 0.0
        %3379 = vmatpush2.msra.mxu0 0.0
        %3380 = vmatprep.subr.mxu0 0.0
        %3381 = vmatpush2.msra.mxu0 0.0
        %3382 = vmatprep.subr.mxu0 0.0
        %3383 = vmatpush2.msra.mxu0 0.0
        %3384 = vmatprep.subr.mxu0 0.0
        %3385 = vmatpush2.msra.mxu0 0.0
        %3386 = vmatprep.subr.mxu0 0.0
        %3387 = vmatpush2.msra.mxu0 0.0
        %3388 = vmatprep.subr.mxu0 0.0
        %3389 = vmatpush2.msra.mxu0 0.0
        %3390 = vmatprep.subr.mxu0 0.0
        %3391 = vmatpush2.msra.mxu0 0.0
        %3392 = vmatprep.mubr.f32.mxu0 0.0
        %v3393 = vand.u32 %v3090, 4294901760
        %v3394 = vsub.f32 %v3090, %v3393
        %v3395 = vand.u32 %v3394, 4294901760
        %3396 = vmatmul.mubr.f32.gmra.mxu0 %v3395
        %v3397 = vpop.f32.mrf.mxu0
        %v3398 = vadd.f32 %v3323, %v3397
        %v3399 = vpop.f32.mrf.mxu0
        %3400 = vdwg.mxu0
        %3401 = vmatprep.subr.mxu0 0.0
        %3402 = vmatpush1.msra.mxu0 0.0
        %3403 = vmatprep.subr.mxu0 0.0
        %3404 = vmatpush1.msra.mxu0 0.0
        %3405 = vmatprep.subr.mxu0 0.0
        %3406 = vmatpush1.msra.mxu0 0.0
        %3407 = vmatprep.subr.mxu0 0.0
        %3408 = vmatpush1.msra.mxu0 0.0
        %3409 = vmatprep.subr.mxu0 0.0
        %3410 = vmatpush1.msra.mxu0 0.0
        %3411 = vmatprep.subr.mxu0 0.0
        %3412 = vmatpush1.msra.mxu0 0.0
        %3413 = vmatprep.subr.mxu0 0.0
        %3414 = vmatpush1.msra.mxu0 0.0
        %3415 = vmatprep.subr.mxu0 0.0
        %3416 = vmatpush1.msra.mxu0 0.0
        %3417 = vmatprep.subr.mxu0 0.0
        %3418 = vmatpush1.msra.mxu0 0.0
        %3419 = vmatprep.subr.mxu0 0.0
        %3420 = vmatpush1.msra.mxu0 0.0
        %3421 = vmatprep.subr.mxu0 0.0
        %3422 = vmatpush1.msra.mxu0 0.0
        %3423 = vmatprep.subr.mxu0 0.0
        %3424 = vmatpush1.msra.mxu0 0.0
        %3425 = vmatprep.subr.mxu0 0.0
        %3426 = vmatpush1.msra.mxu0 0.0
        %3427 = vmatprep.subr.mxu0 0.0
        %3428 = vmatpush1.msra.mxu0 0.0
        %3429 = vmatprep.subr.mxu0 0.0
        %v3430 = vand.u32 %v341, 4294901760
        %v3431 = vsub.f32 %v341, %v3430
        %v3432 = vand.u32 %v3431, 4294901760
        %3433 = vmatpush1.msra.mxu0 %v3432
        %3434 = vmatprep.subr.mxu0 0.0
        %v3435 = vand.u32 %v340, 4294901760
        %v3436 = vsub.f32 %v340, %v3435
        %v3437 = vand.u32 %v3436, 4294901760
        %3438 = vmatpush1.msra.mxu0 %v3437
        %3439 = vmatprep.subr.mxu0 0.0
        %3440 = vmatpush2.msra.mxu0 0.0
        %3441 = vmatprep.subr.mxu0 0.0
        %3442 = vmatpush2.msra.mxu0 0.0
        %3443 = vmatprep.subr.mxu0 0.0
        %3444 = vmatpush2.msra.mxu0 0.0
        %3445 = vmatprep.subr.mxu0 0.0
        %3446 = vmatpush2.msra.mxu0 0.0
        %3447 = vmatprep.subr.mxu0 0.0
        %3448 = vmatpush2.msra.mxu0 0.0
        %3449 = vmatprep.subr.mxu0 0.0
        %3450 = vmatpush2.msra.mxu0 0.0
        %3451 = vmatprep.subr.mxu0 0.0
        %3452 = vmatpush2.msra.mxu0 0.0
        %3453 = vmatprep.subr.mxu0 0.0
        %3454 = vmatpush2.msra.mxu0 0.0
        %3455 = vmatprep.subr.mxu0 0.0
        %3456 = vmatpush2.msra.mxu0 0.0
        %3457 = vmatprep.subr.mxu0 0.0
        %3458 = vmatpush2.msra.mxu0 0.0
        %3459 = vmatprep.subr.mxu0 0.0
        %3460 = vmatpush2.msra.mxu0 0.0
        %3461 = vmatprep.subr.mxu0 0.0
        %3462 = vmatpush2.msra.mxu0 0.0
        %3463 = vmatprep.subr.mxu0 0.0
        %3464 = vmatpush2.msra.mxu0 0.0
        %3465 = vmatprep.subr.mxu0 0.0
        %3466 = vmatpush2.msra.mxu0 0.0
        %3467 = vmatprep.subr.mxu0 0.0
        %3468 = vmatpush2.msra.mxu0 0.0
        %3469 = vmatprep.subr.mxu0 0.0
        %3470 = vmatpush2.msra.mxu0 0.0
        %3471 = vmatprep.mubr.f32.mxu0 0.0
        %v3472 = vand.u32 %v3090, 4294901760
        %3473 = vmatmul.mubr.f32.gmra.mxu0 %v3472
        %v3474 = vpop.f32.mrf.mxu0
        %v3475 = vadd.f32 %v3398, %v3474
        %v3476 = vpop.f32.mrf.mxu0
        %3477 = vdwg.mxu0
        %3478 = vmatprep.subr.mxu0 0.0
        %3479 = vmatpush1.msra.mxu0 0.0
        %3480 = vmatprep.subr.mxu0 0.0
        %3481 = vmatpush1.msra.mxu0 0.0
        %3482 = vmatprep.subr.mxu0 0.0
        %3483 = vmatpush1.msra.mxu0 0.0
        %3484 = vmatprep.subr.mxu0 0.0
        %3485 = vmatpush1.msra.mxu0 0.0
        %3486 = vmatprep.subr.mxu0 0.0
        %3487 = vmatpush1.msra.mxu0 0.0
        %3488 = vmatprep.subr.mxu0 0.0
        %3489 = vmatpush1.msra.mxu0 0.0
        %3490 = vmatprep.subr.mxu0 0.0
        %3491 = vmatpush1.msra.mxu0 0.0
        %3492 = vmatprep.subr.mxu0 0.0
        %3493 = vmatpush1.msra.mxu0 0.0
        %3494 = vmatprep.subr.mxu0 0.0
        %3495 = vmatpush1.msra.mxu0 0.0
        %3496 = vmatprep.subr.mxu0 0.0
        %3497 = vmatpush1.msra.mxu0 0.0
        %3498 = vmatprep.subr.mxu0 0.0
        %3499 = vmatpush1.msra.mxu0 0.0
        %3500 = vmatprep.subr.mxu0 0.0
        %3501 = vmatpush1.msra.mxu0 0.0
        %3502 = vmatprep.subr.mxu0 0.0
        %3503 = vmatpush1.msra.mxu0 0.0
        %3504 = vmatprep.subr.mxu0 0.0
        %3505 = vmatpush1.msra.mxu0 0.0
        %3506 = vmatprep.subr.mxu0 0.0
        %v3507 = vand.u32 %v341, 4294901760
        %3508 = vmatpush1.msra.mxu0 %v3507
        %3509 = vmatprep.subr.mxu0 0.0
        %v3510 = vand.u32 %v340, 4294901760
        %3511 = vmatpush1.msra.mxu0 %v3510
        %3512 = vmatprep.subr.mxu0 0.0
        %3513 = vmatpush2.msra.mxu0 0.0
        %3514 = vmatprep.subr.mxu0 0.0
        %3515 = vmatpush2.msra.mxu0 0.0
        %3516 = vmatprep.subr.mxu0 0.0
        %3517 = vmatpush2.msra.mxu0 0.0
        %3518 = vmatprep.subr.mxu0 0.0
        %3519 = vmatpush2.msra.mxu0 0.0
        %3520 = vmatprep.subr.mxu0 0.0
        %3521 = vmatpush2.msra.mxu0 0.0
        %3522 = vmatprep.subr.mxu0 0.0
        %3523 = vmatpush2.msra.mxu0 0.0
        %3524 = vmatprep.subr.mxu0 0.0
        %3525 = vmatpush2.msra.mxu0 0.0
        %3526 = vmatprep.subr.mxu0 0.0
        %3527 = vmatpush2.msra.mxu0 0.0
        %3528 = vmatprep.subr.mxu0 0.0
        %3529 = vmatpush2.msra.mxu0 0.0
        %3530 = vmatprep.subr.mxu0 0.0
        %3531 = vmatpush2.msra.mxu0 0.0
        %3532 = vmatprep.subr.mxu0 0.0
        %3533 = vmatpush2.msra.mxu0 0.0
        %3534 = vmatprep.subr.mxu0 0.0
        %3535 = vmatpush2.msra.mxu0 0.0
        %3536 = vmatprep.subr.mxu0 0.0
        %3537 = vmatpush2.msra.mxu0 0.0
        %3538 = vmatprep.subr.mxu0 0.0
        %3539 = vmatpush2.msra.mxu0 0.0
        %3540 = vmatprep.subr.mxu0 0.0
        %3541 = vmatpush2.msra.mxu0 0.0
        %3542 = vmatprep.subr.mxu0 0.0
        %3543 = vmatpush2.msra.mxu0 0.0
        %3544 = vmatprep.mubr.f32.mxu0 0.0
        %v3545 = vand.u32 %v3090, 4294901760
        %3546 = vmatmul.mubr.f32.gmra.mxu0 %v3545
        %v3547 = vpop.f32.mrf.mxu0
        %v3548 = vadd.f32 %v3475, %v3547
        %v3549 = vpop.f32.mrf.mxu0
        %3550 = vdwg.mxu0
        %v3551 = vmul.f32 %v3086, 0.03125
        %v3552 = vmul.f32 %v3548, 0.03125
        %v3553 = vmul.f32 %v3551, %v3551
        %v3554 = vsub.f32 %v3552, %v3553
        %v3555 = vmax.f32 %v3554, 0.0
        %v3556 = vadd.f32 %v3555, 1e-05
        %v3557 = vrsqrt.pop %v3556
        %v3559 = vsel %vm371, %v3551, 0
        %3561 = vmatprep.subr.mxu0 0.0
        %3562 = vmatpush1.msra.mxu0 0.0
        %3563 = vmatprep.subr.mxu0 0.0
        %3564 = vmatpush1.msra.mxu0 0.0
        %3565 = vmatprep.subr.mxu0 0.0
        %3566 = vmatpush1.msra.mxu0 0.0
        %3567 = vmatprep.subr.mxu0 0.0
        %3568 = vmatpush1.msra.mxu0 0.0
        %3569 = vmatprep.subr.mxu0 0.0
        %3570 = vmatpush1.msra.mxu0 0.0
        %3571 = vmatprep.subr.mxu0 0.0
        %3572 = vmatpush1.msra.mxu0 0.0
        %3573 = vmatprep.subr.mxu0 0.0
        %3574 = vmatpush1.msra.mxu0 0.0
        %3575 = vmatprep.subr.mxu0 0.0
        %3576 = vmatpush1.msra.mxu0 0.0
        %3577 = vmatprep.subr.mxu0 0.0
        %3578 = vmatpush1.msra.mxu0 0.0
        %3579 = vmatprep.subr.mxu0 0.0
        %3580 = vmatpush1.msra.mxu0 0.0
        %3581 = vmatprep.subr.mxu0 0.0
        %3582 = vmatpush1.msra.mxu0 0.0
        %3583 = vmatprep.subr.mxu0 0.0
        %3584 = vmatpush1.msra.mxu0 0.0
        %3585 = vmatprep.subr.mxu0 0.0
        %3586 = vmatpush1.msra.mxu0 0.0
        %3587 = vmatprep.subr.mxu0 0.0
        %3588 = vmatpush1.msra.mxu0 0.0
        %3589 = vmatprep.subr.mxu0 0.0
        %3590 = vmatpush1.msra.mxu0 0.0
        %3591 = vmatprep.subr.mxu0 0.0
        %v3592 = vand.u32 %v342, 4294901760
        %3593 = vmatpush1.msra.mxu0 %v3592
        %3594 = vmatprep.subr.mxu0 0.0
        %3595 = vmatpush2.msra.mxu0 0.0
        %3596 = vmatprep.subr.mxu0 0.0
        %3597 = vmatpush2.msra.mxu0 0.0
        %3598 = vmatprep.subr.mxu0 0.0
        %3599 = vmatpush2.msra.mxu0 0.0
        %3600 = vmatprep.subr.mxu0 0.0
        %3601 = vmatpush2.msra.mxu0 0.0
        %3602 = vmatprep.subr.mxu0 0.0
        %3603 = vmatpush2.msra.mxu0 0.0
        %3604 = vmatprep.subr.mxu0 0.0
        %3605 = vmatpush2.msra.mxu0 0.0
        %3606 = vmatprep.subr.mxu0 0.0
        %3607 = vmatpush2.msra.mxu0 0.0
        %3608 = vmatprep.subr.mxu0 0.0
        %3609 = vmatpush2.msra.mxu0 0.0
        %3610 = vmatprep.subr.mxu0 0.0
        %3611 = vmatpush2.msra.mxu0 0.0
        %3612 = vmatprep.subr.mxu0 0.0
        %3613 = vmatpush2.msra.mxu0 0.0
        %3614 = vmatprep.subr.mxu0 0.0
        %3615 = vmatpush2.msra.mxu0 0.0
        %3616 = vmatprep.subr.mxu0 0.0
        %3617 = vmatpush2.msra.mxu0 0.0
        %3618 = vmatprep.subr.mxu0 0.0
        %3619 = vmatpush2.msra.mxu0 0.0
        %3620 = vmatprep.subr.mxu0 0.0
        %3621 = vmatpush2.msra.mxu0 0.0
        %3622 = vmatprep.subr.mxu0 0.0
        %3623 = vmatpush2.msra.mxu0 0.0
        %3624 = vmatprep.subr.mxu0 0.0
        %3625 = vmatpush2.msra.mxu0 0.0
        %3626 = vmatprep.mubr.f32.mxu0 0.0
        %v3627 = vand.u32 %v3559, 4294901760
        %v3628 = vsub.f32 %v3559, %v3627
        %v3629 = vand.u32 %v3628, 4294901760
        %v3630 = vsub.f32 %v3628, %v3629
        %v3631 = vand.u32 %v3630, 4294901760
        %3632 = vmatmul.mubr.f32.gmra.mxu0 %v3631
        %v3633 = vpop.f32.mrf.mxu0
        %v3634 = vadd.f32 0.0, %v3633
        %v3635 = vpop.f32.mrf.mxu0
        %3636 = vdwg.mxu0
        %3637 = vmatprep.subr.mxu0 0.0
        %3638 = vmatpush1.msra.mxu0 0.0
        %3639 = vmatprep.subr.mxu0 0.0
        %3640 = vmatpush1.msra.mxu0 0.0
        %3641 = vmatprep.subr.mxu0 0.0
        %3642 = vmatpush1.msra.mxu0 0.0
        %3643 = vmatprep.subr.mxu0 0.0
        %3644 = vmatpush1.msra.mxu0 0.0
        %3645 = vmatprep.subr.mxu0 0.0
        %3646 = vmatpush1.msra.mxu0 0.0
        %3647 = vmatprep.subr.mxu0 0.0
        %3648 = vmatpush1.msra.mxu0 0.0
        %3649 = vmatprep.subr.mxu0 0.0
        %3650 = vmatpush1.msra.mxu0 0.0
        %3651 = vmatprep.subr.mxu0 0.0
        %3652 = vmatpush1.msra.mxu0 0.0
        %3653 = vmatprep.subr.mxu0 0.0
        %3654 = vmatpush1.msra.mxu0 0.0
        %3655 = vmatprep.subr.mxu0 0.0
        %3656 = vmatpush1.msra.mxu0 0.0
        %3657 = vmatprep.subr.mxu0 0.0
        %3658 = vmatpush1.msra.mxu0 0.0
        %3659 = vmatprep.subr.mxu0 0.0
        %3660 = vmatpush1.msra.mxu0 0.0
        %3661 = vmatprep.subr.mxu0 0.0
        %3662 = vmatpush1.msra.mxu0 0.0
        %3663 = vmatprep.subr.mxu0 0.0
        %3664 = vmatpush1.msra.mxu0 0.0
        %3665 = vmatprep.subr.mxu0 0.0
        %3666 = vmatpush1.msra.mxu0 0.0
        %3667 = vmatprep.subr.mxu0 0.0
        %v3668 = vand.u32 %v342, 4294901760
        %v3669 = vsub.f32 %v342, %v3668
        %v3670 = vand.u32 %v3669, 4294901760
        %v3671 = vsub.f32 %v3669, %v3670
        %v3672 = vand.u32 %v3671, 4294901760
        %3673 = vmatpush1.msra.mxu0 %v3672
        %3674 = vmatprep.subr.mxu0 0.0
        %3675 = vmatpush2.msra.mxu0 0.0
        %3676 = vmatprep.subr.mxu0 0.0
        %3677 = vmatpush2.msra.mxu0 0.0
        %3678 = vmatprep.subr.mxu0 0.0
        %3679 = vmatpush2.msra.mxu0 0.0
        %3680 = vmatprep.subr.mxu0 0.0
        %3681 = vmatpush2.msra.mxu0 0.0
        %3682 = vmatprep.subr.mxu0 0.0
        %3683 = vmatpush2.msra.mxu0 0.0
        %3684 = vmatprep.subr.mxu0 0.0
        %3685 = vmatpush2.msra.mxu0 0.0
        %3686 = vmatprep.subr.mxu0 0.0
        %3687 = vmatpush2.msra.mxu0 0.0
        %3688 = vmatprep.subr.mxu0 0.0
        %3689 = vmatpush2.msra.mxu0 0.0
        %3690 = vmatprep.subr.mxu0 0.0
        %3691 = vmatpush2.msra.mxu0 0.0
        %3692 = vmatprep.subr.mxu0 0.0
        %3693 = vmatpush2.msra.mxu0 0.0
        %3694 = vmatprep.subr.mxu0 0.0
        %3695 = vmatpush2.msra.mxu0 0.0
        %3696 = vmatprep.subr.mxu0 0.0
        %3697 = vmatpush2.msra.mxu0 0.0
        %3698 = vmatprep.subr.mxu0 0.0
        %3699 = vmatpush2.msra.mxu0 0.0
        %3700 = vmatprep.subr.mxu0 0.0
        %3701 = vmatpush2.msra.mxu0 0.0
        %3702 = vmatprep.subr.mxu0 0.0
        %3703 = vmatpush2.msra.mxu0 0.0
        %3704 = vmatprep.subr.mxu0 0.0
        %3705 = vmatpush2.msra.mxu0 0.0
        %3706 = vmatprep.mubr.f32.mxu0 0.0
        %v3707 = vand.u32 %v3559, 4294901760
        %3708 = vmatmul.mubr.f32.gmra.mxu0 %v3707
        %v3709 = vpop.f32.mrf.mxu0
        %v3710 = vadd.f32 %v3634, %v3709
        %v3711 = vpop.f32.mrf.mxu0
        %3712 = vdwg.mxu0
        %3713 = vmatprep.subr.mxu0 0.0
        %3714 = vmatpush1.msra.mxu0 0.0
        %3715 = vmatprep.subr.mxu0 0.0
        %3716 = vmatpush1.msra.mxu0 0.0
        %3717 = vmatprep.subr.mxu0 0.0
        %3718 = vmatpush1.msra.mxu0 0.0
        %3719 = vmatprep.subr.mxu0 0.0
        %3720 = vmatpush1.msra.mxu0 0.0
        %3721 = vmatprep.subr.mxu0 0.0
        %3722 = vmatpush1.msra.mxu0 0.0
        %3723 = vmatprep.subr.mxu0 0.0
        %3724 = vmatpush1.msra.mxu0 0.0
        %3725 = vmatprep.subr.mxu0 0.0
        %3726 = vmatpush1.msra.mxu0 0.0
        %3727 = vmatprep.subr.mxu0 0.0
        %3728 = vmatpush1.msra.mxu0 0.0
        %3729 = vmatprep.subr.mxu0 0.0
        %3730 = vmatpush1.msra.mxu0 0.0
        %3731 = vmatprep.subr.mxu0 0.0
        %3732 = vmatpush1.msra.mxu0 0.0
        %3733 = vmatprep.subr.mxu0 0.0
        %3734 = vmatpush1.msra.mxu0 0.0
        %3735 = vmatprep.subr.mxu0 0.0
        %3736 = vmatpush1.msra.mxu0 0.0
        %3737 = vmatprep.subr.mxu0 0.0
        %3738 = vmatpush1.msra.mxu0 0.0
        %3739 = vmatprep.subr.mxu0 0.0
        %3740 = vmatpush1.msra.mxu0 0.0
        %3741 = vmatprep.subr.mxu0 0.0
        %3742 = vmatpush1.msra.mxu0 0.0
        %3743 = vmatprep.subr.mxu0 0.0
        %v3744 = vand.u32 %v342, 4294901760
        %v3745 = vsub.f32 %v342, %v3744
        %3746 = vmatpush1.msra.mxu0 %v3745
        %3747 = vmatprep.subr.mxu0 0.0
        %3748 = vmatpush2.msra.mxu0 0.0
        %3749 = vmatprep.subr.mxu0 0.0
        %3750 = vmatpush2.msra.mxu0 0.0
        %3751 = vmatprep.subr.mxu0 0.0
        %3752 = vmatpush2.msra.mxu0 0.0
        %3753 = vmatprep.subr.mxu0 0.0
        %3754 = vmatpush2.msra.mxu0 0.0
        %3755 = vmatprep.subr.mxu0 0.0
        %3756 = vmatpush2.msra.mxu0 0.0
        %3757 = vmatprep.subr.mxu0 0.0
        %3758 = vmatpush2.msra.mxu0 0.0
        %3759 = vmatprep.subr.mxu0 0.0
        %3760 = vmatpush2.msra.mxu0 0.0
        %3761 = vmatprep.subr.mxu0 0.0
        %3762 = vmatpush2.msra.mxu0 0.0
        %3763 = vmatprep.subr.mxu0 0.0
        %3764 = vmatpush2.msra.mxu0 0.0
        %3765 = vmatprep.subr.mxu0 0.0
        %3766 = vmatpush2.msra.mxu0 0.0
        %3767 = vmatprep.subr.mxu0 0.0
        %3768 = vmatpush2.msra.mxu0 0.0
        %3769 = vmatprep.subr.mxu0 0.0
        %3770 = vmatpush2.msra.mxu0 0.0
        %3771 = vmatprep.subr.mxu0 0.0
        %3772 = vmatpush2.msra.mxu0 0.0
        %3773 = vmatprep.subr.mxu0 0.0
        %3774 = vmatpush2.msra.mxu0 0.0
        %3775 = vmatprep.subr.mxu0 0.0
        %3776 = vmatpush2.msra.mxu0 0.0
        %3777 = vmatprep.subr.mxu0 0.0
        %3778 = vmatpush2.msra.mxu0 0.0
        %3779 = vmatprep.mubr.f32.mxu0 0.0
        %v3780 = vand.u32 %v3559, 4294901760
        %v3781 = vsub.f32 %v3559, %v3780
        %3782 = vmatmul.mubr.f32.gmra.mxu0 %v3781
        %v3783 = vpop.f32.mrf.mxu0
        %v3784 = vadd.f32 %v3710, %v3783
        %v3785 = vpop.f32.mrf.mxu0
        %3786 = vdwg.mxu0
        %3787 = vmatprep.subr.mxu0 0.0
        %3788 = vmatpush1.msra.mxu0 0.0
        %3789 = vmatprep.subr.mxu0 0.0
        %3790 = vmatpush1.msra.mxu0 0.0
        %3791 = vmatprep.subr.mxu0 0.0
        %3792 = vmatpush1.msra.mxu0 0.0
        %3793 = vmatprep.subr.mxu0 0.0
        %3794 = vmatpush1.msra.mxu0 0.0
        %3795 = vmatprep.subr.mxu0 0.0
        %3796 = vmatpush1.msra.mxu0 0.0
        %3797 = vmatprep.subr.mxu0 0.0
        %3798 = vmatpush1.msra.mxu0 0.0
        %3799 = vmatprep.subr.mxu0 0.0
        %3800 = vmatpush1.msra.mxu0 0.0
        %3801 = vmatprep.subr.mxu0 0.0
        %3802 = vmatpush1.msra.mxu0 0.0
        %3803 = vmatprep.subr.mxu0 0.0
        %3804 = vmatpush1.msra.mxu0 0.0
        %3805 = vmatprep.subr.mxu0 0.0
        %3806 = vmatpush1.msra.mxu0 0.0
        %3807 = vmatprep.subr.mxu0 0.0
        %3808 = vmatpush1.msra.mxu0 0.0
        %3809 = vmatprep.subr.mxu0 0.0
        %3810 = vmatpush1.msra.mxu0 0.0
        %3811 = vmatprep.subr.mxu0 0.0
        %3812 = vmatpush1.msra.mxu0 0.0
        %3813 = vmatprep.subr.mxu0 0.0
        %3814 = vmatpush1.msra.mxu0 0.0
        %3815 = vmatprep.subr.mxu0 0.0
        %3816 = vmatpush1.msra.mxu0 0.0
        %3817 = vmatprep.subr.mxu0 0.0
        %v3818 = vand.u32 %v342, 4294901760
        %3819 = vmatpush1.msra.mxu0 %v3818
        %3820 = vmatprep.subr.mxu0 0.0
        %3821 = vmatpush2.msra.mxu0 0.0
        %3822 = vmatprep.subr.mxu0 0.0
        %3823 = vmatpush2.msra.mxu0 0.0
        %3824 = vmatprep.subr.mxu0 0.0
        %3825 = vmatpush2.msra.mxu0 0.0
        %3826 = vmatprep.subr.mxu0 0.0
        %3827 = vmatpush2.msra.mxu0 0.0
        %3828 = vmatprep.subr.mxu0 0.0
        %3829 = vmatpush2.msra.mxu0 0.0
        %3830 = vmatprep.subr.mxu0 0.0
        %3831 = vmatpush2.msra.mxu0 0.0
        %3832 = vmatprep.subr.mxu0 0.0
        %3833 = vmatpush2.msra.mxu0 0.0
        %3834 = vmatprep.subr.mxu0 0.0
        %3835 = vmatpush2.msra.mxu0 0.0
        %3836 = vmatprep.subr.mxu0 0.0
        %3837 = vmatpush2.msra.mxu0 0.0
        %3838 = vmatprep.subr.mxu0 0.0
        %3839 = vmatpush2.msra.mxu0 0.0
        %3840 = vmatprep.subr.mxu0 0.0
        %3841 = vmatpush2.msra.mxu0 0.0
        %3842 = vmatprep.subr.mxu0 0.0
        %3843 = vmatpush2.msra.mxu0 0.0
        %3844 = vmatprep.subr.mxu0 0.0
        %3845 = vmatpush2.msra.mxu0 0.0
        %3846 = vmatprep.subr.mxu0 0.0
        %3847 = vmatpush2.msra.mxu0 0.0
        %3848 = vmatprep.subr.mxu0 0.0
        %3849 = vmatpush2.msra.mxu0 0.0
        %3850 = vmatprep.subr.mxu0 0.0
        %3851 = vmatpush2.msra.mxu0 0.0
        %3852 = vmatprep.mubr.f32.mxu0 0.0
        %v3853 = vand.u32 %v3559, 4294901760
        %v3854 = vsub.f32 %v3559, %v3853
        %v3855 = vand.u32 %v3854, 4294901760
        %3856 = vmatmul.mubr.f32.gmra.mxu0 %v3855
        %v3857 = vpop.f32.mrf.mxu0
        %v3858 = vadd.f32 %v3784, %v3857
        %v3859 = vpop.f32.mrf.mxu0
        %3860 = vdwg.mxu0
        %3861 = vmatprep.subr.mxu0 0.0
        %3862 = vmatpush1.msra.mxu0 0.0
        %3863 = vmatprep.subr.mxu0 0.0
        %3864 = vmatpush1.msra.mxu0 0.0
        %3865 = vmatprep.subr.mxu0 0.0
        %3866 = vmatpush1.msra.mxu0 0.0
        %3867 = vmatprep.subr.mxu0 0.0
        %3868 = vmatpush1.msra.mxu0 0.0
        %3869 = vmatprep.subr.mxu0 0.0
        %3870 = vmatpush1.msra.mxu0 0.0
        %3871 = vmatprep.subr.mxu0 0.0
        %3872 = vmatpush1.msra.mxu0 0.0
        %3873 = vmatprep.subr.mxu0 0.0
        %3874 = vmatpush1.msra.mxu0 0.0
        %3875 = vmatprep.subr.mxu0 0.0
        %3876 = vmatpush1.msra.mxu0 0.0
        %3877 = vmatprep.subr.mxu0 0.0
        %3878 = vmatpush1.msra.mxu0 0.0
        %3879 = vmatprep.subr.mxu0 0.0
        %3880 = vmatpush1.msra.mxu0 0.0
        %3881 = vmatprep.subr.mxu0 0.0
        %3882 = vmatpush1.msra.mxu0 0.0
        %3883 = vmatprep.subr.mxu0 0.0
        %3884 = vmatpush1.msra.mxu0 0.0
        %3885 = vmatprep.subr.mxu0 0.0
        %3886 = vmatpush1.msra.mxu0 0.0
        %3887 = vmatprep.subr.mxu0 0.0
        %3888 = vmatpush1.msra.mxu0 0.0
        %3889 = vmatprep.subr.mxu0 0.0
        %3890 = vmatpush1.msra.mxu0 0.0
        %3891 = vmatprep.subr.mxu0 0.0
        %v3892 = vand.u32 %v342, 4294901760
        %v3893 = vsub.f32 %v342, %v3892
        %v3894 = vand.u32 %v3893, 4294901760
        %3895 = vmatpush1.msra.mxu0 %v3894
        %3896 = vmatprep.subr.mxu0 0.0
        %3897 = vmatpush2.msra.mxu0 0.0
        %3898 = vmatprep.subr.mxu0 0.0
        %3899 = vmatpush2.msra.mxu0 0.0
        %3900 = vmatprep.subr.mxu0 0.0
        %3901 = vmatpush2.msra.mxu0 0.0
        %3902 = vmatprep.subr.mxu0 0.0
        %3903 = vmatpush2.msra.mxu0 0.0
        %3904 = vmatprep.subr.mxu0 0.0
        %3905 = vmatpush2.msra.mxu0 0.0
        %3906 = vmatprep.subr.mxu0 0.0
        %3907 = vmatpush2.msra.mxu0 0.0
        %3908 = vmatprep.subr.mxu0 0.0
        %3909 = vmatpush2.msra.mxu0 0.0
        %3910 = vmatprep.subr.mxu0 0.0
        %3911 = vmatpush2.msra.mxu0 0.0
        %3912 = vmatprep.subr.mxu0 0.0
        %3913 = vmatpush2.msra.mxu0 0.0
        %3914 = vmatprep.subr.mxu0 0.0
        %3915 = vmatpush2.msra.mxu0 0.0
        %3916 = vmatprep.subr.mxu0 0.0
        %3917 = vmatpush2.msra.mxu0 0.0
        %3918 = vmatprep.subr.mxu0 0.0
        %3919 = vmatpush2.msra.mxu0 0.0
        %3920 = vmatprep.subr.mxu0 0.0
        %3921 = vmatpush2.msra.mxu0 0.0
        %3922 = vmatprep.subr.mxu0 0.0
        %3923 = vmatpush2.msra.mxu0 0.0
        %3924 = vmatprep.subr.mxu0 0.0
        %3925 = vmatpush2.msra.mxu0 0.0
        %3926 = vmatprep.subr.mxu0 0.0
        %3927 = vmatpush2.msra.mxu0 0.0
        %3928 = vmatprep.mubr.f32.mxu0 0.0
        %v3929 = vand.u32 %v3559, 4294901760
        %3930 = vmatmul.mubr.f32.gmra.mxu0 %v3929
        %v3931 = vpop.f32.mrf.mxu0
        %v3932 = vadd.f32 %v3858, %v3931
        %v3933 = vpop.f32.mrf.mxu0
        %3934 = vdwg.mxu0
        %3935 = vmatprep.subr.mxu0 0.0
        %3936 = vmatpush1.msra.mxu0 0.0
        %3937 = vmatprep.subr.mxu0 0.0
        %3938 = vmatpush1.msra.mxu0 0.0
        %3939 = vmatprep.subr.mxu0 0.0
        %3940 = vmatpush1.msra.mxu0 0.0
        %3941 = vmatprep.subr.mxu0 0.0
        %3942 = vmatpush1.msra.mxu0 0.0
        %3943 = vmatprep.subr.mxu0 0.0
        %3944 = vmatpush1.msra.mxu0 0.0
        %3945 = vmatprep.subr.mxu0 0.0
        %3946 = vmatpush1.msra.mxu0 0.0
        %3947 = vmatprep.subr.mxu0 0.0
        %3948 = vmatpush1.msra.mxu0 0.0
        %3949 = vmatprep.subr.mxu0 0.0
        %3950 = vmatpush1.msra.mxu0 0.0
        %3951 = vmatprep.subr.mxu0 0.0
        %3952 = vmatpush1.msra.mxu0 0.0
        %3953 = vmatprep.subr.mxu0 0.0
        %3954 = vmatpush1.msra.mxu0 0.0
        %3955 = vmatprep.subr.mxu0 0.0
        %3956 = vmatpush1.msra.mxu0 0.0
        %3957 = vmatprep.subr.mxu0 0.0
        %3958 = vmatpush1.msra.mxu0 0.0
        %3959 = vmatprep.subr.mxu0 0.0
        %3960 = vmatpush1.msra.mxu0 0.0
        %3961 = vmatprep.subr.mxu0 0.0
        %3962 = vmatpush1.msra.mxu0 0.0
        %3963 = vmatprep.subr.mxu0 0.0
        %3964 = vmatpush1.msra.mxu0 0.0
        %3965 = vmatprep.subr.mxu0 0.0
        %v3966 = vand.u32 %v342, 4294901760
        %3967 = vmatpush1.msra.mxu0 %v3966
        %3968 = vmatprep.subr.mxu0 0.0
        %3969 = vmatpush2.msra.mxu0 0.0
        %3970 = vmatprep.subr.mxu0 0.0
        %3971 = vmatpush2.msra.mxu0 0.0
        %3972 = vmatprep.subr.mxu0 0.0
        %3973 = vmatpush2.msra.mxu0 0.0
        %3974 = vmatprep.subr.mxu0 0.0
        %3975 = vmatpush2.msra.mxu0 0.0
        %3976 = vmatprep.subr.mxu0 0.0
        %3977 = vmatpush2.msra.mxu0 0.0
        %3978 = vmatprep.subr.mxu0 0.0
        %3979 = vmatpush2.msra.mxu0 0.0
        %3980 = vmatprep.subr.mxu0 0.0
        %3981 = vmatpush2.msra.mxu0 0.0
        %3982 = vmatprep.subr.mxu0 0.0
        %3983 = vmatpush2.msra.mxu0 0.0
        %3984 = vmatprep.subr.mxu0 0.0
        %3985 = vmatpush2.msra.mxu0 0.0
        %3986 = vmatprep.subr.mxu0 0.0
        %3987 = vmatpush2.msra.mxu0 0.0
        %3988 = vmatprep.subr.mxu0 0.0
        %3989 = vmatpush2.msra.mxu0 0.0
        %3990 = vmatprep.subr.mxu0 0.0
        %3991 = vmatpush2.msra.mxu0 0.0
        %3992 = vmatprep.subr.mxu0 0.0
        %3993 = vmatpush2.msra.mxu0 0.0
        %3994 = vmatprep.subr.mxu0 0.0
        %3995 = vmatpush2.msra.mxu0 0.0
        %3996 = vmatprep.subr.mxu0 0.0
        %3997 = vmatpush2.msra.mxu0 0.0
        %3998 = vmatprep.subr.mxu0 0.0
        %3999 = vmatpush2.msra.mxu0 0.0
        %4000 = vmatprep.mubr.f32.mxu0 0.0
        %v4001 = vand.u32 %v3559, 4294901760
        %4002 = vmatmul.mubr.f32.gmra.mxu0 %v4001
        %v4003 = vpop.f32.mrf.mxu0
        %v4004 = vadd.f32 %v3932, %v4003
        %v4005 = vpop.f32.mrf.mxu0
        %4006 = vdwg.mxu0
        %v4008 = vsel %vm371, %v3557, 0
        %4010 = vmatprep.subr.mxu0 0.0
        %4011 = vmatpush1.msra.mxu0 0.0
        %4012 = vmatprep.subr.mxu0 0.0
        %4013 = vmatpush1.msra.mxu0 0.0
        %4014 = vmatprep.subr.mxu0 0.0
        %4015 = vmatpush1.msra.mxu0 0.0
        %4016 = vmatprep.subr.mxu0 0.0
        %4017 = vmatpush1.msra.mxu0 0.0
        %4018 = vmatprep.subr.mxu0 0.0
        %4019 = vmatpush1.msra.mxu0 0.0
        %4020 = vmatprep.subr.mxu0 0.0
        %4021 = vmatpush1.msra.mxu0 0.0
        %4022 = vmatprep.subr.mxu0 0.0
        %4023 = vmatpush1.msra.mxu0 0.0
        %4024 = vmatprep.subr.mxu0 0.0
        %4025 = vmatpush1.msra.mxu0 0.0
        %4026 = vmatprep.subr.mxu0 0.0
        %4027 = vmatpush1.msra.mxu0 0.0
        %4028 = vmatprep.subr.mxu0 0.0
        %4029 = vmatpush1.msra.mxu0 0.0
        %4030 = vmatprep.subr.mxu0 0.0
        %4031 = vmatpush1.msra.mxu0 0.0
        %4032 = vmatprep.subr.mxu0 0.0
        %4033 = vmatpush1.msra.mxu0 0.0
        %4034 = vmatprep.subr.mxu0 0.0
        %4035 = vmatpush1.msra.mxu0 0.0
        %4036 = vmatprep.subr.mxu0 0.0
        %4037 = vmatpush1.msra.mxu0 0.0
        %4038 = vmatprep.subr.mxu0 0.0
        %4039 = vmatpush1.msra.mxu0 0.0
        %4040 = vmatprep.subr.mxu0 0.0
        %v4041 = vand.u32 %v342, 4294901760
        %4042 = vmatpush1.msra.mxu0 %v4041
        %4043 = vmatprep.subr.mxu0 0.0
        %4044 = vmatpush2.msra.mxu0 0.0
        %4045 = vmatprep.subr.mxu0 0.0
        %4046 = vmatpush2.msra.mxu0 0.0
        %4047 = vmatprep.subr.mxu0 0.0
        %4048 = vmatpush2.msra.mxu0 0.0
        %4049 = vmatprep.subr.mxu0 0.0
        %4050 = vmatpush2.msra.mxu0 0.0
        %4051 = vmatprep.subr.mxu0 0.0
        %4052 = vmatpush2.msra.mxu0 0.0
        %4053 = vmatprep.subr.mxu0 0.0
        %4054 = vmatpush2.msra.mxu0 0.0
        %4055 = vmatprep.subr.mxu0 0.0
        %4056 = vmatpush2.msra.mxu0 0.0
        %4057 = vmatprep.subr.mxu0 0.0
        %4058 = vmatpush2.msra.mxu0 0.0
        %4059 = vmatprep.subr.mxu0 0.0
        %4060 = vmatpush2.msra.mxu0 0.0
        %4061 = vmatprep.subr.mxu0 0.0
        %4062 = vmatpush2.msra.mxu0 0.0
        %4063 = vmatprep.subr.mxu0 0.0
        %4064 = vmatpush2.msra.mxu0 0.0
        %4065 = vmatprep.subr.mxu0 0.0
        %4066 = vmatpush2.msra.mxu0 0.0
        %4067 = vmatprep.subr.mxu0 0.0
        %4068 = vmatpush2.msra.mxu0 0.0
        %4069 = vmatprep.subr.mxu0 0.0
        %4070 = vmatpush2.msra.mxu0 0.0
        %4071 = vmatprep.subr.mxu0 0.0
        %4072 = vmatpush2.msra.mxu0 0.0
        %4073 = vmatprep.subr.mxu0 0.0
        %4074 = vmatpush2.msra.mxu0 0.0
        %4075 = vmatprep.mubr.f32.mxu0 0.0
        %v4076 = vand.u32 %v4008, 4294901760
        %v4077 = vsub.f32 %v4008, %v4076
        %v4078 = vand.u32 %v4077, 4294901760
        %v4079 = vsub.f32 %v4077, %v4078
        %v4080 = vand.u32 %v4079, 4294901760
        %4081 = vmatmul.mubr.f32.gmra.mxu0 %v4080
        %v4082 = vpop.f32.mrf.mxu0
        %v4083 = vadd.f32 0.0, %v4082
        %v4084 = vpop.f32.mrf.mxu0
        %4085 = vdwg.mxu0
        %4086 = vmatprep.subr.mxu0 0.0
        %4087 = vmatpush1.msra.mxu0 0.0
        %4088 = vmatprep.subr.mxu0 0.0
        %4089 = vmatpush1.msra.mxu0 0.0
        %4090 = vmatprep.subr.mxu0 0.0
        %4091 = vmatpush1.msra.mxu0 0.0
        %4092 = vmatprep.subr.mxu0 0.0
        %4093 = vmatpush1.msra.mxu0 0.0
        %4094 = vmatprep.subr.mxu0 0.0
        %4095 = vmatpush1.msra.mxu0 0.0
        %4096 = vmatprep.subr.mxu0 0.0
        %4097 = vmatpush1.msra.mxu0 0.0
        %4098 = vmatprep.subr.mxu0 0.0
        %4099 = vmatpush1.msra.mxu0 0.0
        %4100 = vmatprep.subr.mxu0 0.0
        %4101 = vmatpush1.msra.mxu0 0.0
        %4102 = vmatprep.subr.mxu0 0.0
        %4103 = vmatpush1.msra.mxu0 0.0
        %4104 = vmatprep.subr.mxu0 0.0
        %4105 = vmatpush1.msra.mxu0 0.0
        %4106 = vmatprep.subr.mxu0 0.0
        %4107 = vmatpush1.msra.mxu0 0.0
        %4108 = vmatprep.subr.mxu0 0.0
        %4109 = vmatpush1.msra.mxu0 0.0
        %4110 = vmatprep.subr.mxu0 0.0
        %4111 = vmatpush1.msra.mxu0 0.0
        %4112 = vmatprep.subr.mxu0 0.0
        %4113 = vmatpush1.msra.mxu0 0.0
        %4114 = vmatprep.subr.mxu0 0.0
        %4115 = vmatpush1.msra.mxu0 0.0
        %4116 = vmatprep.subr.mxu0 0.0
        %v4117 = vand.u32 %v342, 4294901760
        %v4118 = vsub.f32 %v342, %v4117
        %v4119 = vand.u32 %v4118, 4294901760
        %v4120 = vsub.f32 %v4118, %v4119
        %v4121 = vand.u32 %v4120, 4294901760
        %4122 = vmatpush1.msra.mxu0 %v4121
        %4123 = vmatprep.subr.mxu0 0.0
        %4124 = vmatpush2.msra.mxu0 0.0
        %4125 = vmatprep.subr.mxu0 0.0
        %4126 = vmatpush2.msra.mxu0 0.0
        %4127 = vmatprep.subr.mxu0 0.0
        %4128 = vmatpush2.msra.mxu0 0.0
        %4129 = vmatprep.subr.mxu0 0.0
        %4130 = vmatpush2.msra.mxu0 0.0
        %4131 = vmatprep.subr.mxu0 0.0
        %4132 = vmatpush2.msra.mxu0 0.0
        %4133 = vmatprep.subr.mxu0 0.0
        %4134 = vmatpush2.msra.mxu0 0.0
        %4135 = vmatprep.subr.mxu0 0.0
        %4136 = vmatpush2.msra.mxu0 0.0
        %4137 = vmatprep.subr.mxu0 0.0
        %4138 = vmatpush2.msra.mxu0 0.0
        %4139 = vmatprep.subr.mxu0 0.0
        %4140 = vmatpush2.msra.mxu0 0.0
        %4141 = vmatprep.subr.mxu0 0.0
        %4142 = vmatpush2.msra.mxu0 0.0
        %4143 = vmatprep.subr.mxu0 0.0
        %4144 = vmatpush2.msra.mxu0 0.0
        %4145 = vmatprep.subr.mxu0 0.0
        %4146 = vmatpush2.msra.mxu0 0.0
        %4147 = vmatprep.subr.mxu0 0.0
        %4148 = vmatpush2.msra.mxu0 0.0
        %4149 = vmatprep.subr.mxu0 0.0
        %4150 = vmatpush2.msra.mxu0 0.0
        %4151 = vmatprep.subr.mxu0 0.0
        %4152 = vmatpush2.msra.mxu0 0.0
        %4153 = vmatprep.subr.mxu0 0.0
        %4154 = vmatpush2.msra.mxu0 0.0
        %4155 = vmatprep.mubr.f32.mxu0 0.0
        %v4156 = vand.u32 %v4008, 4294901760
        %4157 = vmatmul.mubr.f32.gmra.mxu0 %v4156
        %v4158 = vpop.f32.mrf.mxu0
        %v4159 = vadd.f32 %v4083, %v4158
        %v4160 = vpop.f32.mrf.mxu0
        %4161 = vdwg.mxu0
        %4162 = vmatprep.subr.mxu0 0.0
        %4163 = vmatpush1.msra.mxu0 0.0
        %4164 = vmatprep.subr.mxu0 0.0
        %4165 = vmatpush1.msra.mxu0 0.0
        %4166 = vmatprep.subr.mxu0 0.0
        %4167 = vmatpush1.msra.mxu0 0.0
        %4168 = vmatprep.subr.mxu0 0.0
        %4169 = vmatpush1.msra.mxu0 0.0
        %4170 = vmatprep.subr.mxu0 0.0
        %4171 = vmatpush1.msra.mxu0 0.0
        %4172 = vmatprep.subr.mxu0 0.0
        %4173 = vmatpush1.msra.mxu0 0.0
        %4174 = vmatprep.subr.mxu0 0.0
        %4175 = vmatpush1.msra.mxu0 0.0
        %4176 = vmatprep.subr.mxu0 0.0
        %4177 = vmatpush1.msra.mxu0 0.0
        %4178 = vmatprep.subr.mxu0 0.0
        %4179 = vmatpush1.msra.mxu0 0.0
        %4180 = vmatprep.subr.mxu0 0.0
        %4181 = vmatpush1.msra.mxu0 0.0
        %4182 = vmatprep.subr.mxu0 0.0
        %4183 = vmatpush1.msra.mxu0 0.0
        %4184 = vmatprep.subr.mxu0 0.0
        %4185 = vmatpush1.msra.mxu0 0.0
        %4186 = vmatprep.subr.mxu0 0.0
        %4187 = vmatpush1.msra.mxu0 0.0
        %4188 = vmatprep.subr.mxu0 0.0
        %4189 = vmatpush1.msra.mxu0 0.0
        %4190 = vmatprep.subr.mxu0 0.0
        %4191 = vmatpush1.msra.mxu0 0.0
        %4192 = vmatprep.subr.mxu0 0.0
        %v4193 = vand.u32 %v342, 4294901760
        %v4194 = vsub.f32 %v342, %v4193
        %4195 = vmatpush1.msra.mxu0 %v4194
        %4196 = vmatprep.subr.mxu0 0.0
        %4197 = vmatpush2.msra.mxu0 0.0
        %4198 = vmatprep.subr.mxu0 0.0
        %4199 = vmatpush2.msra.mxu0 0.0
        %4200 = vmatprep.subr.mxu0 0.0
        %4201 = vmatpush2.msra.mxu0 0.0
        %4202 = vmatprep.subr.mxu0 0.0
        %4203 = vmatpush2.msra.mxu0 0.0
        %4204 = vmatprep.subr.mxu0 0.0
        %4205 = vmatpush2.msra.mxu0 0.0
        %4206 = vmatprep.subr.mxu0 0.0
        %4207 = vmatpush2.msra.mxu0 0.0
        %4208 = vmatprep.subr.mxu0 0.0
        %4209 = vmatpush2.msra.mxu0 0.0
        %4210 = vmatprep.subr.mxu0 0.0
        %4211 = vmatpush2.msra.mxu0 0.0
        %4212 = vmatprep.subr.mxu0 0.0
        %4213 = vmatpush2.msra.mxu0 0.0
        %4214 = vmatprep.subr.mxu0 0.0
        %4215 = vmatpush2.msra.mxu0 0.0
        %4216 = vmatprep.subr.mxu0 0.0
        %4217 = vmatpush2.msra.mxu0 0.0
        %4218 = vmatprep.subr.mxu0 0.0
        %4219 = vmatpush2.msra.mxu0 0.0
        %4220 = vmatprep.subr.mxu0 0.0
        %4221 = vmatpush2.msra.mxu0 0.0
        %4222 = vmatprep.subr.mxu0 0.0
        %4223 = vmatpush2.msra.mxu0 0.0
        %4224 = vmatprep.subr.mxu0 0.0
        %4225 = vmatpush2.msra.mxu0 0.0
        %4226 = vmatprep.subr.mxu0 0.0
        %4227 = vmatpush2.msra.mxu0 0.0
        %4228 = vmatprep.mubr.f32.mxu0 0.0
        %v4229 = vand.u32 %v4008, 4294901760
        %v4230 = vsub.f32 %v4008, %v4229
        %4231 = vmatmul.mubr.f32.gmra.mxu0 %v4230
        %v4232 = vpop.f32.mrf.mxu0
        %v4233 = vadd.f32 %v4159, %v4232
        %v4234 = vpop.f32.mrf.mxu0
        %4235 = vdwg.mxu0
        %4236 = vmatprep.subr.mxu0 0.0
        %4237 = vmatpush1.msra.mxu0 0.0
        %4238 = vmatprep.subr.mxu0 0.0
        %4239 = vmatpush1.msra.mxu0 0.0
        %4240 = vmatprep.subr.mxu0 0.0
        %4241 = vmatpush1.msra.mxu0 0.0
        %4242 = vmatprep.subr.mxu0 0.0
        %4243 = vmatpush1.msra.mxu0 0.0
        %4244 = vmatprep.subr.mxu0 0.0
        %4245 = vmatpush1.msra.mxu0 0.0
        %4246 = vmatprep.subr.mxu0 0.0
        %4247 = vmatpush1.msra.mxu0 0.0
        %4248 = vmatprep.subr.mxu0 0.0
        %4249 = vmatpush1.msra.mxu0 0.0
        %4250 = vmatprep.subr.mxu0 0.0
        %4251 = vmatpush1.msra.mxu0 0.0
        %4252 = vmatprep.subr.mxu0 0.0
        %4253 = vmatpush1.msra.mxu0 0.0
        %4254 = vmatprep.subr.mxu0 0.0
        %4255 = vmatpush1.msra.mxu0 0.0
        %4256 = vmatprep.subr.mxu0 0.0
        %4257 = vmatpush1.msra.mxu0 0.0
        %4258 = vmatprep.subr.mxu0 0.0
        %4259 = vmatpush1.msra.mxu0 0.0
        %4260 = vmatprep.subr.mxu0 0.0
        %4261 = vmatpush1.msra.mxu0 0.0
        %4262 = vmatprep.subr.mxu0 0.0
        %4263 = vmatpush1.msra.mxu0 0.0
        %4264 = vmatprep.subr.mxu0 0.0
        %4265 = vmatpush1.msra.mxu0 0.0
        %4266 = vmatprep.subr.mxu0 0.0
        %v4267 = vand.u32 %v342, 4294901760
        %4268 = vmatpush1.msra.mxu0 %v4267
        %4269 = vmatprep.subr.mxu0 0.0
        %4270 = vmatpush2.msra.mxu0 0.0
        %4271 = vmatprep.subr.mxu0 0.0
        %4272 = vmatpush2.msra.mxu0 0.0
        %4273 = vmatprep.subr.mxu0 0.0
        %4274 = vmatpush2.msra.mxu0 0.0
        %4275 = vmatprep.subr.mxu0 0.0
        %4276 = vmatpush2.msra.mxu0 0.0
        %4277 = vmatprep.subr.mxu0 0.0
        %4278 = vmatpush2.msra.mxu0 0.0
        %4279 = vmatprep.subr.mxu0 0.0
        %4280 = vmatpush2.msra.mxu0 0.0
        %4281 = vmatprep.subr.mxu0 0.0
        %4282 = vmatpush2.msra.mxu0 0.0
        %4283 = vmatprep.subr.mxu0 0.0
        %4284 = vmatpush2.msra.mxu0 0.0
        %4285 = vmatprep.subr.mxu0 0.0
        %4286 = vmatpush2.msra.mxu0 0.0
        %4287 = vmatprep.subr.mxu0 0.0
        %4288 = vmatpush2.msra.mxu0 0.0
        %4289 = vmatprep.subr.mxu0 0.0
        %4290 = vmatpush2.msra.mxu0 0.0
        %4291 = vmatprep.subr.mxu0 0.0
        %4292 = vmatpush2.msra.mxu0 0.0
        %4293 = vmatprep.subr.mxu0 0.0
        %4294 = vmatpush2.msra.mxu0 0.0
        %4295 = vmatprep.subr.mxu0 0.0
        %4296 = vmatpush2.msra.mxu0 0.0
        %4297 = vmatprep.subr.mxu0 0.0
        %4298 = vmatpush2.msra.mxu0 0.0
        %4299 = vmatprep.subr.mxu0 0.0
        %4300 = vmatpush2.msra.mxu0 0.0
        %4301 = vmatprep.mubr.f32.mxu0 0.0
        %v4302 = vand.u32 %v4008, 4294901760
        %v4303 = vsub.f32 %v4008, %v4302
        %v4304 = vand.u32 %v4303, 4294901760
        %4305 = vmatmul.mubr.f32.gmra.mxu0 %v4304
        %v4306 = vpop.f32.mrf.mxu0
        %v4307 = vadd.f32 %v4233, %v4306
        %v4308 = vpop.f32.mrf.mxu0
        %4309 = vdwg.mxu0
        %4310 = vmatprep.subr.mxu0 0.0
        %4311 = vmatpush1.msra.mxu0 0.0
        %4312 = vmatprep.subr.mxu0 0.0
        %4313 = vmatpush1.msra.mxu0 0.0
        %4314 = vmatprep.subr.mxu0 0.0
        %4315 = vmatpush1.msra.mxu0 0.0
        %4316 = vmatprep.subr.mxu0 0.0
        %4317 = vmatpush1.msra.mxu0 0.0
        %4318 = vmatprep.subr.mxu0 0.0
        %4319 = vmatpush1.msra.mxu0 0.0
        %4320 = vmatprep.subr.mxu0 0.0
        %4321 = vmatpush1.msra.mxu0 0.0
        %4322 = vmatprep.subr.mxu0 0.0
        %4323 = vmatpush1.msra.mxu0 0.0
        %4324 = vmatprep.subr.mxu0 0.0
        %4325 = vmatpush1.msra.mxu0 0.0
        %4326 = vmatprep.subr.mxu0 0.0
        %4327 = vmatpush1.msra.mxu0 0.0
        %4328 = vmatprep.subr.mxu0 0.0
        %4329 = vmatpush1.msra.mxu0 0.0
        %4330 = vmatprep.subr.mxu0 0.0
        %4331 = vmatpush1.msra.mxu0 0.0
        %4332 = vmatprep.subr.mxu0 0.0
        %4333 = vmatpush1.msra.mxu0 0.0
        %4334 = vmatprep.subr.mxu0 0.0
        %4335 = vmatpush1.msra.mxu0 0.0
        %4336 = vmatprep.subr.mxu0 0.0
        %4337 = vmatpush1.msra.mxu0 0.0
        %4338 = vmatprep.subr.mxu0 0.0
        %4339 = vmatpush1.msra.mxu0 0.0
        %4340 = vmatprep.subr.mxu0 0.0
        %v4341 = vand.u32 %v342, 4294901760
        %v4342 = vsub.f32 %v342, %v4341
        %v4343 = vand.u32 %v4342, 4294901760
        %4344 = vmatpush1.msra.mxu0 %v4343
        %4345 = vmatprep.subr.mxu0 0.0
        %4346 = vmatpush2.msra.mxu0 0.0
        %4347 = vmatprep.subr.mxu0 0.0
        %4348 = vmatpush2.msra.mxu0 0.0
        %4349 = vmatprep.subr.mxu0 0.0
        %4350 = vmatpush2.msra.mxu0 0.0
        %4351 = vmatprep.subr.mxu0 0.0
        %4352 = vmatpush2.msra.mxu0 0.0
        %4353 = vmatprep.subr.mxu0 0.0
        %4354 = vmatpush2.msra.mxu0 0.0
        %4355 = vmatprep.subr.mxu0 0.0
        %4356 = vmatpush2.msra.mxu0 0.0
        %4357 = vmatprep.subr.mxu0 0.0
        %4358 = vmatpush2.msra.mxu0 0.0
        %4359 = vmatprep.subr.mxu0 0.0
        %4360 = vmatpush2.msra.mxu0 0.0
        %4361 = vmatprep.subr.mxu0 0.0
        %4362 = vmatpush2.msra.mxu0 0.0
        %4363 = vmatprep.subr.mxu0 0.0
        %4364 = vmatpush2.msra.mxu0 0.0
        %4365 = vmatprep.subr.mxu0 0.0
        %4366 = vmatpush2.msra.mxu0 0.0
        %4367 = vmatprep.subr.mxu0 0.0
        %4368 = vmatpush2.msra.mxu0 0.0
        %4369 = vmatprep.subr.mxu0 0.0
        %4370 = vmatpush2.msra.mxu0 0.0
        %4371 = vmatprep.subr.mxu0 0.0
        %4372 = vmatpush2.msra.mxu0 0.0
        %4373 = vmatprep.subr.mxu0 0.0
        %4374 = vmatpush2.msra.mxu0 0.0
        %4375 = vmatprep.subr.mxu0 0.0
        %4376 = vmatpush2.msra.mxu0 0.0
        %4377 = vmatprep.mubr.f32.mxu0 0.0
        %v4378 = vand.u32 %v4008, 4294901760
        %4379 = vmatmul.mubr.f32.gmra.mxu0 %v4378
        %v4380 = vpop.f32.mrf.mxu0
        %v4381 = vadd.f32 %v4307, %v4380
        %v4382 = vpop.f32.mrf.mxu0
        %4383 = vdwg.mxu0
        %4384 = vmatprep.subr.mxu0 0.0
        %4385 = vmatpush1.msra.mxu0 0.0
        %4386 = vmatprep.subr.mxu0 0.0
        %4387 = vmatpush1.msra.mxu0 0.0
        %4388 = vmatprep.subr.mxu0 0.0
        %4389 = vmatpush1.msra.mxu0 0.0
        %4390 = vmatprep.subr.mxu0 0.0
        %4391 = vmatpush1.msra.mxu0 0.0
        %4392 = vmatprep.subr.mxu0 0.0
        %4393 = vmatpush1.msra.mxu0 0.0
        %4394 = vmatprep.subr.mxu0 0.0
        %4395 = vmatpush1.msra.mxu0 0.0
        %4396 = vmatprep.subr.mxu0 0.0
        %4397 = vmatpush1.msra.mxu0 0.0
        %4398 = vmatprep.subr.mxu0 0.0
        %4399 = vmatpush1.msra.mxu0 0.0
        %4400 = vmatprep.subr.mxu0 0.0
        %4401 = vmatpush1.msra.mxu0 0.0
        %4402 = vmatprep.subr.mxu0 0.0
        %4403 = vmatpush1.msra.mxu0 0.0
        %4404 = vmatprep.subr.mxu0 0.0
        %4405 = vmatpush1.msra.mxu0 0.0
        %4406 = vmatprep.subr.mxu0 0.0
        %4407 = vmatpush1.msra.mxu0 0.0
        %4408 = vmatprep.subr.mxu0 0.0
        %4409 = vmatpush1.msra.mxu0 0.0
        %4410 = vmatprep.subr.mxu0 0.0
        %4411 = vmatpush1.msra.mxu0 0.0
        %4412 = vmatprep.subr.mxu0 0.0
        %4413 = vmatpush1.msra.mxu0 0.0
        %4414 = vmatprep.subr.mxu0 0.0
        %v4415 = vand.u32 %v342, 4294901760
        %4416 = vmatpush1.msra.mxu0 %v4415
        %4417 = vmatprep.subr.mxu0 0.0
        %4418 = vmatpush2.msra.mxu0 0.0
        %4419 = vmatprep.subr.mxu0 0.0
        %4420 = vmatpush2.msra.mxu0 0.0
        %4421 = vmatprep.subr.mxu0 0.0
        %4422 = vmatpush2.msra.mxu0 0.0
        %4423 = vmatprep.subr.mxu0 0.0
        %4424 = vmatpush2.msra.mxu0 0.0
        %4425 = vmatprep.subr.mxu0 0.0
        %4426 = vmatpush2.msra.mxu0 0.0
        %4427 = vmatprep.subr.mxu0 0.0
        %4428 = vmatpush2.msra.mxu0 0.0
        %4429 = vmatprep.subr.mxu0 0.0
        %4430 = vmatpush2.msra.mxu0 0.0
        %4431 = vmatprep.subr.mxu0 0.0
        %4432 = vmatpush2.msra.mxu0 0.0
        %4433 = vmatprep.subr.mxu0 0.0
        %4434 = vmatpush2.msra.mxu0 0.0
        %4435 = vmatprep.subr.mxu0 0.0
        %4436 = vmatpush2.msra.mxu0 0.0
        %4437 = vmatprep.subr.mxu0 0.0
        %4438 = vmatpush2.msra.mxu0 0.0
        %4439 = vmatprep.subr.mxu0 0.0
        %4440 = vmatpush2.msra.mxu0 0.0
        %4441 = vmatprep.subr.mxu0 0.0
        %4442 = vmatpush2.msra.mxu0 0.0
        %4443 = vmatprep.subr.mxu0 0.0
        %4444 = vmatpush2.msra.mxu0 0.0
        %4445 = vmatprep.subr.mxu0 0.0
        %4446 = vmatpush2.msra.mxu0 0.0
        %4447 = vmatprep.subr.mxu0 0.0
        %4448 = vmatpush2.msra.mxu0 0.0
        %4449 = vmatprep.mubr.f32.mxu0 0.0
        %v4450 = vand.u32 %v4008, 4294901760
        %4451 = vmatmul.mubr.f32.gmra.mxu0 %v4450
        %v4452 = vpop.f32.mrf.mxu0
        %v4453 = vadd.f32 %v4381, %v4452
        %v4454 = vpop.f32.mrf.mxu0
        %4455 = vdwg.mxu0
        %v4456 = vlaneseq
        %v4457 = vshrl.u32 %v4456, 7
        %v4458 = vsub.s32 0, %v4457
        %v4459 = vrot.slane %v4004, %v4458
        %v4460 = vsub.f32 %v2605, %v4459
        %v4461 = vsub.f32 %v2606, %v4459
        %v4462 = vlaneseq
        %v4463 = vshrl.u32 %v4462, 7
        %v4464 = vsub.s32 0, %v4463
        %v4465 = vrot.slane %v4453, %v4464
        %v4466 = vmul.f32 %v4460, %v4465
        %v4467 = vmul.f32 %v4461, %v4465
        %v4468 = vlaneseq
        %v4469 = vshrl.u32 %v4468, 7
        %v4470 = vsub.s32 4, %v4469
        %v4471 = vrot.slane %v339, %v4470
        %v4472 = vmul.f32 %v4466, %v4471
        %v4473 = vmul.f32 %v4467, %v4471
        %v4474 = vlaneseq
        %v4475 = vshrl.u32 %v4474, 7
        %v4476 = vsub.s32 5, %v4475
        %v4477 = vrot.slane %v339, %v4476
        %v4478 = vadd.f32 %v4472, %v4477
        %v4479 = vadd.f32 %v4473, %v4477
        %v4480 = vmin.f32 %v4478, 20.0
        %v4481 = vmin.f32 %v4479, 20.0
        %v4482 = vmul.f32 %v4480, 1.442695
        %v4483 = vpow.pop %v4482
        %v4484 = vmul.f32 %v4481, 1.442695
        %v4485 = vpow.pop %v4484
        %v4486 = vadd.f32 %v4483, 2.0
        %v4487 = vadd.f32 %v4485, 2.0
        %v4488 = vmul.f32 %v4483, %v4486
        %v4489 = vmul.f32 %v4485, %v4487
        %v4490 = vadd.f32 %v4488, 2.0
        %v4491 = vadd.f32 %v4489, 2.0
        %v4492 = vrcp.pop %v4490
        %v4493 = vrcp.pop %v4491
        %v4494 = vmul.f32 %v4488, %v4492
        %v4495 = vmul.f32 %v4489, %v4493
        %v4496 = vmul.f32 %v4478, %v4494
        %v4497 = vmul.f32 %v4479, %v4495
        %v4498 = vld [vmem:[%s7] sm:$0xf]
        %v4499 = vlaneseq
        %v4500 = vshrl.u32 %v4499, 7
        %v4501 = vsub.s32 6, %v4500
        %v4502 = vrot.slane %v339, %v4501
        %v4504 = vsel %vm375, %v4498, 0
        %4506 = vmatprep.subr.bf16.mxu0 0
        %4507 = vmatpush1.bf16.msra.mxu0 0
        %4508 = vmatprep.subr.bf16.mxu0 0
        %4509 = vmatpush1.bf16.msra.mxu0 0
        %4510 = vmatprep.subr.bf16.mxu0 0
        %4511 = vmatpush1.bf16.msra.mxu0 0
        %4512 = vmatprep.subr.bf16.mxu0 0
        %4513 = vmatpush1.bf16.msra.mxu0 0
        %4514 = vmatprep.subr.bf16.mxu0 0
        %4515 = vmatpush1.bf16.msra.mxu0 0
        %4516 = vmatprep.subr.bf16.mxu0 0
        %4517 = vmatpush1.bf16.msra.mxu0 0
        %4518 = vmatprep.subr.bf16.mxu0 0
        %4519 = vmatpush1.bf16.msra.mxu0 0
        %4520 = vmatprep.subr.bf16.mxu0 0
        %4521 = vmatpush1.bf16.msra.mxu0 %v4504
        %4522 = vmatprep.subr.bf16.mxu0 0
        %4523 = vmatpush2.bf16.msra.mxu0 0
        %4524 = vmatprep.subr.bf16.mxu0 0
        %4525 = vmatpush2.bf16.msra.mxu0 0
        %4526 = vmatprep.subr.bf16.mxu0 0
        %4527 = vmatpush2.bf16.msra.mxu0 0
        %4528 = vmatprep.subr.bf16.mxu0 0
        %4529 = vmatpush2.bf16.msra.mxu0 0
        %4530 = vmatprep.subr.bf16.mxu0 0
        %4531 = vmatpush2.bf16.msra.mxu0 0
        %4532 = vmatprep.subr.bf16.mxu0 0
        %4533 = vmatpush2.bf16.msra.mxu0 0
        %4534 = vmatprep.subr.bf16.mxu0 0
        %4535 = vmatpush2.bf16.msra.mxu0 0
        %4536 = vmatprep.subr.bf16.mxu0 0
        %4537 = vmatpush2.bf16.msra.mxu0 0
        %4538 = vmatprep.mubr.bf16.mxu0 0
        %4539 = vmatmul.mubr.bf16.gmra.mxu0 %v373
        %v4540 = vpop.f32.mrf.mxu0
        %v4541 = vadd.f32 %v4502, %v4540
        %v4542 = vpop.f32.mrf.mxu0
        %v4543 = vpop.f32.mrf.mxu0
        %v4544 = vadd.f32 %v4502, %v4543
        %v4545 = vpop.f32.mrf.mxu0
        %4546 = vdwg.mxu0
        %v4547 = vadd.f32 %v4496, %v4541
        %v4548 = vadd.f32 %v4497, %v4544
        %4549 = vst.msk [vmem:[%s332] sm:$0xff] %vm525, %v4547
        %4550 = vst.msk [vmem:[%s332 + $0x8] sm:$0xff] %vm525, %v4548
        %s4551 = sand.u32 %s211, 1
        %s4552 = scalar_lea.sflag [#allocation4], %s4551
        %s4553 = sand.u32 %s211, 1
        %s4554 = smul.addr %s4553, 16
        %s4555 = scalar_lea.vmem [#allocation5], %s4554
        // Predicated region
        $region57: #{tpu_custom_call.1} parent=51 // pred_check
          %p4556 = pneg %p221
        $region58: #{tpu_custom_call.1} parent=51 // pred_check_branch
          %4558 = sbr.rel (%p4556) target = $region60
        $region59: #{tpu_custom_call.1} parent=51 // pred_region
          %s4560 = ssub.s32 256, 256
          %4561 = vsyncadd %s4552, %s4560
          %s4562 = smul.addr %s25, 2
          %s4563 = smul.addr %s4562, 128
          %s4564 = scalar_lea.hbm %s8, %s4563
          %s4565 = sshll.u32 %s4555, 4
          %s4566 = int_to_ptr.vmem [resolvable:$true] %s4565
          %4571 = dma.vmem_to_hbm [thread:$0]  %s4566, 256, %s4564, %s4552, 128, 128, 8
        $region60: #{tpu_custom_call.1} parent=51 // pred_fallthru
          _
      $region52: #{tpu_custom_call.1} parent=5 // pred_fallthru
        _
      %p4572 = scmp.le.s32.totalorder 2, %s20
      // Predicated region
      $region61: #{tpu_custom_call.1} parent=5 // pred_check
        %p4573 = pneg %p4572
      $region62: #{tpu_custom_call.1} parent=5 // pred_check_branch
        %4575 = sbr.rel (%p4573) target = $region64
      $region63: #{tpu_custom_call.1} parent=5 // pred_region
        %s4576 = ssub.s32 %s20, 2
        // Predicated region
        $region65: #{tpu_custom_call.1} parent=63 // pred_check
          %p4577 = pneg %p227
        $region66: #{tpu_custom_call.1} parent=63 // pred_check_branch
          %4579 = sbr.rel (%p4577) target = $region68
        $region67: #{tpu_custom_call.1} parent=63 // pred_region
          %s4580 = sand.u32 %s212, 1
          %s4581 = scalar_lea.sflag [#allocation4], %s4580
          %s4582 = sand.u32 %s212, 1
          %s4583 = smul.addr %s4582, 16
          %s4584 = scalar_lea.vmem [#allocation5], %s4583
          %4585 = dma.done %s4581, 256
        $region68: #{tpu_custom_call.1} parent=63 // pred_fallthru
          _
      $region64: #{tpu_custom_call.1} parent=5 // pred_fallthru
        _
    $region6: #{tpu_custom_call.1} parent=1 // loop_footer
      %s24 = sadd.s32 1, %s20
    $region7: #{tpu_custom_call.1} parent=1 // loop_footer_branch
      %19 = sbr.rel target = $region3
    $region8: #{tpu_custom_call.1} parent=1 // loop_exit
      _
    %4586 = vsyncpa [#allocation3], 1
    %s4587 = scalar_lea.sflag [#allocation3], 1
    %4588 = vsyncpa %s4587, 1
    %4589 = vsyncpa [#allocation4], 1
    %s4590 = scalar_lea.sflag [#allocation4], 1
    %4591 = vsyncpa %s4590, 1

</llo_original>
